<compile_context>
chip_gen: v6e
topology: v6e:2x2x1
jax: 0.10.0
libtpu: 0.0.40
codegen_flags: <defaults>
</compile_context>

<pallas_src>
import jax
import jax.numpy as jnp
from jax.experimental import pallas as pl
from jax.experimental.pallas import tpu as pltpu


def _mf_kernel(user_ref, item_ref, u_tab_ref, i_tab_ref, out_ref):
    # user_ref / item_ref: (TB, 1) int32 index columns for this batch tile.
    # u_tab_ref: (n_users, F2) f32 bias-augmented user table (VMEM resident).
    # i_tab_ref: (n_items, F2) f32 bias-augmented item table (VMEM resident).
    # out_ref:   (1, TB) f32 lane-dense scores for this tile.
    tb = user_ref.shape[0]
    n_users = u_tab_ref.shape[0]
    n_items = i_tab_ref.shape[0]
    f2 = u_tab_ref.shape[1]

    u_ids = user_ref[...]                                    # (TB, 1) int32
    i_ids = item_ref[...]                                    # (TB, 1) int32

    # Gather TB rows from each resident table via one-hot matmul on the MXU.
    u_oh = (u_ids == jax.lax.broadcasted_iota(jnp.int32, (tb, n_users), 1)
            ).astype(jnp.float32)                            # (TB, n_users)
    i_oh = (i_ids == jax.lax.broadcasted_iota(jnp.int32, (tb, n_items), 1)
            ).astype(jnp.float32)                            # (TB, n_items)

    u_rows = jnp.dot(u_oh, u_tab_ref[...],
                     preferred_element_type=jnp.float32,
                     precision=jax.lax.Precision.HIGHEST)    # (TB, F2)
    i_rows = jnp.dot(i_oh, i_tab_ref[...],
                     preferred_element_type=jnp.float32,
                     precision=jax.lax.Precision.HIGHEST)    # (TB, F2)

    prod = u_rows * i_rows                                   # (TB, F2)

    # Feature-axis reduction as ones(1,F2) @ prod^T -> (1, TB): keeps the
    # result lane-dense so the output store is a full-width vst.
    ones_row = jnp.ones((1, f2), jnp.float32)
    scores = jax.lax.dot_general(
        ones_row, prod,
        dimension_numbers=(((1,), (1,)), ((), ())),
        preferred_element_type=jnp.float32,
        precision=jax.lax.Precision.HIGHEST)                 # (1, TB)
    out_ref[...] = scores


def mfnet_forward(user, item, u_bias, i_bias, u_embed, i_embed, *, tile_b=256):
    """Pallas implementation of MFNet.forward.

    Args:
      user:  (B,) integer user indices
      item:  (B,) integer item indices
      u_bias: (n_users, 1) f32,  i_bias: (n_items, 1) f32
      u_embed: (n_users, n_feats) f32, i_embed: (n_items, n_feats) f32
    Returns:
      (B,) f32 scores.
    """
    B = user.shape[0]
    n_users, n_feats = u_embed.shape
    n_items = i_embed.shape[0]
    f32 = jnp.float32

    user = user.astype(jnp.int32)
    item = item.astype(jnp.int32)

    # Fold biases into the tables:  u_aug[u] . i_aug[i] = ips + ub + ib.
    u_aug = jnp.concatenate(
        [u_embed.astype(f32), u_bias.astype(f32), jnp.ones((n_users, 1), f32)],
        axis=1)
    i_aug = jnp.concatenate(
        [i_embed.astype(f32), jnp.ones((n_items, 1), f32), i_bias.astype(f32)],
        axis=1)
    f2 = n_feats + 2

    # Batch tiling: TB is a multiple of 128 (lane-dense output), pad B up.
    tb = max(128, min(tile_b, pl.cdiv(B, 128) * 128))
    padded_b = pl.cdiv(B, tb) * tb
    num_tiles = padded_b // tb

    user_p = jnp.zeros((padded_b,), jnp.int32).at[:B].set(user)
    item_p = jnp.zeros((padded_b,), jnp.int32).at[:B].set(item)
    user_p = user_p.reshape(padded_b, 1)
    item_p = item_p.reshape(padded_b, 1)

    out = pl.pallas_call(
        _mf_kernel,
        out_shape=jax.ShapeDtypeStruct((num_tiles, tb), f32),
        grid=(num_tiles,),
        in_specs=[
            # Per-tile index columns.
            pl.BlockSpec((tb, 1), lambda b: (b, 0)),
            pl.BlockSpec((tb, 1), lambda b: (b, 0)),
            # Whole augmented tables, resident in VMEM across the grid.
            pl.BlockSpec((n_users, f2), lambda b: (0, 0)),
            pl.BlockSpec((n_items, f2), lambda b: (0, 0)),
        ],
        out_specs=pl.BlockSpec((1, tb), lambda b: (b, 0)),
        compiler_params=pltpu.CompilerParams(
            dimension_semantics=("parallel",),
            vmem_limit_bytes=32 * 1024 * 1024),
    )(user_p, item_p, u_aug, i_aug)

    return out.reshape(padded_b)[:B]


if __name__ == "__main__":
    # Small, deterministic synthetic setup (matches MFNet.__init__ shapes).
    n_users, n_items, n_feats, B = 64, 80, 32, 8

    key = jax.random.PRNGKey(0)
    k1, k2, k3, k4, k5, k6 = jax.random.split(key, 6)

    # nn.Embedding default init is N(0, 1); MFNet then multiplies by 0.05.
    u_bias = 0.05 * jax.random.normal(k1, (n_users, 1), jnp.float32)
    i_bias = 0.05 * jax.random.normal(k2, (n_items, 1), jnp.float32)
    u_embed = 0.05 * jax.random.normal(k3, (n_users, n_feats), jnp.float32)
    i_embed = 0.05 * jax.random.normal(k4, (n_items, n_feats), jnp.float32)

    user = jax.random.randint(k5, (B,), 0, n_users, dtype=jnp.int32)
    item = jax.random.randint(k6, (B,), 0, n_items, dtype=jnp.int32)

    score = mfnet_forward(user, item, u_bias, i_bias, u_embed, i_embed)
    score = jax.block_until_ready(score)

    # Pure-JAX reference for correctness.
    ref = (u_bias[user, 0] + i_bias[item, 0]
           + jnp.sum(u_embed[user] * i_embed[item], axis=-1))
    assert score.shape == (B,)
    assert jnp.allclose(score, ref, atol=1e-5, rtol=1e-5), (score, ref)

    print("KERNEL_OK")
</pallas_src>

<mosaic_0001>
module attributes {stable_mosaic.version = 11 : i64} {
  func.func @_mf_kernel(%arg0: i32, %arg1: memref<128x1xi32, #tpu.memory_space<vmem>>, %arg2: memref<128x1xi32, #tpu.memory_space<vmem>>, %arg3: memref<64x34xf32, #tpu.memory_space<vmem>>, %arg4: memref<80x34xf32, #tpu.memory_space<vmem>>, %arg5: memref<1x128xf32, #tpu.memory_space<vmem>>) attributes {dimension_semantics = [#tpu.dimension_semantics<parallel>], iteration_bounds = array<i64: 1>, scalar_prefetch = 0 : i64, scratch_operands = 0 : i64, tpu.core_type = #tpu.core_type<tc>, window_params = [{transform_indices = @transform_0, window_bounds = array<i64: 128, 1>}, {transform_indices = @transform_1, window_bounds = array<i64: 128, 1>}, {pipeline_mode = #tpu.pipeline_mode<synchronous>, transform_indices = @transform_2, window_bounds = array<i64: 64, 34>}, {pipeline_mode = #tpu.pipeline_mode<synchronous>, transform_indices = @transform_3, window_bounds = array<i64: 80, 34>}, {transform_indices = @transform_4, window_bounds = array<i64: 1, 128>}]} {
    %c0 = arith.constant 0 : index
    %c0_0 = arith.constant 0 : index
    %0 = vector.load %arg1[%c0, %c0_0] : memref<128x1xi32, #tpu.memory_space<vmem>>, vector<128x1xi32>
    %c0_1 = arith.constant 0 : index
    %c0_2 = arith.constant 0 : index
    %1 = vector.load %arg2[%c0_1, %c0_2] : memref<128x1xi32, #tpu.memory_space<vmem>>, vector<128x1xi32>
    %2 = tpu.iota {dimensions = array<i32: 1>} : vector<128x64xi32>
    %3 = vector.broadcast %0 : vector<128x1xi32> to vector<128x64xi32>
    %4 = arith.cmpi eq, %3, %2 : vector<128x64xi32>
    %5 = arith.extui %4 : vector<128x64xi1> to vector<128x64xi32>
    %6 = arith.sitofp %5 : vector<128x64xi32> to vector<128x64xf32>
    %7 = tpu.iota {dimensions = array<i32: 1>} : vector<128x80xi32>
    %8 = vector.broadcast %1 : vector<128x1xi32> to vector<128x80xi32>
    %9 = arith.cmpi eq, %8, %7 : vector<128x80xi32>
    %10 = arith.extui %9 : vector<128x80xi1> to vector<128x80xi32>
    %11 = arith.sitofp %10 : vector<128x80xi32> to vector<128x80xf32>
    %c0_3 = arith.constant 0 : index
    %c0_4 = arith.constant 0 : index
    %12 = vector.load %arg3[%c0_3, %c0_4] : memref<64x34xf32, #tpu.memory_space<vmem>>, vector<64x34xf32>
    %cst = arith.constant dense<0.000000e+00> : vector<128x34xf32>
    %13 = tpu.matmul %6, %12, %cst {dimension_numbers = #tpu.dot_dimension_numbers<[1], [0], [0], [1], [0, 0, 1, 1], [], []>, precision = #tpu.contract_precision<fp32>} : vector<128x64xf32>, vector<64x34xf32>, vector<128x34xf32> -> vector<128x34xf32>
    %c0_5 = arith.constant 0 : index
    %c0_6 = arith.constant 0 : index
    %14 = vector.load %arg4[%c0_5, %c0_6] : memref<80x34xf32, #tpu.memory_space<vmem>>, vector<80x34xf32>
    %cst_7 = arith.constant dense<0.000000e+00> : vector<128x34xf32>
    %15 = tpu.matmul %11, %14, %cst_7 {dimension_numbers = #tpu.dot_dimension_numbers<[1], [0], [0], [1], [0, 0, 1, 1], [], []>, precision = #tpu.contract_precision<fp32>} : vector<128x80xf32>, vector<80x34xf32>, vector<128x34xf32> -> vector<128x34xf32>
    %16 = arith.mulf %13, %15 : vector<128x34xf32>
    %cst_8 = arith.constant 1.000000e+00 : f32
    %17 = vector.broadcast %cst_8 : f32 to vector<1x34xf32>
    %cst_9 = arith.constant dense<0.000000e+00> : vector<1x128xf32>
    %18 = tpu.matmul %17, %16, %cst_9 {dimension_numbers = #tpu.dot_dimension_numbers<[1], [1], [0], [0], [0, 0, 1, 0], [], []>, precision = #tpu.contract_precision<fp32>} : vector<1x34xf32>, vector<128x34xf32>, vector<1x128xf32> -> vector<1x128xf32>
    %c0_10 = arith.constant 0 : index
    %c0_11 = arith.constant 0 : index
    %19 = vector.load %arg5[%c0_10, %c0_11] : memref<1x128xf32, #tpu.memory_space<vmem>>, vector<1x128xf32>
    tpu.vector_store %arg5[%c0_10, %c0_11], %18 {strides = array<i32>} : memref<1x128xf32, #tpu.memory_space<vmem>>, vector<1x128xf32>,
    return
  }
  func.func @transform_0(%arg0: i32) -> (i32, i32) {
    %c0_i32 = arith.constant 0 : i32
    %c0_i32_0 = arith.constant 0 : i32
    return %arg0, %c0_i32 : i32, i32
  }
  func.func @transform_1(%arg0: i32) -> (i32, i32) {
    %c0_i32 = arith.constant 0 : i32
    %c0_i32_0 = arith.constant 0 : i32
    return %arg0, %c0_i32 : i32, i32
  }
  func.func @transform_2(%arg0: i32) -> (i32, i32) {
    %c0_i32 = arith.constant 0 : i32
    %c0_i32_0 = arith.constant 0 : i32
    %c0_i32_1 = arith.constant 0 : i32
    return %c0_i32, %c0_i32_0 : i32, i32
  }
  func.func @transform_3(%arg0: i32) -> (i32, i32) {
    %c0_i32 = arith.constant 0 : i32
    %c0_i32_0 = arith.constant 0 : i32
    %c0_i32_1 = arith.constant 0 : i32
    return %c0_i32, %c0_i32_0 : i32, i32
  }
  func.func @transform_4(%arg0: i32) -> (i32, i32) {
    %c0_i32 = arith.constant 0 : i32
    %c0_i32_0 = arith.constant 0 : i32
    return %arg0, %c0_i32 : i32, i32
  }
}

</mosaic_0001>

<llo_original>
// kernel: tpu_custom_call.1
$region0: #{tpu_custom_call.1}
  #allocation0 [shape = 'u32[]', space=smem, size = 0x4, offset = 0x4, fixed_abs, tag = 'smem constant byte address 0x4 - core index']
  #allocation1 [shape = 'u32[144,128]{1,0:T(1,128)}', space=vmem, size = 0x12000, scoped, tag = 'internal scratch']
  %s0 = inlined_call_operand.vmem [shape: s32[128,1], index: 0, kind: input, shape index: {}]
  %s1 = inlined_call_operand.vmem [shape: s32[128,1], index: 1, kind: input, shape index: {}]
  %s2 = inlined_call_operand.vmem [shape: f32[64,34], index: 2, kind: input, shape index: {}]
  %s3 = inlined_call_operand.vmem [shape: f32[80,34], index: 3, kind: input, shape index: {}]
  %s4 = inlined_call_operand.hbm [shape: f32[1,128], index: 4, kind: output, shape index: {}]
  %s5 = sld [smem:[#allocation0]]
  $region26: #{tpu_custom_call.1} parent=0
    _
  %s7 = ssub.s32 1, %s5
  %s8 = scalar_select 0, %s7, %s5
  $region1: #{tpu_custom_call.1} parent=0
    #allocation2 [shape = 'u8[512]{0}', space=vmem, size = 0x400, scoped, tag = 'output window, operand 0, single buffered']
    #allocation3 [shape = 's32[1]{0}', space=sflag, size = 0x4, scoped, tag = 'scoped memory for tpu_custom_call.1']
    %9 = vsyncpa [#allocation3], 0
    // Predicated region
    $region2: #{tpu_custom_call.1} parent=1 // pred_check
      _
    $region3: #{tpu_custom_call.1} parent=1 // pred_check_branch
      %11 = sbr.rel (0) target = $region5
    $region4: #{tpu_custom_call.1} parent=1 // pred_region
      _
    $region5: #{tpu_custom_call.1} parent=1 // pred_fallthru
      _
    // Predicated region
    $region6: #{tpu_custom_call.1} parent=1 // pred_check
      _
    $region7: #{tpu_custom_call.1} parent=1 // pred_check_branch
      %13 = sbr.rel (0) target = $region9
    $region8: #{tpu_custom_call.1} parent=1 // pred_region
      _
    $region9: #{tpu_custom_call.1} parent=1 // pred_fallthru
      _
    // Predicated region
    $region10: #{tpu_custom_call.1} parent=1 // pred_check
      _
    $region11: #{tpu_custom_call.1} parent=1 // pred_check_branch
      %15 = sbr.rel (0) target = $region13
    $region12: #{tpu_custom_call.1} parent=1 // pred_region
      _
    $region13: #{tpu_custom_call.1} parent=1 // pred_fallthru
      _
    // Predicated region
    $region14: #{tpu_custom_call.1} parent=1 // pred_check
      _
    $region15: #{tpu_custom_call.1} parent=1 // pred_check_branch
      %17 = sbr.rel (0) target = $region17
    $region16: #{tpu_custom_call.1} parent=1 // pred_region
      _
    $region17: #{tpu_custom_call.1} parent=1 // pred_fallthru
      _
    %v18 = vld [vmem:[%s0] sm:$0xff]
    %v19 = vld [vmem:[%s0 + $0x8] sm:$0xff]
    %v20 = vld [vmem:[%s0 + $0x10] sm:$0xff]
    %v21 = vld [vmem:[%s0 + $0x18] sm:$0xff]
    %v22 = vld [vmem:[%s0 + $0x20] sm:$0xff]
    %v23 = vld [vmem:[%s0 + $0x28] sm:$0xff]
    %v24 = vld [vmem:[%s0 + $0x30] sm:$0xff]
    %v25 = vld [vmem:[%s0 + $0x38] sm:$0xff]
    %v26 = vld [vmem:[%s0 + $0x40] sm:$0xff]
    %v27 = vld [vmem:[%s0 + $0x48] sm:$0xff]
    %v28 = vld [vmem:[%s0 + $0x50] sm:$0xff]
    %v29 = vld [vmem:[%s0 + $0x58] sm:$0xff]
    %v30 = vld [vmem:[%s0 + $0x60] sm:$0xff]
    %v31 = vld [vmem:[%s0 + $0x68] sm:$0xff]
    %v32 = vld [vmem:[%s0 + $0x70] sm:$0xff]
    %v33 = vld [vmem:[%s0 + $0x78] sm:$0xff]
    %v34 = vld [vmem:[%s1] sm:$0xff]
    %v35 = vld [vmem:[%s1 + $0x8] sm:$0xff]
    %v36 = vld [vmem:[%s1 + $0x10] sm:$0xff]
    %v37 = vld [vmem:[%s1 + $0x18] sm:$0xff]
    %v38 = vld [vmem:[%s1 + $0x20] sm:$0xff]
    %v39 = vld [vmem:[%s1 + $0x28] sm:$0xff]
    %v40 = vld [vmem:[%s1 + $0x30] sm:$0xff]
    %v41 = vld [vmem:[%s1 + $0x38] sm:$0xff]
    %v42 = vld [vmem:[%s1 + $0x40] sm:$0xff]
    %v43 = vld [vmem:[%s1 + $0x48] sm:$0xff]
    %v44 = vld [vmem:[%s1 + $0x50] sm:$0xff]
    %v45 = vld [vmem:[%s1 + $0x58] sm:$0xff]
    %v46 = vld [vmem:[%s1 + $0x60] sm:$0xff]
    %v47 = vld [vmem:[%s1 + $0x68] sm:$0xff]
    %v48 = vld [vmem:[%s1 + $0x70] sm:$0xff]
    %v49 = vld [vmem:[%s1 + $0x78] sm:$0xff]
    %v50 = vlaneseq
    %v51 = vand.u32 %v50, 127
    %52 = vset.pattern.permute.xlu0 0
    %53 = vperm.xlu0 %52, %v18
    %v54 = vpop.permute.xlu0 %53
    %55 = vset.pattern.permute.xlu0 0
    %56 = vperm.xlu0 %55, %v19
    %v57 = vpop.permute.xlu0 %56
    %58 = vset.pattern.permute.xlu0 0
    %59 = vperm.xlu0 %58, %v20
    %v60 = vpop.permute.xlu0 %59
    %61 = vset.pattern.permute.xlu0 0
    %62 = vperm.xlu0 %61, %v21
    %v63 = vpop.permute.xlu0 %62
    %64 = vset.pattern.permute.xlu0 0
    %65 = vperm.xlu0 %64, %v22
    %v66 = vpop.permute.xlu0 %65
    %67 = vset.pattern.permute.xlu0 0
    %68 = vperm.xlu0 %67, %v23
    %v69 = vpop.permute.xlu0 %68
    %70 = vset.pattern.permute.xlu0 0
    %71 = vperm.xlu0 %70, %v24
    %v72 = vpop.permute.xlu0 %71
    %73 = vset.pattern.permute.xlu0 0
    %74 = vperm.xlu0 %73, %v25
    %v75 = vpop.permute.xlu0 %74
    %76 = vset.pattern.permute.xlu0 0
    %77 = vperm.xlu0 %76, %v26
    %v78 = vpop.permute.xlu0 %77
    %79 = vset.pattern.permute.xlu0 0
    %80 = vperm.xlu0 %79, %v27
    %v81 = vpop.permute.xlu0 %80
    %82 = vset.pattern.permute.xlu0 0
    %83 = vperm.xlu0 %82, %v28
    %v84 = vpop.permute.xlu0 %83
    %85 = vset.pattern.permute.xlu0 0
    %86 = vperm.xlu0 %85, %v29
    %v87 = vpop.permute.xlu0 %86
    %88 = vset.pattern.permute.xlu0 0
    %89 = vperm.xlu0 %88, %v30
    %v90 = vpop.permute.xlu0 %89
    %91 = vset.pattern.permute.xlu0 0
    %92 = vperm.xlu0 %91, %v31
    %v93 = vpop.permute.xlu0 %92
    %94 = vset.pattern.permute.xlu0 0
    %95 = vperm.xlu0 %94, %v32
    %v96 = vpop.permute.xlu0 %95
    %97 = vset.pattern.permute.xlu0 0
    %98 = vperm.xlu0 %97, %v33
    %v99 = vpop.permute.xlu0 %98
    %vm100 = vcmp.eq.s32.totalorder %v54, %v51
    %vm101 = vcmp.eq.s32.totalorder %v57, %v51
    %vm102 = vcmp.eq.s32.totalorder %v60, %v51
    %vm103 = vcmp.eq.s32.totalorder %v63, %v51
    %vm104 = vcmp.eq.s32.totalorder %v66, %v51
    %vm105 = vcmp.eq.s32.totalorder %v69, %v51
    %vm106 = vcmp.eq.s32.totalorder %v72, %v51
    %vm107 = vcmp.eq.s32.totalorder %v75, %v51
    %vm108 = vcmp.eq.s32.totalorder %v78, %v51
    %vm109 = vcmp.eq.s32.totalorder %v81, %v51
    %vm110 = vcmp.eq.s32.totalorder %v84, %v51
    %vm111 = vcmp.eq.s32.totalorder %v87, %v51
    %vm112 = vcmp.eq.s32.totalorder %v90, %v51
    %vm113 = vcmp.eq.s32.totalorder %v93, %v51
    %vm114 = vcmp.eq.s32.totalorder %v96, %v51
    %vm115 = vcmp.eq.s32.totalorder %v99, %v51
    %v116 = vsel %vm100, 1, 0
    %v117 = vsel %vm101, 1, 0
    %v118 = vsel %vm102, 1, 0
    %v119 = vsel %vm103, 1, 0
    %v120 = vsel %vm104, 1, 0
    %v121 = vsel %vm105, 1, 0
    %v122 = vsel %vm106, 1, 0
    %v123 = vsel %vm107, 1, 0
    %v124 = vsel %vm108, 1, 0
    %v125 = vsel %vm109, 1, 0
    %v126 = vsel %vm110, 1, 0
    %v127 = vsel %vm111, 1, 0
    %v128 = vsel %vm112, 1, 0
    %v129 = vsel %vm113, 1, 0
    %v130 = vsel %vm114, 1, 0
    %v131 = vsel %vm115, 1, 0
    %v132 = vcvt.s32.f32 %v116
    %v133 = vcvt.s32.f32 %v117
    %v134 = vcvt.s32.f32 %v118
    %v135 = vcvt.s32.f32 %v119
    %v136 = vcvt.s32.f32 %v120
    %v137 = vcvt.s32.f32 %v121
    %v138 = vcvt.s32.f32 %v122
    %v139 = vcvt.s32.f32 %v123
    %v140 = vcvt.s32.f32 %v124
    %v141 = vcvt.s32.f32 %v125
    %v142 = vcvt.s32.f32 %v126
    %v143 = vcvt.s32.f32 %v127
    %v144 = vcvt.s32.f32 %v128
    %v145 = vcvt.s32.f32 %v129
    %v146 = vcvt.s32.f32 %v130
    %v147 = vcvt.s32.f32 %v131
    %148 = vset.pattern.permute.xlu0 0
    %149 = vperm.xlu0 %148, %v34
    %v150 = vpop.permute.xlu0 %149
    %151 = vset.pattern.permute.xlu0 0
    %152 = vperm.xlu0 %151, %v35
    %v153 = vpop.permute.xlu0 %152
    %154 = vset.pattern.permute.xlu0 0
    %155 = vperm.xlu0 %154, %v36
    %v156 = vpop.permute.xlu0 %155
    %157 = vset.pattern.permute.xlu0 0
    %158 = vperm.xlu0 %157, %v37
    %v159 = vpop.permute.xlu0 %158
    %160 = vset.pattern.permute.xlu0 0
    %161 = vperm.xlu0 %160, %v38
    %v162 = vpop.permute.xlu0 %161
    %163 = vset.pattern.permute.xlu0 0
    %164 = vperm.xlu0 %163, %v39
    %v165 = vpop.permute.xlu0 %164
    %166 = vset.pattern.permute.xlu0 0
    %167 = vperm.xlu0 %166, %v40
    %v168 = vpop.permute.xlu0 %167
    %169 = vset.pattern.permute.xlu0 0
    %170 = vperm.xlu0 %169, %v41
    %v171 = vpop.permute.xlu0 %170
    %172 = vset.pattern.permute.xlu0 0
    %173 = vperm.xlu0 %172, %v42
    %v174 = vpop.permute.xlu0 %173
    %175 = vset.pattern.permute.xlu0 0
    %176 = vperm.xlu0 %175, %v43
    %v177 = vpop.permute.xlu0 %176
    %178 = vset.pattern.permute.xlu0 0
    %179 = vperm.xlu0 %178, %v44
    %v180 = vpop.permute.xlu0 %179
    %181 = vset.pattern.permute.xlu0 0
    %182 = vperm.xlu0 %181, %v45
    %v183 = vpop.permute.xlu0 %182
    %184 = vset.pattern.permute.xlu0 0
    %185 = vperm.xlu0 %184, %v46
    %v186 = vpop.permute.xlu0 %185
    %187 = vset.pattern.permute.xlu0 0
    %188 = vperm.xlu0 %187, %v47
    %v189 = vpop.permute.xlu0 %188
    %190 = vset.pattern.permute.xlu0 0
    %191 = vperm.xlu0 %190, %v48
    %v192 = vpop.permute.xlu0 %191
    %193 = vset.pattern.permute.xlu0 0
    %194 = vperm.xlu0 %193, %v49
    %v195 = vpop.permute.xlu0 %194
    %vm196 = vcmp.eq.s32.totalorder %v150, %v51
    %vm197 = vcmp.eq.s32.totalorder %v153, %v51
    %vm198 = vcmp.eq.s32.totalorder %v156, %v51
    %vm199 = vcmp.eq.s32.totalorder %v159, %v51
    %vm200 = vcmp.eq.s32.totalorder %v162, %v51
    %vm201 = vcmp.eq.s32.totalorder %v165, %v51
    %vm202 = vcmp.eq.s32.totalorder %v168, %v51
    %vm203 = vcmp.eq.s32.totalorder %v171, %v51
    %vm204 = vcmp.eq.s32.totalorder %v174, %v51
    %vm205 = vcmp.eq.s32.totalorder %v177, %v51
    %vm206 = vcmp.eq.s32.totalorder %v180, %v51
    %vm207 = vcmp.eq.s32.totalorder %v183, %v51
    %vm208 = vcmp.eq.s32.totalorder %v186, %v51
    %vm209 = vcmp.eq.s32.totalorder %v189, %v51
    %vm210 = vcmp.eq.s32.totalorder %v192, %v51
    %vm211 = vcmp.eq.s32.totalorder %v195, %v51
    %v212 = vsel %vm196, 1, 0
    %v213 = vsel %vm197, 1, 0
    %v214 = vsel %vm198, 1, 0
    %v215 = vsel %vm199, 1, 0
    %v216 = vsel %vm200, 1, 0
    %v217 = vsel %vm201, 1, 0
    %v218 = vsel %vm202, 1, 0
    %v219 = vsel %vm203, 1, 0
    %v220 = vsel %vm204, 1, 0
    %v221 = vsel %vm205, 1, 0
    %v222 = vsel %vm206, 1, 0
    %v223 = vsel %vm207, 1, 0
    %v224 = vsel %vm208, 1, 0
    %v225 = vsel %vm209, 1, 0
    %v226 = vsel %vm210, 1, 0
    %v227 = vsel %vm211, 1, 0
    %v228 = vcvt.s32.f32 %v212
    %v229 = vcvt.s32.f32 %v213
    %v230 = vcvt.s32.f32 %v214
    %v231 = vcvt.s32.f32 %v215
    %v232 = vcvt.s32.f32 %v216
    %v233 = vcvt.s32.f32 %v217
    %v234 = vcvt.s32.f32 %v218
    %v235 = vcvt.s32.f32 %v219
    %v236 = vcvt.s32.f32 %v220
    %v237 = vcvt.s32.f32 %v221
    %v238 = vcvt.s32.f32 %v222
    %v239 = vcvt.s32.f32 %v223
    %v240 = vcvt.s32.f32 %v224
    %v241 = vcvt.s32.f32 %v225
    %v242 = vcvt.s32.f32 %v226
    %v243 = vcvt.s32.f32 %v227
    %v244 = vld [vmem:[%s2] sm:$0xff]
    %v245 = vld [vmem:[%s2 + $0x8] sm:$0xff]
    %v246 = vld [vmem:[%s2 + $0x10] sm:$0xff]
    %v247 = vld [vmem:[%s2 + $0x18] sm:$0xff]
    %v248 = vld [vmem:[%s2 + $0x20] sm:$0xff]
    %v249 = vld [vmem:[%s2 + $0x28] sm:$0xff]
    %v250 = vld [vmem:[%s2 + $0x30] sm:$0xff]
    %v251 = vld [vmem:[%s2 + $0x38] sm:$0xff]
    %vm252 = vcmask 523264
    %v254 = vsel %vm252, %v132, 0
    %v257 = vsel %vm252, %v133, 0
    %v260 = vsel %vm252, %v134, 0
    %v263 = vsel %vm252, %v135, 0
    %v266 = vsel %vm252, %v136, 0
    %v269 = vsel %vm252, %v137, 0
    %v272 = vsel %vm252, %v138, 0
    %v275 = vsel %vm252, %v139, 0
    %v278 = vsel %vm252, %v140, 0
    %v281 = vsel %vm252, %v141, 0
    %v284 = vsel %vm252, %v142, 0
    %v287 = vsel %vm252, %v143, 0
    %v290 = vsel %vm252, %v144, 0
    %v293 = vsel %vm252, %v145, 0
    %v296 = vsel %vm252, %v146, 0
    %v299 = vsel %vm252, %v147, 0
    %301 = vmatprep.subr.mxu0 0.0
    %302 = vmatpush1.msra.mxu0 0.0
    %303 = vmatprep.subr.mxu0 0.0
    %304 = vmatpush1.msra.mxu0 0.0
    %305 = vmatprep.subr.mxu0 0.0
    %306 = vmatpush1.msra.mxu0 0.0
    %307 = vmatprep.subr.mxu0 0.0
    %308 = vmatpush1.msra.mxu0 0.0
    %309 = vmatprep.subr.mxu0 0.0
    %310 = vmatpush1.msra.mxu0 0.0
    %311 = vmatprep.subr.mxu0 0.0
    %312 = vmatpush1.msra.mxu0 0.0
    %313 = vmatprep.subr.mxu0 0.0
    %314 = vmatpush1.msra.mxu0 0.0
    %315 = vmatprep.subr.mxu0 0.0
    %316 = vmatpush1.msra.mxu0 0.0
    %317 = vmatprep.subr.mxu0 0.0
    %v318 = vand.u32 %v251, 4294901760
    %319 = vmatpush1.msra.mxu0 %v318
    %320 = vmatprep.subr.mxu0 0.0
    %v321 = vand.u32 %v250, 4294901760
    %322 = vmatpush1.msra.mxu0 %v321
    %323 = vmatprep.subr.mxu0 0.0
    %v324 = vand.u32 %v249, 4294901760
    %325 = vmatpush1.msra.mxu0 %v324
    %326 = vmatprep.subr.mxu0 0.0
    %v327 = vand.u32 %v248, 4294901760
    %328 = vmatpush1.msra.mxu0 %v327
    %329 = vmatprep.subr.mxu0 0.0
    %v330 = vand.u32 %v247, 4294901760
    %331 = vmatpush1.msra.mxu0 %v330
    %332 = vmatprep.subr.mxu0 0.0
    %v333 = vand.u32 %v246, 4294901760
    %334 = vmatpush1.msra.mxu0 %v333
    %335 = vmatprep.subr.mxu0 0.0
    %v336 = vand.u32 %v245, 4294901760
    %337 = vmatpush1.msra.mxu0 %v336
    %338 = vmatprep.subr.mxu0 0.0
    %v339 = vand.u32 %v244, 4294901760
    %340 = vmatpush1.msra.mxu0 %v339
    %341 = vmatprep.subr.mxu0 0.0
    %342 = vmatpush2.msra.mxu0 0.0
    %343 = vmatprep.subr.mxu0 0.0
    %344 = vmatpush2.msra.mxu0 0.0
    %345 = vmatprep.subr.mxu0 0.0
    %346 = vmatpush2.msra.mxu0 0.0
    %347 = vmatprep.subr.mxu0 0.0
    %348 = vmatpush2.msra.mxu0 0.0
    %349 = vmatprep.subr.mxu0 0.0
    %350 = vmatpush2.msra.mxu0 0.0
    %351 = vmatprep.subr.mxu0 0.0
    %352 = vmatpush2.msra.mxu0 0.0
    %353 = vmatprep.subr.mxu0 0.0
    %354 = vmatpush2.msra.mxu0 0.0
    %355 = vmatprep.subr.mxu0 0.0
    %356 = vmatpush2.msra.mxu0 0.0
    %357 = vmatprep.subr.mxu0 0.0
    %358 = vmatpush2.msra.mxu0 0.0
    %359 = vmatprep.subr.mxu0 0.0
    %360 = vmatpush2.msra.mxu0 0.0
    %361 = vmatprep.subr.mxu0 0.0
    %362 = vmatpush2.msra.mxu0 0.0
    %363 = vmatprep.subr.mxu0 0.0
    %364 = vmatpush2.msra.mxu0 0.0
    %365 = vmatprep.subr.mxu0 0.0
    %366 = vmatpush2.msra.mxu0 0.0
    %367 = vmatprep.subr.mxu0 0.0
    %368 = vmatpush2.msra.mxu0 0.0
    %369 = vmatprep.subr.mxu0 0.0
    %370 = vmatpush2.msra.mxu0 0.0
    %371 = vmatprep.subr.mxu0 0.0
    %372 = vmatpush2.msra.mxu0 0.0
    %373 = vmatprep.mubr.f32.mxu0 0.0
    %v374 = vand.u32 %v254, 4294901760
    %v375 = vsub.f32 %v254, %v374
    %v376 = vand.u32 %v375, 4294901760
    %v377 = vsub.f32 %v375, %v376
    %v378 = vand.u32 %v377, 4294901760
    %379 = vmatmul.mubr.f32.gmra.mxu0 %v378
    %v380 = vpop.f32.mrf.mxu0
    %v381 = vadd.f32 0.0, %v380
    %v382 = vpop.f32.mrf.mxu0
    %383 = vmatprep.mubr.f32.mxu0 0.0
    %v384 = vand.u32 %v257, 4294901760
    %v385 = vsub.f32 %v257, %v384
    %v386 = vand.u32 %v385, 4294901760
    %v387 = vsub.f32 %v385, %v386
    %v388 = vand.u32 %v387, 4294901760
    %389 = vmatmul.mubr.f32.gmra.mxu0 %v388
    %v390 = vpop.f32.mrf.mxu0
    %v391 = vadd.f32 0.0, %v390
    %v392 = vpop.f32.mrf.mxu0
    %393 = vmatprep.mubr.f32.mxu0 0.0
    %v394 = vand.u32 %v260, 4294901760
    %v395 = vsub.f32 %v260, %v394
    %v396 = vand.u32 %v395, 4294901760
    %v397 = vsub.f32 %v395, %v396
    %v398 = vand.u32 %v397, 4294901760
    %399 = vmatmul.mubr.f32.gmra.mxu0 %v398
    %v400 = vpop.f32.mrf.mxu0
    %v401 = vadd.f32 0.0, %v400
    %v402 = vpop.f32.mrf.mxu0
    %403 = vmatprep.mubr.f32.mxu0 0.0
    %v404 = vand.u32 %v263, 4294901760
    %v405 = vsub.f32 %v263, %v404
    %v406 = vand.u32 %v405, 4294901760
    %v407 = vsub.f32 %v405, %v406
    %v408 = vand.u32 %v407, 4294901760
    %409 = vmatmul.mubr.f32.gmra.mxu0 %v408
    %v410 = vpop.f32.mrf.mxu0
    %v411 = vadd.f32 0.0, %v410
    %v412 = vpop.f32.mrf.mxu0
    %413 = vmatprep.mubr.f32.mxu0 0.0
    %v414 = vand.u32 %v266, 4294901760
    %v415 = vsub.f32 %v266, %v414
    %v416 = vand.u32 %v415, 4294901760
    %v417 = vsub.f32 %v415, %v416
    %v418 = vand.u32 %v417, 4294901760
    %419 = vmatmul.mubr.f32.gmra.mxu0 %v418
    %v420 = vpop.f32.mrf.mxu0
    %v421 = vadd.f32 0.0, %v420
    %v422 = vpop.f32.mrf.mxu0
    %423 = vmatprep.mubr.f32.mxu0 0.0
    %v424 = vand.u32 %v269, 4294901760
    %v425 = vsub.f32 %v269, %v424
    %v426 = vand.u32 %v425, 4294901760
    %v427 = vsub.f32 %v425, %v426
    %v428 = vand.u32 %v427, 4294901760
    %429 = vmatmul.mubr.f32.gmra.mxu0 %v428
    %v430 = vpop.f32.mrf.mxu0
    %v431 = vadd.f32 0.0, %v430
    %v432 = vpop.f32.mrf.mxu0
    %433 = vmatprep.mubr.f32.mxu0 0.0
    %v434 = vand.u32 %v272, 4294901760
    %v435 = vsub.f32 %v272, %v434
    %v436 = vand.u32 %v435, 4294901760
    %v437 = vsub.f32 %v435, %v436
    %v438 = vand.u32 %v437, 4294901760
    %439 = vmatmul.mubr.f32.gmra.mxu0 %v438
    %v440 = vpop.f32.mrf.mxu0
    %v441 = vadd.f32 0.0, %v440
    %v442 = vpop.f32.mrf.mxu0
    %443 = vmatprep.mubr.f32.mxu0 0.0
    %v444 = vand.u32 %v275, 4294901760
    %v445 = vsub.f32 %v275, %v444
    %v446 = vand.u32 %v445, 4294901760
    %v447 = vsub.f32 %v445, %v446
    %v448 = vand.u32 %v447, 4294901760
    %449 = vmatmul.mubr.f32.gmra.mxu0 %v448
    %v450 = vpop.f32.mrf.mxu0
    %v451 = vadd.f32 0.0, %v450
    %v452 = vpop.f32.mrf.mxu0
    %453 = vmatprep.mubr.f32.mxu0 0.0
    %v454 = vand.u32 %v278, 4294901760
    %v455 = vsub.f32 %v278, %v454
    %v456 = vand.u32 %v455, 4294901760
    %v457 = vsub.f32 %v455, %v456
    %v458 = vand.u32 %v457, 4294901760
    %459 = vmatmul.mubr.f32.gmra.mxu0 %v458
    %v460 = vpop.f32.mrf.mxu0
    %v461 = vadd.f32 0.0, %v460
    %v462 = vpop.f32.mrf.mxu0
    %463 = vmatprep.mubr.f32.mxu0 0.0
    %v464 = vand.u32 %v281, 4294901760
    %v465 = vsub.f32 %v281, %v464
    %v466 = vand.u32 %v465, 4294901760
    %v467 = vsub.f32 %v465, %v466
    %v468 = vand.u32 %v467, 4294901760
    %469 = vmatmul.mubr.f32.gmra.mxu0 %v468
    %v470 = vpop.f32.mrf.mxu0
    %v471 = vadd.f32 0.0, %v470
    %v472 = vpop.f32.mrf.mxu0
    %473 = vmatprep.mubr.f32.mxu0 0.0
    %v474 = vand.u32 %v284, 4294901760
    %v475 = vsub.f32 %v284, %v474
    %v476 = vand.u32 %v475, 4294901760
    %v477 = vsub.f32 %v475, %v476
    %v478 = vand.u32 %v477, 4294901760
    %479 = vmatmul.mubr.f32.gmra.mxu0 %v478
    %v480 = vpop.f32.mrf.mxu0
    %v481 = vadd.f32 0.0, %v480
    %v482 = vpop.f32.mrf.mxu0
    %483 = vmatprep.mubr.f32.mxu0 0.0
    %v484 = vand.u32 %v287, 4294901760
    %v485 = vsub.f32 %v287, %v484
    %v486 = vand.u32 %v485, 4294901760
    %v487 = vsub.f32 %v485, %v486
    %v488 = vand.u32 %v487, 4294901760
    %489 = vmatmul.mubr.f32.gmra.mxu0 %v488
    %v490 = vpop.f32.mrf.mxu0
    %v491 = vadd.f32 0.0, %v490
    %v492 = vpop.f32.mrf.mxu0
    %493 = vmatprep.mubr.f32.mxu0 0.0
    %v494 = vand.u32 %v290, 4294901760
    %v495 = vsub.f32 %v290, %v494
    %v496 = vand.u32 %v495, 4294901760
    %v497 = vsub.f32 %v495, %v496
    %v498 = vand.u32 %v497, 4294901760
    %499 = vmatmul.mubr.f32.gmra.mxu0 %v498
    %v500 = vpop.f32.mrf.mxu0
    %v501 = vadd.f32 0.0, %v500
    %v502 = vpop.f32.mrf.mxu0
    %503 = vmatprep.mubr.f32.mxu0 0.0
    %v504 = vand.u32 %v293, 4294901760
    %v505 = vsub.f32 %v293, %v504
    %v506 = vand.u32 %v505, 4294901760
    %v507 = vsub.f32 %v505, %v506
    %v508 = vand.u32 %v507, 4294901760
    %509 = vmatmul.mubr.f32.gmra.mxu0 %v508
    %v510 = vpop.f32.mrf.mxu0
    %v511 = vadd.f32 0.0, %v510
    %v512 = vpop.f32.mrf.mxu0
    %513 = vmatprep.mubr.f32.mxu0 0.0
    %v514 = vand.u32 %v296, 4294901760
    %v515 = vsub.f32 %v296, %v514
    %v516 = vand.u32 %v515, 4294901760
    %v517 = vsub.f32 %v515, %v516
    %v518 = vand.u32 %v517, 4294901760
    %519 = vmatmul.mubr.f32.gmra.mxu0 %v518
    %v520 = vpop.f32.mrf.mxu0
    %v521 = vadd.f32 0.0, %v520
    %v522 = vpop.f32.mrf.mxu0
    %523 = vmatprep.mubr.f32.mxu0 0.0
    %v524 = vand.u32 %v299, 4294901760
    %v525 = vsub.f32 %v299, %v524
    %v526 = vand.u32 %v525, 4294901760
    %v527 = vsub.f32 %v525, %v526
    %v528 = vand.u32 %v527, 4294901760
    %529 = vmatmul.mubr.f32.gmra.mxu0 %v528
    %v530 = vpop.f32.mrf.mxu0
    %v531 = vadd.f32 0.0, %v530
    %v532 = vpop.f32.mrf.mxu0
    %533 = vdwg.mxu0
    %534 = vmatprep.subr.mxu0 0.0
    %535 = vmatpush1.msra.mxu0 0.0
    %536 = vmatprep.subr.mxu0 0.0
    %537 = vmatpush1.msra.mxu0 0.0
    %538 = vmatprep.subr.mxu0 0.0
    %539 = vmatpush1.msra.mxu0 0.0
    %540 = vmatprep.subr.mxu0 0.0
    %541 = vmatpush1.msra.mxu0 0.0
    %542 = vmatprep.subr.mxu0 0.0
    %543 = vmatpush1.msra.mxu0 0.0
    %544 = vmatprep.subr.mxu0 0.0
    %545 = vmatpush1.msra.mxu0 0.0
    %546 = vmatprep.subr.mxu0 0.0
    %547 = vmatpush1.msra.mxu0 0.0
    %548 = vmatprep.subr.mxu0 0.0
    %549 = vmatpush1.msra.mxu0 0.0
    %550 = vmatprep.subr.mxu0 0.0
    %v551 = vand.u32 %v251, 4294901760
    %v552 = vsub.f32 %v251, %v551
    %v553 = vand.u32 %v552, 4294901760
    %v554 = vsub.f32 %v552, %v553
    %v555 = vand.u32 %v554, 4294901760
    %556 = vmatpush1.msra.mxu0 %v555
    %557 = vmatprep.subr.mxu0 0.0
    %v558 = vand.u32 %v250, 4294901760
    %v559 = vsub.f32 %v250, %v558
    %v560 = vand.u32 %v559, 4294901760
    %v561 = vsub.f32 %v559, %v560
    %v562 = vand.u32 %v561, 4294901760
    %563 = vmatpush1.msra.mxu0 %v562
    %564 = vmatprep.subr.mxu0 0.0
    %v565 = vand.u32 %v249, 4294901760
    %v566 = vsub.f32 %v249, %v565
    %v567 = vand.u32 %v566, 4294901760
    %v568 = vsub.f32 %v566, %v567
    %v569 = vand.u32 %v568, 4294901760
    %570 = vmatpush1.msra.mxu0 %v569
    %571 = vmatprep.subr.mxu0 0.0
    %v572 = vand.u32 %v248, 4294901760
    %v573 = vsub.f32 %v248, %v572
    %v574 = vand.u32 %v573, 4294901760
    %v575 = vsub.f32 %v573, %v574
    %v576 = vand.u32 %v575, 4294901760
    %577 = vmatpush1.msra.mxu0 %v576
    %578 = vmatprep.subr.mxu0 0.0
    %v579 = vand.u32 %v247, 4294901760
    %v580 = vsub.f32 %v247, %v579
    %v581 = vand.u32 %v580, 4294901760
    %v582 = vsub.f32 %v580, %v581
    %v583 = vand.u32 %v582, 4294901760
    %584 = vmatpush1.msra.mxu0 %v583
    %585 = vmatprep.subr.mxu0 0.0
    %v586 = vand.u32 %v246, 4294901760
    %v587 = vsub.f32 %v246, %v586
    %v588 = vand.u32 %v587, 4294901760
    %v589 = vsub.f32 %v587, %v588
    %v590 = vand.u32 %v589, 4294901760
    %591 = vmatpush1.msra.mxu0 %v590
    %592 = vmatprep.subr.mxu0 0.0
    %v593 = vand.u32 %v245, 4294901760
    %v594 = vsub.f32 %v245, %v593
    %v595 = vand.u32 %v594, 4294901760
    %v596 = vsub.f32 %v594, %v595
    %v597 = vand.u32 %v596, 4294901760
    %598 = vmatpush1.msra.mxu0 %v597
    %599 = vmatprep.subr.mxu0 0.0
    %v600 = vand.u32 %v244, 4294901760
    %v601 = vsub.f32 %v244, %v600
    %v602 = vand.u32 %v601, 4294901760
    %v603 = vsub.f32 %v601, %v602
    %v604 = vand.u32 %v603, 4294901760
    %605 = vmatpush1.msra.mxu0 %v604
    %606 = vmatprep.subr.mxu0 0.0
    %607 = vmatpush2.msra.mxu0 0.0
    %608 = vmatprep.subr.mxu0 0.0
    %609 = vmatpush2.msra.mxu0 0.0
    %610 = vmatprep.subr.mxu0 0.0
    %611 = vmatpush2.msra.mxu0 0.0
    %612 = vmatprep.subr.mxu0 0.0
    %613 = vmatpush2.msra.mxu0 0.0
    %614 = vmatprep.subr.mxu0 0.0
    %615 = vmatpush2.msra.mxu0 0.0
    %616 = vmatprep.subr.mxu0 0.0
    %617 = vmatpush2.msra.mxu0 0.0
    %618 = vmatprep.subr.mxu0 0.0
    %619 = vmatpush2.msra.mxu0 0.0
    %620 = vmatprep.subr.mxu0 0.0
    %621 = vmatpush2.msra.mxu0 0.0
    %622 = vmatprep.subr.mxu0 0.0
    %623 = vmatpush2.msra.mxu0 0.0
    %624 = vmatprep.subr.mxu0 0.0
    %625 = vmatpush2.msra.mxu0 0.0
    %626 = vmatprep.subr.mxu0 0.0
    %627 = vmatpush2.msra.mxu0 0.0
    %628 = vmatprep.subr.mxu0 0.0
    %629 = vmatpush2.msra.mxu0 0.0
    %630 = vmatprep.subr.mxu0 0.0
    %631 = vmatpush2.msra.mxu0 0.0
    %632 = vmatprep.subr.mxu0 0.0
    %633 = vmatpush2.msra.mxu0 0.0
    %634 = vmatprep.subr.mxu0 0.0
    %635 = vmatpush2.msra.mxu0 0.0
    %636 = vmatprep.subr.mxu0 0.0
    %637 = vmatpush2.msra.mxu0 0.0
    %638 = vmatprep.mubr.f32.mxu0 0.0
    %v639 = vand.u32 %v254, 4294901760
    %640 = vmatmul.mubr.f32.gmra.mxu0 %v639
    %v641 = vpop.f32.mrf.mxu0
    %v642 = vadd.f32 %v381, %v641
    %v643 = vpop.f32.mrf.mxu0
    %644 = vmatprep.mubr.f32.mxu0 0.0
    %v645 = vand.u32 %v257, 4294901760
    %646 = vmatmul.mubr.f32.gmra.mxu0 %v645
    %v647 = vpop.f32.mrf.mxu0
    %v648 = vadd.f32 %v391, %v647
    %v649 = vpop.f32.mrf.mxu0
    %650 = vmatprep.mubr.f32.mxu0 0.0
    %v651 = vand.u32 %v260, 4294901760
    %652 = vmatmul.mubr.f32.gmra.mxu0 %v651
    %v653 = vpop.f32.mrf.mxu0
    %v654 = vadd.f32 %v401, %v653
    %v655 = vpop.f32.mrf.mxu0
    %656 = vmatprep.mubr.f32.mxu0 0.0
    %v657 = vand.u32 %v263, 4294901760
    %658 = vmatmul.mubr.f32.gmra.mxu0 %v657
    %v659 = vpop.f32.mrf.mxu0
    %v660 = vadd.f32 %v411, %v659
    %v661 = vpop.f32.mrf.mxu0
    %662 = vmatprep.mubr.f32.mxu0 0.0
    %v663 = vand.u32 %v266, 4294901760
    %664 = vmatmul.mubr.f32.gmra.mxu0 %v663
    %v665 = vpop.f32.mrf.mxu0
    %v666 = vadd.f32 %v421, %v665
    %v667 = vpop.f32.mrf.mxu0
    %668 = vmatprep.mubr.f32.mxu0 0.0
    %v669 = vand.u32 %v269, 4294901760
    %670 = vmatmul.mubr.f32.gmra.mxu0 %v669
    %v671 = vpop.f32.mrf.mxu0
    %v672 = vadd.f32 %v431, %v671
    %v673 = vpop.f32.mrf.mxu0
    %674 = vmatprep.mubr.f32.mxu0 0.0
    %v675 = vand.u32 %v272, 4294901760
    %676 = vmatmul.mubr.f32.gmra.mxu0 %v675
    %v677 = vpop.f32.mrf.mxu0
    %v678 = vadd.f32 %v441, %v677
    %v679 = vpop.f32.mrf.mxu0
    %680 = vmatprep.mubr.f32.mxu0 0.0
    %v681 = vand.u32 %v275, 4294901760
    %682 = vmatmul.mubr.f32.gmra.mxu0 %v681
    %v683 = vpop.f32.mrf.mxu0
    %v684 = vadd.f32 %v451, %v683
    %v685 = vpop.f32.mrf.mxu0
    %686 = vmatprep.mubr.f32.mxu0 0.0
    %v687 = vand.u32 %v278, 4294901760
    %688 = vmatmul.mubr.f32.gmra.mxu0 %v687
    %v689 = vpop.f32.mrf.mxu0
    %v690 = vadd.f32 %v461, %v689
    %v691 = vpop.f32.mrf.mxu0
    %692 = vmatprep.mubr.f32.mxu0 0.0
    %v693 = vand.u32 %v281, 4294901760
    %694 = vmatmul.mubr.f32.gmra.mxu0 %v693
    %v695 = vpop.f32.mrf.mxu0
    %v696 = vadd.f32 %v471, %v695
    %v697 = vpop.f32.mrf.mxu0
    %698 = vmatprep.mubr.f32.mxu0 0.0
    %v699 = vand.u32 %v284, 4294901760
    %700 = vmatmul.mubr.f32.gmra.mxu0 %v699
    %v701 = vpop.f32.mrf.mxu0
    %v702 = vadd.f32 %v481, %v701
    %v703 = vpop.f32.mrf.mxu0
    %704 = vmatprep.mubr.f32.mxu0 0.0
    %v705 = vand.u32 %v287, 4294901760
    %706 = vmatmul.mubr.f32.gmra.mxu0 %v705
    %v707 = vpop.f32.mrf.mxu0
    %v708 = vadd.f32 %v491, %v707
    %v709 = vpop.f32.mrf.mxu0
    %710 = vmatprep.mubr.f32.mxu0 0.0
    %v711 = vand.u32 %v290, 4294901760
    %712 = vmatmul.mubr.f32.gmra.mxu0 %v711
    %v713 = vpop.f32.mrf.mxu0
    %v714 = vadd.f32 %v501, %v713
    %v715 = vpop.f32.mrf.mxu0
    %716 = vmatprep.mubr.f32.mxu0 0.0
    %v717 = vand.u32 %v293, 4294901760
    %718 = vmatmul.mubr.f32.gmra.mxu0 %v717
    %v719 = vpop.f32.mrf.mxu0
    %v720 = vadd.f32 %v511, %v719
    %v721 = vpop.f32.mrf.mxu0
    %722 = vmatprep.mubr.f32.mxu0 0.0
    %v723 = vand.u32 %v296, 4294901760
    %724 = vmatmul.mubr.f32.gmra.mxu0 %v723
    %v725 = vpop.f32.mrf.mxu0
    %v726 = vadd.f32 %v521, %v725
    %v727 = vpop.f32.mrf.mxu0
    %728 = vmatprep.mubr.f32.mxu0 0.0
    %v729 = vand.u32 %v299, 4294901760
    %730 = vmatmul.mubr.f32.gmra.mxu0 %v729
    %v731 = vpop.f32.mrf.mxu0
    %v732 = vadd.f32 %v531, %v731
    %v733 = vpop.f32.mrf.mxu0
    %734 = vdwg.mxu0
    %735 = vmatprep.subr.mxu0 0.0
    %736 = vmatpush1.msra.mxu0 0.0
    %737 = vmatprep.subr.mxu0 0.0
    %738 = vmatpush1.msra.mxu0 0.0
    %739 = vmatprep.subr.mxu0 0.0
    %740 = vmatpush1.msra.mxu0 0.0
    %741 = vmatprep.subr.mxu0 0.0
    %742 = vmatpush1.msra.mxu0 0.0
    %743 = vmatprep.subr.mxu0 0.0
    %744 = vmatpush1.msra.mxu0 0.0
    %745 = vmatprep.subr.mxu0 0.0
    %746 = vmatpush1.msra.mxu0 0.0
    %747 = vmatprep.subr.mxu0 0.0
    %748 = vmatpush1.msra.mxu0 0.0
    %749 = vmatprep.subr.mxu0 0.0
    %750 = vmatpush1.msra.mxu0 0.0
    %751 = vmatprep.subr.mxu0 0.0
    %v752 = vand.u32 %v251, 4294901760
    %v753 = vsub.f32 %v251, %v752
    %754 = vmatpush1.msra.mxu0 %v753
    %755 = vmatprep.subr.mxu0 0.0
    %v756 = vand.u32 %v250, 4294901760
    %v757 = vsub.f32 %v250, %v756
    %758 = vmatpush1.msra.mxu0 %v757
    %759 = vmatprep.subr.mxu0 0.0
    %v760 = vand.u32 %v249, 4294901760
    %v761 = vsub.f32 %v249, %v760
    %762 = vmatpush1.msra.mxu0 %v761
    %763 = vmatprep.subr.mxu0 0.0
    %v764 = vand.u32 %v248, 4294901760
    %v765 = vsub.f32 %v248, %v764
    %766 = vmatpush1.msra.mxu0 %v765
    %767 = vmatprep.subr.mxu0 0.0
    %v768 = vand.u32 %v247, 4294901760
    %v769 = vsub.f32 %v247, %v768
    %770 = vmatpush1.msra.mxu0 %v769
    %771 = vmatprep.subr.mxu0 0.0
    %v772 = vand.u32 %v246, 4294901760
    %v773 = vsub.f32 %v246, %v772
    %774 = vmatpush1.msra.mxu0 %v773
    %775 = vmatprep.subr.mxu0 0.0
    %v776 = vand.u32 %v245, 4294901760
    %v777 = vsub.f32 %v245, %v776
    %778 = vmatpush1.msra.mxu0 %v777
    %779 = vmatprep.subr.mxu0 0.0
    %v780 = vand.u32 %v244, 4294901760
    %v781 = vsub.f32 %v244, %v780
    %782 = vmatpush1.msra.mxu0 %v781
    %783 = vmatprep.subr.mxu0 0.0
    %784 = vmatpush2.msra.mxu0 0.0
    %785 = vmatprep.subr.mxu0 0.0
    %786 = vmatpush2.msra.mxu0 0.0
    %787 = vmatprep.subr.mxu0 0.0
    %788 = vmatpush2.msra.mxu0 0.0
    %789 = vmatprep.subr.mxu0 0.0
    %790 = vmatpush2.msra.mxu0 0.0
    %791 = vmatprep.subr.mxu0 0.0
    %792 = vmatpush2.msra.mxu0 0.0
    %793 = vmatprep.subr.mxu0 0.0
    %794 = vmatpush2.msra.mxu0 0.0
    %795 = vmatprep.subr.mxu0 0.0
    %796 = vmatpush2.msra.mxu0 0.0
    %797 = vmatprep.subr.mxu0 0.0
    %798 = vmatpush2.msra.mxu0 0.0
    %799 = vmatprep.subr.mxu0 0.0
    %800 = vmatpush2.msra.mxu0 0.0
    %801 = vmatprep.subr.mxu0 0.0
    %802 = vmatpush2.msra.mxu0 0.0
    %803 = vmatprep.subr.mxu0 0.0
    %804 = vmatpush2.msra.mxu0 0.0
    %805 = vmatprep.subr.mxu0 0.0
    %806 = vmatpush2.msra.mxu0 0.0
    %807 = vmatprep.subr.mxu0 0.0
    %808 = vmatpush2.msra.mxu0 0.0
    %809 = vmatprep.subr.mxu0 0.0
    %810 = vmatpush2.msra.mxu0 0.0
    %811 = vmatprep.subr.mxu0 0.0
    %812 = vmatpush2.msra.mxu0 0.0
    %813 = vmatprep.subr.mxu0 0.0
    %814 = vmatpush2.msra.mxu0 0.0
    %815 = vmatprep.mubr.f32.mxu0 0.0
    %v816 = vand.u32 %v254, 4294901760
    %v817 = vsub.f32 %v254, %v816
    %818 = vmatmul.mubr.f32.gmra.mxu0 %v817
    %v819 = vpop.f32.mrf.mxu0
    %v820 = vadd.f32 %v642, %v819
    %v821 = vpop.f32.mrf.mxu0
    %822 = vmatprep.mubr.f32.mxu0 0.0
    %v823 = vand.u32 %v257, 4294901760
    %v824 = vsub.f32 %v257, %v823
    %825 = vmatmul.mubr.f32.gmra.mxu0 %v824
    %v826 = vpop.f32.mrf.mxu0
    %v827 = vadd.f32 %v648, %v826
    %v828 = vpop.f32.mrf.mxu0
    %829 = vmatprep.mubr.f32.mxu0 0.0
    %v830 = vand.u32 %v260, 4294901760
    %v831 = vsub.f32 %v260, %v830
    %832 = vmatmul.mubr.f32.gmra.mxu0 %v831
    %v833 = vpop.f32.mrf.mxu0
    %v834 = vadd.f32 %v654, %v833
    %v835 = vpop.f32.mrf.mxu0
    %836 = vmatprep.mubr.f32.mxu0 0.0
    %v837 = vand.u32 %v263, 4294901760
    %v838 = vsub.f32 %v263, %v837
    %839 = vmatmul.mubr.f32.gmra.mxu0 %v838
    %v840 = vpop.f32.mrf.mxu0
    %v841 = vadd.f32 %v660, %v840
    %v842 = vpop.f32.mrf.mxu0
    %843 = vmatprep.mubr.f32.mxu0 0.0
    %v844 = vand.u32 %v266, 4294901760
    %v845 = vsub.f32 %v266, %v844
    %846 = vmatmul.mubr.f32.gmra.mxu0 %v845
    %v847 = vpop.f32.mrf.mxu0
    %v848 = vadd.f32 %v666, %v847
    %v849 = vpop.f32.mrf.mxu0
    %850 = vmatprep.mubr.f32.mxu0 0.0
    %v851 = vand.u32 %v269, 4294901760
    %v852 = vsub.f32 %v269, %v851
    %853 = vmatmul.mubr.f32.gmra.mxu0 %v852
    %v854 = vpop.f32.mrf.mxu0
    %v855 = vadd.f32 %v672, %v854
    %v856 = vpop.f32.mrf.mxu0
    %857 = vmatprep.mubr.f32.mxu0 0.0
    %v858 = vand.u32 %v272, 4294901760
    %v859 = vsub.f32 %v272, %v858
    %860 = vmatmul.mubr.f32.gmra.mxu0 %v859
    %v861 = vpop.f32.mrf.mxu0
    %v862 = vadd.f32 %v678, %v861
    %v863 = vpop.f32.mrf.mxu0
    %864 = vmatprep.mubr.f32.mxu0 0.0
    %v865 = vand.u32 %v275, 4294901760
    %v866 = vsub.f32 %v275, %v865
    %867 = vmatmul.mubr.f32.gmra.mxu0 %v866
    %v868 = vpop.f32.mrf.mxu0
    %v869 = vadd.f32 %v684, %v868
    %v870 = vpop.f32.mrf.mxu0
    %871 = vmatprep.mubr.f32.mxu0 0.0
    %v872 = vand.u32 %v278, 4294901760
    %v873 = vsub.f32 %v278, %v872
    %874 = vmatmul.mubr.f32.gmra.mxu0 %v873
    %v875 = vpop.f32.mrf.mxu0
    %v876 = vadd.f32 %v690, %v875
    %v877 = vpop.f32.mrf.mxu0
    %878 = vmatprep.mubr.f32.mxu0 0.0
    %v879 = vand.u32 %v281, 4294901760
    %v880 = vsub.f32 %v281, %v879
    %881 = vmatmul.mubr.f32.gmra.mxu0 %v880
    %v882 = vpop.f32.mrf.mxu0
    %v883 = vadd.f32 %v696, %v882
    %v884 = vpop.f32.mrf.mxu0
    %885 = vmatprep.mubr.f32.mxu0 0.0
    %v886 = vand.u32 %v284, 4294901760
    %v887 = vsub.f32 %v284, %v886
    %888 = vmatmul.mubr.f32.gmra.mxu0 %v887
    %v889 = vpop.f32.mrf.mxu0
    %v890 = vadd.f32 %v702, %v889
    %v891 = vpop.f32.mrf.mxu0
    %892 = vmatprep.mubr.f32.mxu0 0.0
    %v893 = vand.u32 %v287, 4294901760
    %v894 = vsub.f32 %v287, %v893
    %895 = vmatmul.mubr.f32.gmra.mxu0 %v894
    %v896 = vpop.f32.mrf.mxu0
    %v897 = vadd.f32 %v708, %v896
    %v898 = vpop.f32.mrf.mxu0
    %899 = vmatprep.mubr.f32.mxu0 0.0
    %v900 = vand.u32 %v290, 4294901760
    %v901 = vsub.f32 %v290, %v900
    %902 = vmatmul.mubr.f32.gmra.mxu0 %v901
    %v903 = vpop.f32.mrf.mxu0
    %v904 = vadd.f32 %v714, %v903
    %v905 = vpop.f32.mrf.mxu0
    %906 = vmatprep.mubr.f32.mxu0 0.0
    %v907 = vand.u32 %v293, 4294901760
    %v908 = vsub.f32 %v293, %v907
    %909 = vmatmul.mubr.f32.gmra.mxu0 %v908
    %v910 = vpop.f32.mrf.mxu0
    %v911 = vadd.f32 %v720, %v910
    %v912 = vpop.f32.mrf.mxu0
    %913 = vmatprep.mubr.f32.mxu0 0.0
    %v914 = vand.u32 %v296, 4294901760
    %v915 = vsub.f32 %v296, %v914
    %916 = vmatmul.mubr.f32.gmra.mxu0 %v915
    %v917 = vpop.f32.mrf.mxu0
    %v918 = vadd.f32 %v726, %v917
    %v919 = vpop.f32.mrf.mxu0
    %920 = vmatprep.mubr.f32.mxu0 0.0
    %v921 = vand.u32 %v299, 4294901760
    %v922 = vsub.f32 %v299, %v921
    %923 = vmatmul.mubr.f32.gmra.mxu0 %v922
    %v924 = vpop.f32.mrf.mxu0
    %v925 = vadd.f32 %v732, %v924
    %v926 = vpop.f32.mrf.mxu0
    %927 = vdwg.mxu0
    %928 = vmatprep.subr.mxu0 0.0
    %929 = vmatpush1.msra.mxu0 0.0
    %930 = vmatprep.subr.mxu0 0.0
    %931 = vmatpush1.msra.mxu0 0.0
    %932 = vmatprep.subr.mxu0 0.0
    %933 = vmatpush1.msra.mxu0 0.0
    %934 = vmatprep.subr.mxu0 0.0
    %935 = vmatpush1.msra.mxu0 0.0
    %936 = vmatprep.subr.mxu0 0.0
    %937 = vmatpush1.msra.mxu0 0.0
    %938 = vmatprep.subr.mxu0 0.0
    %939 = vmatpush1.msra.mxu0 0.0
    %940 = vmatprep.subr.mxu0 0.0
    %941 = vmatpush1.msra.mxu0 0.0
    %942 = vmatprep.subr.mxu0 0.0
    %943 = vmatpush1.msra.mxu0 0.0
    %944 = vmatprep.subr.mxu0 0.0
    %v945 = vand.u32 %v251, 4294901760
    %946 = vmatpush1.msra.mxu0 %v945
    %947 = vmatprep.subr.mxu0 0.0
    %v948 = vand.u32 %v250, 4294901760
    %949 = vmatpush1.msra.mxu0 %v948
    %950 = vmatprep.subr.mxu0 0.0
    %v951 = vand.u32 %v249, 4294901760
    %952 = vmatpush1.msra.mxu0 %v951
    %953 = vmatprep.subr.mxu0 0.0
    %v954 = vand.u32 %v248, 4294901760
    %955 = vmatpush1.msra.mxu0 %v954
    %956 = vmatprep.subr.mxu0 0.0
    %v957 = vand.u32 %v247, 4294901760
    %958 = vmatpush1.msra.mxu0 %v957
    %959 = vmatprep.subr.mxu0 0.0
    %v960 = vand.u32 %v246, 4294901760
    %961 = vmatpush1.msra.mxu0 %v960
    %962 = vmatprep.subr.mxu0 0.0
    %v963 = vand.u32 %v245, 4294901760
    %964 = vmatpush1.msra.mxu0 %v963
    %965 = vmatprep.subr.mxu0 0.0
    %v966 = vand.u32 %v244, 4294901760
    %967 = vmatpush1.msra.mxu0 %v966
    %968 = vmatprep.subr.mxu0 0.0
    %969 = vmatpush2.msra.mxu0 0.0
    %970 = vmatprep.subr.mxu0 0.0
    %971 = vmatpush2.msra.mxu0 0.0
    %972 = vmatprep.subr.mxu0 0.0
    %973 = vmatpush2.msra.mxu0 0.0
    %974 = vmatprep.subr.mxu0 0.0
    %975 = vmatpush2.msra.mxu0 0.0
    %976 = vmatprep.subr.mxu0 0.0
    %977 = vmatpush2.msra.mxu0 0.0
    %978 = vmatprep.subr.mxu0 0.0
    %979 = vmatpush2.msra.mxu0 0.0
    %980 = vmatprep.subr.mxu0 0.0
    %981 = vmatpush2.msra.mxu0 0.0
    %982 = vmatprep.subr.mxu0 0.0
    %983 = vmatpush2.msra.mxu0 0.0
    %984 = vmatprep.subr.mxu0 0.0
    %985 = vmatpush2.msra.mxu0 0.0
    %986 = vmatprep.subr.mxu0 0.0
    %987 = vmatpush2.msra.mxu0 0.0
    %988 = vmatprep.subr.mxu0 0.0
    %989 = vmatpush2.msra.mxu0 0.0
    %990 = vmatprep.subr.mxu0 0.0
    %991 = vmatpush2.msra.mxu0 0.0
    %992 = vmatprep.subr.mxu0 0.0
    %993 = vmatpush2.msra.mxu0 0.0
    %994 = vmatprep.subr.mxu0 0.0
    %995 = vmatpush2.msra.mxu0 0.0
    %996 = vmatprep.subr.mxu0 0.0
    %997 = vmatpush2.msra.mxu0 0.0
    %998 = vmatprep.subr.mxu0 0.0
    %999 = vmatpush2.msra.mxu0 0.0
    %1000 = vmatprep.mubr.f32.mxu0 0.0
    %v1001 = vand.u32 %v254, 4294901760
    %v1002 = vsub.f32 %v254, %v1001
    %v1003 = vand.u32 %v1002, 4294901760
    %1004 = vmatmul.mubr.f32.gmra.mxu0 %v1003
    %v1005 = vpop.f32.mrf.mxu0
    %v1006 = vadd.f32 %v820, %v1005
    %v1007 = vpop.f32.mrf.mxu0
    %1008 = vmatprep.mubr.f32.mxu0 0.0
    %v1009 = vand.u32 %v257, 4294901760
    %v1010 = vsub.f32 %v257, %v1009
    %v1011 = vand.u32 %v1010, 4294901760
    %1012 = vmatmul.mubr.f32.gmra.mxu0 %v1011
    %v1013 = vpop.f32.mrf.mxu0
    %v1014 = vadd.f32 %v827, %v1013
    %v1015 = vpop.f32.mrf.mxu0
    %1016 = vmatprep.mubr.f32.mxu0 0.0
    %v1017 = vand.u32 %v260, 4294901760
    %v1018 = vsub.f32 %v260, %v1017
    %v1019 = vand.u32 %v1018, 4294901760
    %1020 = vmatmul.mubr.f32.gmra.mxu0 %v1019
    %v1021 = vpop.f32.mrf.mxu0
    %v1022 = vadd.f32 %v834, %v1021
    %v1023 = vpop.f32.mrf.mxu0
    %1024 = vmatprep.mubr.f32.mxu0 0.0
    %v1025 = vand.u32 %v263, 4294901760
    %v1026 = vsub.f32 %v263, %v1025
    %v1027 = vand.u32 %v1026, 4294901760
    %1028 = vmatmul.mubr.f32.gmra.mxu0 %v1027
    %v1029 = vpop.f32.mrf.mxu0
    %v1030 = vadd.f32 %v841, %v1029
    %v1031 = vpop.f32.mrf.mxu0
    %1032 = vmatprep.mubr.f32.mxu0 0.0
    %v1033 = vand.u32 %v266, 4294901760
    %v1034 = vsub.f32 %v266, %v1033
    %v1035 = vand.u32 %v1034, 4294901760
    %1036 = vmatmul.mubr.f32.gmra.mxu0 %v1035
    %v1037 = vpop.f32.mrf.mxu0
    %v1038 = vadd.f32 %v848, %v1037
    %v1039 = vpop.f32.mrf.mxu0
    %1040 = vmatprep.mubr.f32.mxu0 0.0
    %v1041 = vand.u32 %v269, 4294901760
    %v1042 = vsub.f32 %v269, %v1041
    %v1043 = vand.u32 %v1042, 4294901760
    %1044 = vmatmul.mubr.f32.gmra.mxu0 %v1043
    %v1045 = vpop.f32.mrf.mxu0
    %v1046 = vadd.f32 %v855, %v1045
    %v1047 = vpop.f32.mrf.mxu0
    %1048 = vmatprep.mubr.f32.mxu0 0.0
    %v1049 = vand.u32 %v272, 4294901760
    %v1050 = vsub.f32 %v272, %v1049
    %v1051 = vand.u32 %v1050, 4294901760
    %1052 = vmatmul.mubr.f32.gmra.mxu0 %v1051
    %v1053 = vpop.f32.mrf.mxu0
    %v1054 = vadd.f32 %v862, %v1053
    %v1055 = vpop.f32.mrf.mxu0
    %1056 = vmatprep.mubr.f32.mxu0 0.0
    %v1057 = vand.u32 %v275, 4294901760
    %v1058 = vsub.f32 %v275, %v1057
    %v1059 = vand.u32 %v1058, 4294901760
    %1060 = vmatmul.mubr.f32.gmra.mxu0 %v1059
    %v1061 = vpop.f32.mrf.mxu0
    %v1062 = vadd.f32 %v869, %v1061
    %v1063 = vpop.f32.mrf.mxu0
    %1064 = vmatprep.mubr.f32.mxu0 0.0
    %v1065 = vand.u32 %v278, 4294901760
    %v1066 = vsub.f32 %v278, %v1065
    %v1067 = vand.u32 %v1066, 4294901760
    %1068 = vmatmul.mubr.f32.gmra.mxu0 %v1067
    %v1069 = vpop.f32.mrf.mxu0
    %v1070 = vadd.f32 %v876, %v1069
    %v1071 = vpop.f32.mrf.mxu0
    %1072 = vmatprep.mubr.f32.mxu0 0.0
    %v1073 = vand.u32 %v281, 4294901760
    %v1074 = vsub.f32 %v281, %v1073
    %v1075 = vand.u32 %v1074, 4294901760
    %1076 = vmatmul.mubr.f32.gmra.mxu0 %v1075
    %v1077 = vpop.f32.mrf.mxu0
    %v1078 = vadd.f32 %v883, %v1077
    %v1079 = vpop.f32.mrf.mxu0
    %1080 = vmatprep.mubr.f32.mxu0 0.0
    %v1081 = vand.u32 %v284, 4294901760
    %v1082 = vsub.f32 %v284, %v1081
    %v1083 = vand.u32 %v1082, 4294901760
    %1084 = vmatmul.mubr.f32.gmra.mxu0 %v1083
    %v1085 = vpop.f32.mrf.mxu0
    %v1086 = vadd.f32 %v890, %v1085
    %v1087 = vpop.f32.mrf.mxu0
    %1088 = vmatprep.mubr.f32.mxu0 0.0
    %v1089 = vand.u32 %v287, 4294901760
    %v1090 = vsub.f32 %v287, %v1089
    %v1091 = vand.u32 %v1090, 4294901760
    %1092 = vmatmul.mubr.f32.gmra.mxu0 %v1091
    %v1093 = vpop.f32.mrf.mxu0
    %v1094 = vadd.f32 %v897, %v1093
    %v1095 = vpop.f32.mrf.mxu0
    %1096 = vmatprep.mubr.f32.mxu0 0.0
    %v1097 = vand.u32 %v290, 4294901760
    %v1098 = vsub.f32 %v290, %v1097
    %v1099 = vand.u32 %v1098, 4294901760
    %1100 = vmatmul.mubr.f32.gmra.mxu0 %v1099
    %v1101 = vpop.f32.mrf.mxu0
    %v1102 = vadd.f32 %v904, %v1101
    %v1103 = vpop.f32.mrf.mxu0
    %1104 = vmatprep.mubr.f32.mxu0 0.0
    %v1105 = vand.u32 %v293, 4294901760
    %v1106 = vsub.f32 %v293, %v1105
    %v1107 = vand.u32 %v1106, 4294901760
    %1108 = vmatmul.mubr.f32.gmra.mxu0 %v1107
    %v1109 = vpop.f32.mrf.mxu0
    %v1110 = vadd.f32 %v911, %v1109
    %v1111 = vpop.f32.mrf.mxu0
    %1112 = vmatprep.mubr.f32.mxu0 0.0
    %v1113 = vand.u32 %v296, 4294901760
    %v1114 = vsub.f32 %v296, %v1113
    %v1115 = vand.u32 %v1114, 4294901760
    %1116 = vmatmul.mubr.f32.gmra.mxu0 %v1115
    %v1117 = vpop.f32.mrf.mxu0
    %v1118 = vadd.f32 %v918, %v1117
    %v1119 = vpop.f32.mrf.mxu0
    %1120 = vmatprep.mubr.f32.mxu0 0.0
    %v1121 = vand.u32 %v299, 4294901760
    %v1122 = vsub.f32 %v299, %v1121
    %v1123 = vand.u32 %v1122, 4294901760
    %1124 = vmatmul.mubr.f32.gmra.mxu0 %v1123
    %v1125 = vpop.f32.mrf.mxu0
    %v1126 = vadd.f32 %v925, %v1125
    %v1127 = vpop.f32.mrf.mxu0
    %1128 = vdwg.mxu0
    %1129 = vmatprep.subr.mxu0 0.0
    %1130 = vmatpush1.msra.mxu0 0.0
    %1131 = vmatprep.subr.mxu0 0.0
    %1132 = vmatpush1.msra.mxu0 0.0
    %1133 = vmatprep.subr.mxu0 0.0
    %1134 = vmatpush1.msra.mxu0 0.0
    %1135 = vmatprep.subr.mxu0 0.0
    %1136 = vmatpush1.msra.mxu0 0.0
    %1137 = vmatprep.subr.mxu0 0.0
    %1138 = vmatpush1.msra.mxu0 0.0
    %1139 = vmatprep.subr.mxu0 0.0
    %1140 = vmatpush1.msra.mxu0 0.0
    %1141 = vmatprep.subr.mxu0 0.0
    %1142 = vmatpush1.msra.mxu0 0.0
    %1143 = vmatprep.subr.mxu0 0.0
    %1144 = vmatpush1.msra.mxu0 0.0
    %1145 = vmatprep.subr.mxu0 0.0
    %v1146 = vand.u32 %v251, 4294901760
    %v1147 = vsub.f32 %v251, %v1146
    %v1148 = vand.u32 %v1147, 4294901760
    %1149 = vmatpush1.msra.mxu0 %v1148
    %1150 = vmatprep.subr.mxu0 0.0
    %v1151 = vand.u32 %v250, 4294901760
    %v1152 = vsub.f32 %v250, %v1151
    %v1153 = vand.u32 %v1152, 4294901760
    %1154 = vmatpush1.msra.mxu0 %v1153
    %1155 = vmatprep.subr.mxu0 0.0
    %v1156 = vand.u32 %v249, 4294901760
    %v1157 = vsub.f32 %v249, %v1156
    %v1158 = vand.u32 %v1157, 4294901760
    %1159 = vmatpush1.msra.mxu0 %v1158
    %1160 = vmatprep.subr.mxu0 0.0
    %v1161 = vand.u32 %v248, 4294901760
    %v1162 = vsub.f32 %v248, %v1161
    %v1163 = vand.u32 %v1162, 4294901760
    %1164 = vmatpush1.msra.mxu0 %v1163
    %1165 = vmatprep.subr.mxu0 0.0
    %v1166 = vand.u32 %v247, 4294901760
    %v1167 = vsub.f32 %v247, %v1166
    %v1168 = vand.u32 %v1167, 4294901760
    %1169 = vmatpush1.msra.mxu0 %v1168
    %1170 = vmatprep.subr.mxu0 0.0
    %v1171 = vand.u32 %v246, 4294901760
    %v1172 = vsub.f32 %v246, %v1171
    %v1173 = vand.u32 %v1172, 4294901760
    %1174 = vmatpush1.msra.mxu0 %v1173
    %1175 = vmatprep.subr.mxu0 0.0
    %v1176 = vand.u32 %v245, 4294901760
    %v1177 = vsub.f32 %v245, %v1176
    %v1178 = vand.u32 %v1177, 4294901760
    %1179 = vmatpush1.msra.mxu0 %v1178
    %1180 = vmatprep.subr.mxu0 0.0
    %v1181 = vand.u32 %v244, 4294901760
    %v1182 = vsub.f32 %v244, %v1181
    %v1183 = vand.u32 %v1182, 4294901760
    %1184 = vmatpush1.msra.mxu0 %v1183
    %1185 = vmatprep.subr.mxu0 0.0
    %1186 = vmatpush2.msra.mxu0 0.0
    %1187 = vmatprep.subr.mxu0 0.0
    %1188 = vmatpush2.msra.mxu0 0.0
    %1189 = vmatprep.subr.mxu0 0.0
    %1190 = vmatpush2.msra.mxu0 0.0
    %1191 = vmatprep.subr.mxu0 0.0
    %1192 = vmatpush2.msra.mxu0 0.0
    %1193 = vmatprep.subr.mxu0 0.0
    %1194 = vmatpush2.msra.mxu0 0.0
    %1195 = vmatprep.subr.mxu0 0.0
    %1196 = vmatpush2.msra.mxu0 0.0
    %1197 = vmatprep.subr.mxu0 0.0
    %1198 = vmatpush2.msra.mxu0 0.0
    %1199 = vmatprep.subr.mxu0 0.0
    %1200 = vmatpush2.msra.mxu0 0.0
    %1201 = vmatprep.subr.mxu0 0.0
    %1202 = vmatpush2.msra.mxu0 0.0
    %1203 = vmatprep.subr.mxu0 0.0
    %1204 = vmatpush2.msra.mxu0 0.0
    %1205 = vmatprep.subr.mxu0 0.0
    %1206 = vmatpush2.msra.mxu0 0.0
    %1207 = vmatprep.subr.mxu0 0.0
    %1208 = vmatpush2.msra.mxu0 0.0
    %1209 = vmatprep.subr.mxu0 0.0
    %1210 = vmatpush2.msra.mxu0 0.0
    %1211 = vmatprep.subr.mxu0 0.0
    %1212 = vmatpush2.msra.mxu0 0.0
    %1213 = vmatprep.subr.mxu0 0.0
    %1214 = vmatpush2.msra.mxu0 0.0
    %1215 = vmatprep.subr.mxu0 0.0
    %1216 = vmatpush2.msra.mxu0 0.0
    %1217 = vmatprep.mubr.f32.mxu0 0.0
    %v1218 = vand.u32 %v254, 4294901760
    %1219 = vmatmul.mubr.f32.gmra.mxu0 %v1218
    %v1220 = vpop.f32.mrf.mxu0
    %v1221 = vadd.f32 %v1006, %v1220
    %v1222 = vpop.f32.mrf.mxu0
    %1223 = vmatprep.mubr.f32.mxu0 0.0
    %v1224 = vand.u32 %v257, 4294901760
    %1225 = vmatmul.mubr.f32.gmra.mxu0 %v1224
    %v1226 = vpop.f32.mrf.mxu0
    %v1227 = vadd.f32 %v1014, %v1226
    %v1228 = vpop.f32.mrf.mxu0
    %1229 = vmatprep.mubr.f32.mxu0 0.0
    %v1230 = vand.u32 %v260, 4294901760
    %1231 = vmatmul.mubr.f32.gmra.mxu0 %v1230
    %v1232 = vpop.f32.mrf.mxu0
    %v1233 = vadd.f32 %v1022, %v1232
    %v1234 = vpop.f32.mrf.mxu0
    %1235 = vmatprep.mubr.f32.mxu0 0.0
    %v1236 = vand.u32 %v263, 4294901760
    %1237 = vmatmul.mubr.f32.gmra.mxu0 %v1236
    %v1238 = vpop.f32.mrf.mxu0
    %v1239 = vadd.f32 %v1030, %v1238
    %v1240 = vpop.f32.mrf.mxu0
    %1241 = vmatprep.mubr.f32.mxu0 0.0
    %v1242 = vand.u32 %v266, 4294901760
    %1243 = vmatmul.mubr.f32.gmra.mxu0 %v1242
    %v1244 = vpop.f32.mrf.mxu0
    %v1245 = vadd.f32 %v1038, %v1244
    %v1246 = vpop.f32.mrf.mxu0
    %1247 = vmatprep.mubr.f32.mxu0 0.0
    %v1248 = vand.u32 %v269, 4294901760
    %1249 = vmatmul.mubr.f32.gmra.mxu0 %v1248
    %v1250 = vpop.f32.mrf.mxu0
    %v1251 = vadd.f32 %v1046, %v1250
    %v1252 = vpop.f32.mrf.mxu0
    %1253 = vmatprep.mubr.f32.mxu0 0.0
    %v1254 = vand.u32 %v272, 4294901760
    %1255 = vmatmul.mubr.f32.gmra.mxu0 %v1254
    %v1256 = vpop.f32.mrf.mxu0
    %v1257 = vadd.f32 %v1054, %v1256
    %v1258 = vpop.f32.mrf.mxu0
    %1259 = vmatprep.mubr.f32.mxu0 0.0
    %v1260 = vand.u32 %v275, 4294901760
    %1261 = vmatmul.mubr.f32.gmra.mxu0 %v1260
    %v1262 = vpop.f32.mrf.mxu0
    %v1263 = vadd.f32 %v1062, %v1262
    %v1264 = vpop.f32.mrf.mxu0
    %1265 = vmatprep.mubr.f32.mxu0 0.0
    %v1266 = vand.u32 %v278, 4294901760
    %1267 = vmatmul.mubr.f32.gmra.mxu0 %v1266
    %v1268 = vpop.f32.mrf.mxu0
    %v1269 = vadd.f32 %v1070, %v1268
    %v1270 = vpop.f32.mrf.mxu0
    %1271 = vmatprep.mubr.f32.mxu0 0.0
    %v1272 = vand.u32 %v281, 4294901760
    %1273 = vmatmul.mubr.f32.gmra.mxu0 %v1272
    %v1274 = vpop.f32.mrf.mxu0
    %v1275 = vadd.f32 %v1078, %v1274
    %v1276 = vpop.f32.mrf.mxu0
    %1277 = vmatprep.mubr.f32.mxu0 0.0
    %v1278 = vand.u32 %v284, 4294901760
    %1279 = vmatmul.mubr.f32.gmra.mxu0 %v1278
    %v1280 = vpop.f32.mrf.mxu0
    %v1281 = vadd.f32 %v1086, %v1280
    %v1282 = vpop.f32.mrf.mxu0
    %1283 = vmatprep.mubr.f32.mxu0 0.0
    %v1284 = vand.u32 %v287, 4294901760
    %1285 = vmatmul.mubr.f32.gmra.mxu0 %v1284
    %v1286 = vpop.f32.mrf.mxu0
    %v1287 = vadd.f32 %v1094, %v1286
    %v1288 = vpop.f32.mrf.mxu0
    %1289 = vmatprep.mubr.f32.mxu0 0.0
    %v1290 = vand.u32 %v290, 4294901760
    %1291 = vmatmul.mubr.f32.gmra.mxu0 %v1290
    %v1292 = vpop.f32.mrf.mxu0
    %v1293 = vadd.f32 %v1102, %v1292
    %v1294 = vpop.f32.mrf.mxu0
    %1295 = vmatprep.mubr.f32.mxu0 0.0
    %v1296 = vand.u32 %v293, 4294901760
    %1297 = vmatmul.mubr.f32.gmra.mxu0 %v1296
    %v1298 = vpop.f32.mrf.mxu0
    %v1299 = vadd.f32 %v1110, %v1298
    %v1300 = vpop.f32.mrf.mxu0
    %1301 = vmatprep.mubr.f32.mxu0 0.0
    %v1302 = vand.u32 %v296, 4294901760
    %1303 = vmatmul.mubr.f32.gmra.mxu0 %v1302
    %v1304 = vpop.f32.mrf.mxu0
    %v1305 = vadd.f32 %v1118, %v1304
    %v1306 = vpop.f32.mrf.mxu0
    %1307 = vmatprep.mubr.f32.mxu0 0.0
    %v1308 = vand.u32 %v299, 4294901760
    %1309 = vmatmul.mubr.f32.gmra.mxu0 %v1308
    %v1310 = vpop.f32.mrf.mxu0
    %v1311 = vadd.f32 %v1126, %v1310
    %v1312 = vpop.f32.mrf.mxu0
    %1313 = vdwg.mxu0
    %1314 = vmatprep.subr.mxu0 0.0
    %1315 = vmatpush1.msra.mxu0 0.0
    %1316 = vmatprep.subr.mxu0 0.0
    %1317 = vmatpush1.msra.mxu0 0.0
    %1318 = vmatprep.subr.mxu0 0.0
    %1319 = vmatpush1.msra.mxu0 0.0
    %1320 = vmatprep.subr.mxu0 0.0
    %1321 = vmatpush1.msra.mxu0 0.0
    %1322 = vmatprep.subr.mxu0 0.0
    %1323 = vmatpush1.msra.mxu0 0.0
    %1324 = vmatprep.subr.mxu0 0.0
    %1325 = vmatpush1.msra.mxu0 0.0
    %1326 = vmatprep.subr.mxu0 0.0
    %1327 = vmatpush1.msra.mxu0 0.0
    %1328 = vmatprep.subr.mxu0 0.0
    %1329 = vmatpush1.msra.mxu0 0.0
    %1330 = vmatprep.subr.mxu0 0.0
    %v1331 = vand.u32 %v251, 4294901760
    %1332 = vmatpush1.msra.mxu0 %v1331
    %1333 = vmatprep.subr.mxu0 0.0
    %v1334 = vand.u32 %v250, 4294901760
    %1335 = vmatpush1.msra.mxu0 %v1334
    %1336 = vmatprep.subr.mxu0 0.0
    %v1337 = vand.u32 %v249, 4294901760
    %1338 = vmatpush1.msra.mxu0 %v1337
    %1339 = vmatprep.subr.mxu0 0.0
    %v1340 = vand.u32 %v248, 4294901760
    %1341 = vmatpush1.msra.mxu0 %v1340
    %1342 = vmatprep.subr.mxu0 0.0
    %v1343 = vand.u32 %v247, 4294901760
    %1344 = vmatpush1.msra.mxu0 %v1343
    %1345 = vmatprep.subr.mxu0 0.0
    %v1346 = vand.u32 %v246, 4294901760
    %1347 = vmatpush1.msra.mxu0 %v1346
    %1348 = vmatprep.subr.mxu0 0.0
    %v1349 = vand.u32 %v245, 4294901760
    %1350 = vmatpush1.msra.mxu0 %v1349
    %1351 = vmatprep.subr.mxu0 0.0
    %v1352 = vand.u32 %v244, 4294901760
    %1353 = vmatpush1.msra.mxu0 %v1352
    %1354 = vmatprep.subr.mxu0 0.0
    %1355 = vmatpush2.msra.mxu0 0.0
    %1356 = vmatprep.subr.mxu0 0.0
    %1357 = vmatpush2.msra.mxu0 0.0
    %1358 = vmatprep.subr.mxu0 0.0
    %1359 = vmatpush2.msra.mxu0 0.0
    %1360 = vmatprep.subr.mxu0 0.0
    %1361 = vmatpush2.msra.mxu0 0.0
    %1362 = vmatprep.subr.mxu0 0.0
    %1363 = vmatpush2.msra.mxu0 0.0
    %1364 = vmatprep.subr.mxu0 0.0
    %1365 = vmatpush2.msra.mxu0 0.0
    %1366 = vmatprep.subr.mxu0 0.0
    %1367 = vmatpush2.msra.mxu0 0.0
    %1368 = vmatprep.subr.mxu0 0.0
    %1369 = vmatpush2.msra.mxu0 0.0
    %1370 = vmatprep.subr.mxu0 0.0
    %1371 = vmatpush2.msra.mxu0 0.0
    %1372 = vmatprep.subr.mxu0 0.0
    %1373 = vmatpush2.msra.mxu0 0.0
    %1374 = vmatprep.subr.mxu0 0.0
    %1375 = vmatpush2.msra.mxu0 0.0
    %1376 = vmatprep.subr.mxu0 0.0
    %1377 = vmatpush2.msra.mxu0 0.0
    %1378 = vmatprep.subr.mxu0 0.0
    %1379 = vmatpush2.msra.mxu0 0.0
    %1380 = vmatprep.subr.mxu0 0.0
    %1381 = vmatpush2.msra.mxu0 0.0
    %1382 = vmatprep.subr.mxu0 0.0
    %1383 = vmatpush2.msra.mxu0 0.0
    %1384 = vmatprep.subr.mxu0 0.0
    %1385 = vmatpush2.msra.mxu0 0.0
    %1386 = vmatprep.mubr.f32.mxu0 0.0
    %v1387 = vand.u32 %v254, 4294901760
    %1388 = vmatmul.mubr.f32.gmra.mxu0 %v1387
    %v1389 = vpop.f32.mrf.mxu0
    %v1390 = vadd.f32 %v1221, %v1389
    %v1391 = vpop.f32.mrf.mxu0
    %1392 = vmatprep.mubr.f32.mxu0 0.0
    %v1393 = vand.u32 %v257, 4294901760
    %1394 = vmatmul.mubr.f32.gmra.mxu0 %v1393
    %v1395 = vpop.f32.mrf.mxu0
    %v1396 = vadd.f32 %v1227, %v1395
    %v1397 = vpop.f32.mrf.mxu0
    %1398 = vmatprep.mubr.f32.mxu0 0.0
    %v1399 = vand.u32 %v260, 4294901760
    %1400 = vmatmul.mubr.f32.gmra.mxu0 %v1399
    %v1401 = vpop.f32.mrf.mxu0
    %v1402 = vadd.f32 %v1233, %v1401
    %v1403 = vpop.f32.mrf.mxu0
    %1404 = vmatprep.mubr.f32.mxu0 0.0
    %v1405 = vand.u32 %v263, 4294901760
    %1406 = vmatmul.mubr.f32.gmra.mxu0 %v1405
    %v1407 = vpop.f32.mrf.mxu0
    %v1408 = vadd.f32 %v1239, %v1407
    %v1409 = vpop.f32.mrf.mxu0
    %1410 = vmatprep.mubr.f32.mxu0 0.0
    %v1411 = vand.u32 %v266, 4294901760
    %1412 = vmatmul.mubr.f32.gmra.mxu0 %v1411
    %v1413 = vpop.f32.mrf.mxu0
    %v1414 = vadd.f32 %v1245, %v1413
    %v1415 = vpop.f32.mrf.mxu0
    %1416 = vmatprep.mubr.f32.mxu0 0.0
    %v1417 = vand.u32 %v269, 4294901760
    %1418 = vmatmul.mubr.f32.gmra.mxu0 %v1417
    %v1419 = vpop.f32.mrf.mxu0
    %v1420 = vadd.f32 %v1251, %v1419
    %v1421 = vpop.f32.mrf.mxu0
    %1422 = vmatprep.mubr.f32.mxu0 0.0
    %v1423 = vand.u32 %v272, 4294901760
    %1424 = vmatmul.mubr.f32.gmra.mxu0 %v1423
    %v1425 = vpop.f32.mrf.mxu0
    %v1426 = vadd.f32 %v1257, %v1425
    %v1427 = vpop.f32.mrf.mxu0
    %1428 = vmatprep.mubr.f32.mxu0 0.0
    %v1429 = vand.u32 %v275, 4294901760
    %1430 = vmatmul.mubr.f32.gmra.mxu0 %v1429
    %v1431 = vpop.f32.mrf.mxu0
    %v1432 = vadd.f32 %v1263, %v1431
    %v1433 = vpop.f32.mrf.mxu0
    %1434 = vmatprep.mubr.f32.mxu0 0.0
    %v1435 = vand.u32 %v278, 4294901760
    %1436 = vmatmul.mubr.f32.gmra.mxu0 %v1435
    %v1437 = vpop.f32.mrf.mxu0
    %v1438 = vadd.f32 %v1269, %v1437
    %v1439 = vpop.f32.mrf.mxu0
    %1440 = vmatprep.mubr.f32.mxu0 0.0
    %v1441 = vand.u32 %v281, 4294901760
    %1442 = vmatmul.mubr.f32.gmra.mxu0 %v1441
    %v1443 = vpop.f32.mrf.mxu0
    %v1444 = vadd.f32 %v1275, %v1443
    %v1445 = vpop.f32.mrf.mxu0
    %1446 = vmatprep.mubr.f32.mxu0 0.0
    %v1447 = vand.u32 %v284, 4294901760
    %1448 = vmatmul.mubr.f32.gmra.mxu0 %v1447
    %v1449 = vpop.f32.mrf.mxu0
    %v1450 = vadd.f32 %v1281, %v1449
    %v1451 = vpop.f32.mrf.mxu0
    %1452 = vmatprep.mubr.f32.mxu0 0.0
    %v1453 = vand.u32 %v287, 4294901760
    %1454 = vmatmul.mubr.f32.gmra.mxu0 %v1453
    %v1455 = vpop.f32.mrf.mxu0
    %v1456 = vadd.f32 %v1287, %v1455
    %v1457 = vpop.f32.mrf.mxu0
    %1458 = vmatprep.mubr.f32.mxu0 0.0
    %v1459 = vand.u32 %v290, 4294901760
    %1460 = vmatmul.mubr.f32.gmra.mxu0 %v1459
    %v1461 = vpop.f32.mrf.mxu0
    %v1462 = vadd.f32 %v1293, %v1461
    %v1463 = vpop.f32.mrf.mxu0
    %1464 = vmatprep.mubr.f32.mxu0 0.0
    %v1465 = vand.u32 %v293, 4294901760
    %1466 = vmatmul.mubr.f32.gmra.mxu0 %v1465
    %v1467 = vpop.f32.mrf.mxu0
    %v1468 = vadd.f32 %v1299, %v1467
    %v1469 = vpop.f32.mrf.mxu0
    %1470 = vmatprep.mubr.f32.mxu0 0.0
    %v1471 = vand.u32 %v296, 4294901760
    %1472 = vmatmul.mubr.f32.gmra.mxu0 %v1471
    %v1473 = vpop.f32.mrf.mxu0
    %v1474 = vadd.f32 %v1305, %v1473
    %v1475 = vpop.f32.mrf.mxu0
    %1476 = vmatprep.mubr.f32.mxu0 0.0
    %v1477 = vand.u32 %v299, 4294901760
    %1478 = vmatmul.mubr.f32.gmra.mxu0 %v1477
    %v1479 = vpop.f32.mrf.mxu0
    %v1480 = vadd.f32 %v1311, %v1479
    %v1481 = vpop.f32.mrf.mxu0
    %1482 = vdwg.mxu0
    %v1483 = vld [vmem:[%s3] sm:$0xff]
    %v1484 = vld [vmem:[%s3 + $0x8] sm:$0xff]
    %v1485 = vld [vmem:[%s3 + $0x10] sm:$0xff]
    %v1486 = vld [vmem:[%s3 + $0x18] sm:$0xff]
    %v1487 = vld [vmem:[%s3 + $0x20] sm:$0xff]
    %v1488 = vld [vmem:[%s3 + $0x28] sm:$0xff]
    %v1489 = vld [vmem:[%s3 + $0x30] sm:$0xff]
    %v1490 = vld [vmem:[%s3 + $0x38] sm:$0xff]
    %v1491 = vld [vmem:[%s3 + $0x40] sm:$0xff]
    %v1492 = vld [vmem:[%s3 + $0x48] sm:$0xff]
    %vm1493 = vcmask 654336
    %v1495 = vsel %vm1493, %v228, 0
    %v1498 = vsel %vm1493, %v229, 0
    %v1501 = vsel %vm1493, %v230, 0
    %v1504 = vsel %vm1493, %v231, 0
    %v1507 = vsel %vm1493, %v232, 0
    %v1510 = vsel %vm1493, %v233, 0
    %v1513 = vsel %vm1493, %v234, 0
    %v1516 = vsel %vm1493, %v235, 0
    %v1519 = vsel %vm1493, %v236, 0
    %v1522 = vsel %vm1493, %v237, 0
    %v1525 = vsel %vm1493, %v238, 0
    %v1528 = vsel %vm1493, %v239, 0
    %v1531 = vsel %vm1493, %v240, 0
    %v1534 = vsel %vm1493, %v241, 0
    %v1537 = vsel %vm1493, %v242, 0
    %v1540 = vsel %vm1493, %v243, 0
    %1542 = vmatprep.subr.mxu0 0.0
    %1543 = vmatpush1.msra.mxu0 0.0
    %1544 = vmatprep.subr.mxu0 0.0
    %1545 = vmatpush1.msra.mxu0 0.0
    %1546 = vmatprep.subr.mxu0 0.0
    %1547 = vmatpush1.msra.mxu0 0.0
    %1548 = vmatprep.subr.mxu0 0.0
    %1549 = vmatpush1.msra.mxu0 0.0
    %1550 = vmatprep.subr.mxu0 0.0
    %1551 = vmatpush1.msra.mxu0 0.0
    %1552 = vmatprep.subr.mxu0 0.0
    %1553 = vmatpush1.msra.mxu0 0.0
    %1554 = vmatprep.subr.mxu0 0.0
    %v1555 = vand.u32 %v1492, 4294901760
    %1556 = vmatpush1.msra.mxu0 %v1555
    %1557 = vmatprep.subr.mxu0 0.0
    %v1558 = vand.u32 %v1491, 4294901760
    %1559 = vmatpush1.msra.mxu0 %v1558
    %1560 = vmatprep.subr.mxu0 0.0
    %v1561 = vand.u32 %v1490, 4294901760
    %1562 = vmatpush1.msra.mxu0 %v1561
    %1563 = vmatprep.subr.mxu0 0.0
    %v1564 = vand.u32 %v1489, 4294901760
    %1565 = vmatpush1.msra.mxu0 %v1564
    %1566 = vmatprep.subr.mxu0 0.0
    %v1567 = vand.u32 %v1488, 4294901760
    %1568 = vmatpush1.msra.mxu0 %v1567
    %1569 = vmatprep.subr.mxu0 0.0
    %v1570 = vand.u32 %v1487, 4294901760
    %1571 = vmatpush1.msra.mxu0 %v1570
    %1572 = vmatprep.subr.mxu0 0.0
    %v1573 = vand.u32 %v1486, 4294901760
    %1574 = vmatpush1.msra.mxu0 %v1573
    %1575 = vmatprep.subr.mxu0 0.0
    %v1576 = vand.u32 %v1485, 4294901760
    %1577 = vmatpush1.msra.mxu0 %v1576
    %1578 = vmatprep.subr.mxu0 0.0
    %v1579 = vand.u32 %v1484, 4294901760
    %1580 = vmatpush1.msra.mxu0 %v1579
    %1581 = vmatprep.subr.mxu0 0.0
    %v1582 = vand.u32 %v1483, 4294901760
    %1583 = vmatpush1.msra.mxu0 %v1582
    %1584 = vmatprep.subr.mxu0 0.0
    %1585 = vmatpush2.msra.mxu0 0.0
    %1586 = vmatprep.subr.mxu0 0.0
    %1587 = vmatpush2.msra.mxu0 0.0
    %1588 = vmatprep.subr.mxu0 0.0
    %1589 = vmatpush2.msra.mxu0 0.0
    %1590 = vmatprep.subr.mxu0 0.0
    %1591 = vmatpush2.msra.mxu0 0.0
    %1592 = vmatprep.subr.mxu0 0.0
    %1593 = vmatpush2.msra.mxu0 0.0
    %1594 = vmatprep.subr.mxu0 0.0
    %1595 = vmatpush2.msra.mxu0 0.0
    %1596 = vmatprep.subr.mxu0 0.0
    %1597 = vmatpush2.msra.mxu0 0.0
    %1598 = vmatprep.subr.mxu0 0.0
    %1599 = vmatpush2.msra.mxu0 0.0
    %1600 = vmatprep.subr.mxu0 0.0
    %1601 = vmatpush2.msra.mxu0 0.0
    %1602 = vmatprep.subr.mxu0 0.0
    %1603 = vmatpush2.msra.mxu0 0.0
    %1604 = vmatprep.subr.mxu0 0.0
    %1605 = vmatpush2.msra.mxu0 0.0
    %1606 = vmatprep.subr.mxu0 0.0
    %1607 = vmatpush2.msra.mxu0 0.0
    %1608 = vmatprep.subr.mxu0 0.0
    %1609 = vmatpush2.msra.mxu0 0.0
    %1610 = vmatprep.subr.mxu0 0.0
    %1611 = vmatpush2.msra.mxu0 0.0
    %1612 = vmatprep.subr.mxu0 0.0
    %1613 = vmatpush2.msra.mxu0 0.0
    %1614 = vmatprep.subr.mxu0 0.0
    %1615 = vmatpush2.msra.mxu0 0.0
    %1616 = vmatprep.mubr.f32.mxu0 0.0
    %v1617 = vand.u32 %v1495, 4294901760
    %v1618 = vsub.f32 %v1495, %v1617
    %v1619 = vand.u32 %v1618, 4294901760
    %v1620 = vsub.f32 %v1618, %v1619
    %v1621 = vand.u32 %v1620, 4294901760
    %1622 = vmatmul.mubr.f32.gmra.mxu0 %v1621
    %v1623 = vpop.f32.mrf.mxu0
    %v1624 = vadd.f32 0.0, %v1623
    %v1625 = vpop.f32.mrf.mxu0
    %1626 = vmatprep.mubr.f32.mxu0 0.0
    %v1627 = vand.u32 %v1498, 4294901760
    %v1628 = vsub.f32 %v1498, %v1627
    %v1629 = vand.u32 %v1628, 4294901760
    %v1630 = vsub.f32 %v1628, %v1629
    %v1631 = vand.u32 %v1630, 4294901760
    %1632 = vmatmul.mubr.f32.gmra.mxu0 %v1631
    %v1633 = vpop.f32.mrf.mxu0
    %v1634 = vadd.f32 0.0, %v1633
    %v1635 = vpop.f32.mrf.mxu0
    %1636 = vmatprep.mubr.f32.mxu0 0.0
    %v1637 = vand.u32 %v1501, 4294901760
    %v1638 = vsub.f32 %v1501, %v1637
    %v1639 = vand.u32 %v1638, 4294901760
    %v1640 = vsub.f32 %v1638, %v1639
    %v1641 = vand.u32 %v1640, 4294901760
    %1642 = vmatmul.mubr.f32.gmra.mxu0 %v1641
    %v1643 = vpop.f32.mrf.mxu0
    %v1644 = vadd.f32 0.0, %v1643
    %v1645 = vpop.f32.mrf.mxu0
    %1646 = vmatprep.mubr.f32.mxu0 0.0
    %v1647 = vand.u32 %v1504, 4294901760
    %v1648 = vsub.f32 %v1504, %v1647
    %v1649 = vand.u32 %v1648, 4294901760
    %v1650 = vsub.f32 %v1648, %v1649
    %v1651 = vand.u32 %v1650, 4294901760
    %1652 = vmatmul.mubr.f32.gmra.mxu0 %v1651
    %v1653 = vpop.f32.mrf.mxu0
    %v1654 = vadd.f32 0.0, %v1653
    %v1655 = vpop.f32.mrf.mxu0
    %1656 = vmatprep.mubr.f32.mxu0 0.0
    %v1657 = vand.u32 %v1507, 4294901760
    %v1658 = vsub.f32 %v1507, %v1657
    %v1659 = vand.u32 %v1658, 4294901760
    %v1660 = vsub.f32 %v1658, %v1659
    %v1661 = vand.u32 %v1660, 4294901760
    %1662 = vmatmul.mubr.f32.gmra.mxu0 %v1661
    %v1663 = vpop.f32.mrf.mxu0
    %v1664 = vadd.f32 0.0, %v1663
    %v1665 = vpop.f32.mrf.mxu0
    %1666 = vmatprep.mubr.f32.mxu0 0.0
    %v1667 = vand.u32 %v1510, 4294901760
    %v1668 = vsub.f32 %v1510, %v1667
    %v1669 = vand.u32 %v1668, 4294901760
    %v1670 = vsub.f32 %v1668, %v1669
    %v1671 = vand.u32 %v1670, 4294901760
    %1672 = vmatmul.mubr.f32.gmra.mxu0 %v1671
    %v1673 = vpop.f32.mrf.mxu0
    %v1674 = vadd.f32 0.0, %v1673
    %v1675 = vpop.f32.mrf.mxu0
    %1676 = vmatprep.mubr.f32.mxu0 0.0
    %v1677 = vand.u32 %v1513, 4294901760
    %v1678 = vsub.f32 %v1513, %v1677
    %v1679 = vand.u32 %v1678, 4294901760
    %v1680 = vsub.f32 %v1678, %v1679
    %v1681 = vand.u32 %v1680, 4294901760
    %1682 = vmatmul.mubr.f32.gmra.mxu0 %v1681
    %v1683 = vpop.f32.mrf.mxu0
    %v1684 = vadd.f32 0.0, %v1683
    %v1685 = vpop.f32.mrf.mxu0
    %1686 = vmatprep.mubr.f32.mxu0 0.0
    %v1687 = vand.u32 %v1516, 4294901760
    %v1688 = vsub.f32 %v1516, %v1687
    %v1689 = vand.u32 %v1688, 4294901760
    %v1690 = vsub.f32 %v1688, %v1689
    %v1691 = vand.u32 %v1690, 4294901760
    %1692 = vmatmul.mubr.f32.gmra.mxu0 %v1691
    %v1693 = vpop.f32.mrf.mxu0
    %v1694 = vadd.f32 0.0, %v1693
    %v1695 = vpop.f32.mrf.mxu0
    %1696 = vmatprep.mubr.f32.mxu0 0.0
    %v1697 = vand.u32 %v1519, 4294901760
    %v1698 = vsub.f32 %v1519, %v1697
    %v1699 = vand.u32 %v1698, 4294901760
    %v1700 = vsub.f32 %v1698, %v1699
    %v1701 = vand.u32 %v1700, 4294901760
    %1702 = vmatmul.mubr.f32.gmra.mxu0 %v1701
    %v1703 = vpop.f32.mrf.mxu0
    %v1704 = vadd.f32 0.0, %v1703
    %v1705 = vpop.f32.mrf.mxu0
    %1706 = vmatprep.mubr.f32.mxu0 0.0
    %v1707 = vand.u32 %v1522, 4294901760
    %v1708 = vsub.f32 %v1522, %v1707
    %v1709 = vand.u32 %v1708, 4294901760
    %v1710 = vsub.f32 %v1708, %v1709
    %v1711 = vand.u32 %v1710, 4294901760
    %1712 = vmatmul.mubr.f32.gmra.mxu0 %v1711
    %v1713 = vpop.f32.mrf.mxu0
    %v1714 = vadd.f32 0.0, %v1713
    %v1715 = vpop.f32.mrf.mxu0
    %1716 = vmatprep.mubr.f32.mxu0 0.0
    %v1717 = vand.u32 %v1525, 4294901760
    %v1718 = vsub.f32 %v1525, %v1717
    %v1719 = vand.u32 %v1718, 4294901760
    %v1720 = vsub.f32 %v1718, %v1719
    %v1721 = vand.u32 %v1720, 4294901760
    %1722 = vmatmul.mubr.f32.gmra.mxu0 %v1721
    %v1723 = vpop.f32.mrf.mxu0
    %v1724 = vadd.f32 0.0, %v1723
    %v1725 = vpop.f32.mrf.mxu0
    %1726 = vmatprep.mubr.f32.mxu0 0.0
    %v1727 = vand.u32 %v1528, 4294901760
    %v1728 = vsub.f32 %v1528, %v1727
    %v1729 = vand.u32 %v1728, 4294901760
    %v1730 = vsub.f32 %v1728, %v1729
    %v1731 = vand.u32 %v1730, 4294901760
    %1732 = vmatmul.mubr.f32.gmra.mxu0 %v1731
    %v1733 = vpop.f32.mrf.mxu0
    %v1734 = vadd.f32 0.0, %v1733
    %v1735 = vpop.f32.mrf.mxu0
    %1736 = vmatprep.mubr.f32.mxu0 0.0
    %v1737 = vand.u32 %v1531, 4294901760
    %v1738 = vsub.f32 %v1531, %v1737
    %v1739 = vand.u32 %v1738, 4294901760
    %v1740 = vsub.f32 %v1738, %v1739
    %v1741 = vand.u32 %v1740, 4294901760
    %1742 = vmatmul.mubr.f32.gmra.mxu0 %v1741
    %v1743 = vpop.f32.mrf.mxu0
    %v1744 = vadd.f32 0.0, %v1743
    %v1745 = vpop.f32.mrf.mxu0
    %1746 = vmatprep.mubr.f32.mxu0 0.0
    %v1747 = vand.u32 %v1534, 4294901760
    %v1748 = vsub.f32 %v1534, %v1747
    %v1749 = vand.u32 %v1748, 4294901760
    %v1750 = vsub.f32 %v1748, %v1749
    %v1751 = vand.u32 %v1750, 4294901760
    %1752 = vmatmul.mubr.f32.gmra.mxu0 %v1751
    %v1753 = vpop.f32.mrf.mxu0
    %v1754 = vadd.f32 0.0, %v1753
    %v1755 = vpop.f32.mrf.mxu0
    %1756 = vmatprep.mubr.f32.mxu0 0.0
    %v1757 = vand.u32 %v1537, 4294901760
    %v1758 = vsub.f32 %v1537, %v1757
    %v1759 = vand.u32 %v1758, 4294901760
    %v1760 = vsub.f32 %v1758, %v1759
    %v1761 = vand.u32 %v1760, 4294901760
    %1762 = vmatmul.mubr.f32.gmra.mxu0 %v1761
    %v1763 = vpop.f32.mrf.mxu0
    %v1764 = vadd.f32 0.0, %v1763
    %v1765 = vpop.f32.mrf.mxu0
    %1766 = vmatprep.mubr.f32.mxu0 0.0
    %v1767 = vand.u32 %v1540, 4294901760
    %v1768 = vsub.f32 %v1540, %v1767
    %v1769 = vand.u32 %v1768, 4294901760
    %v1770 = vsub.f32 %v1768, %v1769
    %v1771 = vand.u32 %v1770, 4294901760
    %1772 = vmatmul.mubr.f32.gmra.mxu0 %v1771
    %v1773 = vpop.f32.mrf.mxu0
    %v1774 = vadd.f32 0.0, %v1773
    %v1775 = vpop.f32.mrf.mxu0
    %1776 = vdwg.mxu0
    %1777 = vmatprep.subr.mxu0 0.0
    %1778 = vmatpush1.msra.mxu0 0.0
    %1779 = vmatprep.subr.mxu0 0.0
    %1780 = vmatpush1.msra.mxu0 0.0
    %1781 = vmatprep.subr.mxu0 0.0
    %1782 = vmatpush1.msra.mxu0 0.0
    %1783 = vmatprep.subr.mxu0 0.0
    %1784 = vmatpush1.msra.mxu0 0.0
    %1785 = vmatprep.subr.mxu0 0.0
    %1786 = vmatpush1.msra.mxu0 0.0
    %1787 = vmatprep.subr.mxu0 0.0
    %1788 = vmatpush1.msra.mxu0 0.0
    %1789 = vmatprep.subr.mxu0 0.0
    %v1790 = vand.u32 %v1492, 4294901760
    %v1791 = vsub.f32 %v1492, %v1790
    %v1792 = vand.u32 %v1791, 4294901760
    %v1793 = vsub.f32 %v1791, %v1792
    %v1794 = vand.u32 %v1793, 4294901760
    %1795 = vmatpush1.msra.mxu0 %v1794
    %1796 = vmatprep.subr.mxu0 0.0
    %v1797 = vand.u32 %v1491, 4294901760
    %v1798 = vsub.f32 %v1491, %v1797
    %v1799 = vand.u32 %v1798, 4294901760
    %v1800 = vsub.f32 %v1798, %v1799
    %v1801 = vand.u32 %v1800, 4294901760
    %1802 = vmatpush1.msra.mxu0 %v1801
    %1803 = vmatprep.subr.mxu0 0.0
    %v1804 = vand.u32 %v1490, 4294901760
    %v1805 = vsub.f32 %v1490, %v1804
    %v1806 = vand.u32 %v1805, 4294901760
    %v1807 = vsub.f32 %v1805, %v1806
    %v1808 = vand.u32 %v1807, 4294901760
    %1809 = vmatpush1.msra.mxu0 %v1808
    %1810 = vmatprep.subr.mxu0 0.0
    %v1811 = vand.u32 %v1489, 4294901760
    %v1812 = vsub.f32 %v1489, %v1811
    %v1813 = vand.u32 %v1812, 4294901760
    %v1814 = vsub.f32 %v1812, %v1813
    %v1815 = vand.u32 %v1814, 4294901760
    %1816 = vmatpush1.msra.mxu0 %v1815
    %1817 = vmatprep.subr.mxu0 0.0
    %v1818 = vand.u32 %v1488, 4294901760
    %v1819 = vsub.f32 %v1488, %v1818
    %v1820 = vand.u32 %v1819, 4294901760
    %v1821 = vsub.f32 %v1819, %v1820
    %v1822 = vand.u32 %v1821, 4294901760
    %1823 = vmatpush1.msra.mxu0 %v1822
    %1824 = vmatprep.subr.mxu0 0.0
    %v1825 = vand.u32 %v1487, 4294901760
    %v1826 = vsub.f32 %v1487, %v1825
    %v1827 = vand.u32 %v1826, 4294901760
    %v1828 = vsub.f32 %v1826, %v1827
    %v1829 = vand.u32 %v1828, 4294901760
    %1830 = vmatpush1.msra.mxu0 %v1829
    %1831 = vmatprep.subr.mxu0 0.0
    %v1832 = vand.u32 %v1486, 4294901760
    %v1833 = vsub.f32 %v1486, %v1832
    %v1834 = vand.u32 %v1833, 4294901760
    %v1835 = vsub.f32 %v1833, %v1834
    %v1836 = vand.u32 %v1835, 4294901760
    %1837 = vmatpush1.msra.mxu0 %v1836
    %1838 = vmatprep.subr.mxu0 0.0
    %v1839 = vand.u32 %v1485, 4294901760
    %v1840 = vsub.f32 %v1485, %v1839
    %v1841 = vand.u32 %v1840, 4294901760
    %v1842 = vsub.f32 %v1840, %v1841
    %v1843 = vand.u32 %v1842, 4294901760
    %1844 = vmatpush1.msra.mxu0 %v1843
    %1845 = vmatprep.subr.mxu0 0.0
    %v1846 = vand.u32 %v1484, 4294901760
    %v1847 = vsub.f32 %v1484, %v1846
    %v1848 = vand.u32 %v1847, 4294901760
    %v1849 = vsub.f32 %v1847, %v1848
    %v1850 = vand.u32 %v1849, 4294901760
    %1851 = vmatpush1.msra.mxu0 %v1850
    %1852 = vmatprep.subr.mxu0 0.0
    %v1853 = vand.u32 %v1483, 4294901760
    %v1854 = vsub.f32 %v1483, %v1853
    %v1855 = vand.u32 %v1854, 4294901760
    %v1856 = vsub.f32 %v1854, %v1855
    %v1857 = vand.u32 %v1856, 4294901760
    %1858 = vmatpush1.msra.mxu0 %v1857
    %1859 = vmatprep.subr.mxu0 0.0
    %1860 = vmatpush2.msra.mxu0 0.0
    %1861 = vmatprep.subr.mxu0 0.0
    %1862 = vmatpush2.msra.mxu0 0.0
    %1863 = vmatprep.subr.mxu0 0.0
    %1864 = vmatpush2.msra.mxu0 0.0
    %1865 = vmatprep.subr.mxu0 0.0
    %1866 = vmatpush2.msra.mxu0 0.0
    %1867 = vmatprep.subr.mxu0 0.0
    %1868 = vmatpush2.msra.mxu0 0.0
    %1869 = vmatprep.subr.mxu0 0.0
    %1870 = vmatpush2.msra.mxu0 0.0
    %1871 = vmatprep.subr.mxu0 0.0
    %1872 = vmatpush2.msra.mxu0 0.0
    %1873 = vmatprep.subr.mxu0 0.0
    %1874 = vmatpush2.msra.mxu0 0.0
    %1875 = vmatprep.subr.mxu0 0.0
    %1876 = vmatpush2.msra.mxu0 0.0
    %1877 = vmatprep.subr.mxu0 0.0
    %1878 = vmatpush2.msra.mxu0 0.0
    %1879 = vmatprep.subr.mxu0 0.0
    %1880 = vmatpush2.msra.mxu0 0.0
    %1881 = vmatprep.subr.mxu0 0.0
    %1882 = vmatpush2.msra.mxu0 0.0
    %1883 = vmatprep.subr.mxu0 0.0
    %1884 = vmatpush2.msra.mxu0 0.0
    %1885 = vmatprep.subr.mxu0 0.0
    %1886 = vmatpush2.msra.mxu0 0.0
    %1887 = vmatprep.subr.mxu0 0.0
    %1888 = vmatpush2.msra.mxu0 0.0
    %1889 = vmatprep.subr.mxu0 0.0
    %1890 = vmatpush2.msra.mxu0 0.0
    %1891 = vmatprep.mubr.f32.mxu0 0.0
    %v1892 = vand.u32 %v1495, 4294901760
    %1893 = vmatmul.mubr.f32.gmra.mxu0 %v1892
    %v1894 = vpop.f32.mrf.mxu0
    %v1895 = vadd.f32 %v1624, %v1894
    %v1896 = vpop.f32.mrf.mxu0
    %1897 = vmatprep.mubr.f32.mxu0 0.0
    %v1898 = vand.u32 %v1498, 4294901760
    %1899 = vmatmul.mubr.f32.gmra.mxu0 %v1898
    %v1900 = vpop.f32.mrf.mxu0
    %v1901 = vadd.f32 %v1634, %v1900
    %v1902 = vpop.f32.mrf.mxu0
    %1903 = vmatprep.mubr.f32.mxu0 0.0
    %v1904 = vand.u32 %v1501, 4294901760
    %1905 = vmatmul.mubr.f32.gmra.mxu0 %v1904
    %v1906 = vpop.f32.mrf.mxu0
    %v1907 = vadd.f32 %v1644, %v1906
    %v1908 = vpop.f32.mrf.mxu0
    %1909 = vmatprep.mubr.f32.mxu0 0.0
    %v1910 = vand.u32 %v1504, 4294901760
    %1911 = vmatmul.mubr.f32.gmra.mxu0 %v1910
    %v1912 = vpop.f32.mrf.mxu0
    %v1913 = vadd.f32 %v1654, %v1912
    %v1914 = vpop.f32.mrf.mxu0
    %1915 = vmatprep.mubr.f32.mxu0 0.0
    %v1916 = vand.u32 %v1507, 4294901760
    %1917 = vmatmul.mubr.f32.gmra.mxu0 %v1916
    %v1918 = vpop.f32.mrf.mxu0
    %v1919 = vadd.f32 %v1664, %v1918
    %v1920 = vpop.f32.mrf.mxu0
    %1921 = vmatprep.mubr.f32.mxu0 0.0
    %v1922 = vand.u32 %v1510, 4294901760
    %1923 = vmatmul.mubr.f32.gmra.mxu0 %v1922
    %v1924 = vpop.f32.mrf.mxu0
    %v1925 = vadd.f32 %v1674, %v1924
    %v1926 = vpop.f32.mrf.mxu0
    %1927 = vmatprep.mubr.f32.mxu0 0.0
    %v1928 = vand.u32 %v1513, 4294901760
    %1929 = vmatmul.mubr.f32.gmra.mxu0 %v1928
    %v1930 = vpop.f32.mrf.mxu0
    %v1931 = vadd.f32 %v1684, %v1930
    %v1932 = vpop.f32.mrf.mxu0
    %1933 = vmatprep.mubr.f32.mxu0 0.0
    %v1934 = vand.u32 %v1516, 4294901760
    %1935 = vmatmul.mubr.f32.gmra.mxu0 %v1934
    %v1936 = vpop.f32.mrf.mxu0
    %v1937 = vadd.f32 %v1694, %v1936
    %v1938 = vpop.f32.mrf.mxu0
    %1939 = vmatprep.mubr.f32.mxu0 0.0
    %v1940 = vand.u32 %v1519, 4294901760
    %1941 = vmatmul.mubr.f32.gmra.mxu0 %v1940
    %v1942 = vpop.f32.mrf.mxu0
    %v1943 = vadd.f32 %v1704, %v1942
    %v1944 = vpop.f32.mrf.mxu0
    %1945 = vmatprep.mubr.f32.mxu0 0.0
    %v1946 = vand.u32 %v1522, 4294901760
    %1947 = vmatmul.mubr.f32.gmra.mxu0 %v1946
    %v1948 = vpop.f32.mrf.mxu0
    %v1949 = vadd.f32 %v1714, %v1948
    %v1950 = vpop.f32.mrf.mxu0
    %1951 = vmatprep.mubr.f32.mxu0 0.0
    %v1952 = vand.u32 %v1525, 4294901760
    %1953 = vmatmul.mubr.f32.gmra.mxu0 %v1952
    %v1954 = vpop.f32.mrf.mxu0
    %v1955 = vadd.f32 %v1724, %v1954
    %v1956 = vpop.f32.mrf.mxu0
    %1957 = vmatprep.mubr.f32.mxu0 0.0
    %v1958 = vand.u32 %v1528, 4294901760
    %1959 = vmatmul.mubr.f32.gmra.mxu0 %v1958
    %v1960 = vpop.f32.mrf.mxu0
    %v1961 = vadd.f32 %v1734, %v1960
    %v1962 = vpop.f32.mrf.mxu0
    %1963 = vmatprep.mubr.f32.mxu0 0.0
    %v1964 = vand.u32 %v1531, 4294901760
    %1965 = vmatmul.mubr.f32.gmra.mxu0 %v1964
    %v1966 = vpop.f32.mrf.mxu0
    %v1967 = vadd.f32 %v1744, %v1966
    %v1968 = vpop.f32.mrf.mxu0
    %1969 = vmatprep.mubr.f32.mxu0 0.0
    %v1970 = vand.u32 %v1534, 4294901760
    %1971 = vmatmul.mubr.f32.gmra.mxu0 %v1970
    %v1972 = vpop.f32.mrf.mxu0
    %v1973 = vadd.f32 %v1754, %v1972
    %v1974 = vpop.f32.mrf.mxu0
    %1975 = vmatprep.mubr.f32.mxu0 0.0
    %v1976 = vand.u32 %v1537, 4294901760
    %1977 = vmatmul.mubr.f32.gmra.mxu0 %v1976
    %v1978 = vpop.f32.mrf.mxu0
    %v1979 = vadd.f32 %v1764, %v1978
    %v1980 = vpop.f32.mrf.mxu0
    %1981 = vmatprep.mubr.f32.mxu0 0.0
    %v1982 = vand.u32 %v1540, 4294901760
    %1983 = vmatmul.mubr.f32.gmra.mxu0 %v1982
    %v1984 = vpop.f32.mrf.mxu0
    %v1985 = vadd.f32 %v1774, %v1984
    %v1986 = vpop.f32.mrf.mxu0
    %1987 = vdwg.mxu0
    %1988 = vmatprep.subr.mxu0 0.0
    %1989 = vmatpush1.msra.mxu0 0.0
    %1990 = vmatprep.subr.mxu0 0.0
    %1991 = vmatpush1.msra.mxu0 0.0
    %1992 = vmatprep.subr.mxu0 0.0
    %1993 = vmatpush1.msra.mxu0 0.0
    %1994 = vmatprep.subr.mxu0 0.0
    %1995 = vmatpush1.msra.mxu0 0.0
    %1996 = vmatprep.subr.mxu0 0.0
    %1997 = vmatpush1.msra.mxu0 0.0
    %1998 = vmatprep.subr.mxu0 0.0
    %1999 = vmatpush1.msra.mxu0 0.0
    %2000 = vmatprep.subr.mxu0 0.0
    %v2001 = vand.u32 %v1492, 4294901760
    %v2002 = vsub.f32 %v1492, %v2001
    %2003 = vmatpush1.msra.mxu0 %v2002
    %2004 = vmatprep.subr.mxu0 0.0
    %v2005 = vand.u32 %v1491, 4294901760
    %v2006 = vsub.f32 %v1491, %v2005
    %2007 = vmatpush1.msra.mxu0 %v2006
    %2008 = vmatprep.subr.mxu0 0.0
    %v2009 = vand.u32 %v1490, 4294901760
    %v2010 = vsub.f32 %v1490, %v2009
    %2011 = vmatpush1.msra.mxu0 %v2010
    %2012 = vmatprep.subr.mxu0 0.0
    %v2013 = vand.u32 %v1489, 4294901760
    %v2014 = vsub.f32 %v1489, %v2013
    %2015 = vmatpush1.msra.mxu0 %v2014
    %2016 = vmatprep.subr.mxu0 0.0
    %v2017 = vand.u32 %v1488, 4294901760
    %v2018 = vsub.f32 %v1488, %v2017
    %2019 = vmatpush1.msra.mxu0 %v2018
    %2020 = vmatprep.subr.mxu0 0.0
    %v2021 = vand.u32 %v1487, 4294901760
    %v2022 = vsub.f32 %v1487, %v2021
    %2023 = vmatpush1.msra.mxu0 %v2022
    %2024 = vmatprep.subr.mxu0 0.0
    %v2025 = vand.u32 %v1486, 4294901760
    %v2026 = vsub.f32 %v1486, %v2025
    %2027 = vmatpush1.msra.mxu0 %v2026
    %2028 = vmatprep.subr.mxu0 0.0
    %v2029 = vand.u32 %v1485, 4294901760
    %v2030 = vsub.f32 %v1485, %v2029
    %2031 = vmatpush1.msra.mxu0 %v2030
    %2032 = vmatprep.subr.mxu0 0.0
    %v2033 = vand.u32 %v1484, 4294901760
    %v2034 = vsub.f32 %v1484, %v2033
    %2035 = vmatpush1.msra.mxu0 %v2034
    %2036 = vmatprep.subr.mxu0 0.0
    %v2037 = vand.u32 %v1483, 4294901760
    %v2038 = vsub.f32 %v1483, %v2037
    %2039 = vmatpush1.msra.mxu0 %v2038
    %2040 = vmatprep.subr.mxu0 0.0
    %2041 = vmatpush2.msra.mxu0 0.0
    %2042 = vmatprep.subr.mxu0 0.0
    %2043 = vmatpush2.msra.mxu0 0.0
    %2044 = vmatprep.subr.mxu0 0.0
    %2045 = vmatpush2.msra.mxu0 0.0
    %2046 = vmatprep.subr.mxu0 0.0
    %2047 = vmatpush2.msra.mxu0 0.0
    %2048 = vmatprep.subr.mxu0 0.0
    %2049 = vmatpush2.msra.mxu0 0.0
    %2050 = vmatprep.subr.mxu0 0.0
    %2051 = vmatpush2.msra.mxu0 0.0
    %2052 = vmatprep.subr.mxu0 0.0
    %2053 = vmatpush2.msra.mxu0 0.0
    %2054 = vmatprep.subr.mxu0 0.0
    %2055 = vmatpush2.msra.mxu0 0.0
    %2056 = vmatprep.subr.mxu0 0.0
    %2057 = vmatpush2.msra.mxu0 0.0
    %2058 = vmatprep.subr.mxu0 0.0
    %2059 = vmatpush2.msra.mxu0 0.0
    %2060 = vmatprep.subr.mxu0 0.0
    %2061 = vmatpush2.msra.mxu0 0.0
    %2062 = vmatprep.subr.mxu0 0.0
    %2063 = vmatpush2.msra.mxu0 0.0
    %2064 = vmatprep.subr.mxu0 0.0
    %2065 = vmatpush2.msra.mxu0 0.0
    %2066 = vmatprep.subr.mxu0 0.0
    %2067 = vmatpush2.msra.mxu0 0.0
    %2068 = vmatprep.subr.mxu0 0.0
    %2069 = vmatpush2.msra.mxu0 0.0
    %2070 = vmatprep.subr.mxu0 0.0
    %2071 = vmatpush2.msra.mxu0 0.0
    %2072 = vmatprep.mubr.f32.mxu0 0.0
    %v2073 = vand.u32 %v1495, 4294901760
    %v2074 = vsub.f32 %v1495, %v2073
    %2075 = vmatmul.mubr.f32.gmra.mxu0 %v2074
    %v2076 = vpop.f32.mrf.mxu0
    %v2077 = vadd.f32 %v1895, %v2076
    %v2078 = vpop.f32.mrf.mxu0
    %2079 = vmatprep.mubr.f32.mxu0 0.0
    %v2080 = vand.u32 %v1498, 4294901760
    %v2081 = vsub.f32 %v1498, %v2080
    %2082 = vmatmul.mubr.f32.gmra.mxu0 %v2081
    %v2083 = vpop.f32.mrf.mxu0
    %v2084 = vadd.f32 %v1901, %v2083
    %v2085 = vpop.f32.mrf.mxu0
    %2086 = vmatprep.mubr.f32.mxu0 0.0
    %v2087 = vand.u32 %v1501, 4294901760
    %v2088 = vsub.f32 %v1501, %v2087
    %2089 = vmatmul.mubr.f32.gmra.mxu0 %v2088
    %v2090 = vpop.f32.mrf.mxu0
    %v2091 = vadd.f32 %v1907, %v2090
    %v2092 = vpop.f32.mrf.mxu0
    %2093 = vmatprep.mubr.f32.mxu0 0.0
    %v2094 = vand.u32 %v1504, 4294901760
    %v2095 = vsub.f32 %v1504, %v2094
    %2096 = vmatmul.mubr.f32.gmra.mxu0 %v2095
    %v2097 = vpop.f32.mrf.mxu0
    %v2098 = vadd.f32 %v1913, %v2097
    %v2099 = vpop.f32.mrf.mxu0
    %2100 = vmatprep.mubr.f32.mxu0 0.0
    %v2101 = vand.u32 %v1507, 4294901760
    %v2102 = vsub.f32 %v1507, %v2101
    %2103 = vmatmul.mubr.f32.gmra.mxu0 %v2102
    %v2104 = vpop.f32.mrf.mxu0
    %v2105 = vadd.f32 %v1919, %v2104
    %v2106 = vpop.f32.mrf.mxu0
    %2107 = vmatprep.mubr.f32.mxu0 0.0
    %v2108 = vand.u32 %v1510, 4294901760
    %v2109 = vsub.f32 %v1510, %v2108
    %2110 = vmatmul.mubr.f32.gmra.mxu0 %v2109
    %v2111 = vpop.f32.mrf.mxu0
    %v2112 = vadd.f32 %v1925, %v2111
    %v2113 = vpop.f32.mrf.mxu0
    %2114 = vmatprep.mubr.f32.mxu0 0.0
    %v2115 = vand.u32 %v1513, 4294901760
    %v2116 = vsub.f32 %v1513, %v2115
    %2117 = vmatmul.mubr.f32.gmra.mxu0 %v2116
    %v2118 = vpop.f32.mrf.mxu0
    %v2119 = vadd.f32 %v1931, %v2118
    %v2120 = vpop.f32.mrf.mxu0
    %2121 = vmatprep.mubr.f32.mxu0 0.0
    %v2122 = vand.u32 %v1516, 4294901760
    %v2123 = vsub.f32 %v1516, %v2122
    %2124 = vmatmul.mubr.f32.gmra.mxu0 %v2123
    %v2125 = vpop.f32.mrf.mxu0
    %v2126 = vadd.f32 %v1937, %v2125
    %v2127 = vpop.f32.mrf.mxu0
    %2128 = vmatprep.mubr.f32.mxu0 0.0
    %v2129 = vand.u32 %v1519, 4294901760
    %v2130 = vsub.f32 %v1519, %v2129
    %2131 = vmatmul.mubr.f32.gmra.mxu0 %v2130
    %v2132 = vpop.f32.mrf.mxu0
    %v2133 = vadd.f32 %v1943, %v2132
    %v2134 = vpop.f32.mrf.mxu0
    %2135 = vmatprep.mubr.f32.mxu0 0.0
    %v2136 = vand.u32 %v1522, 4294901760
    %v2137 = vsub.f32 %v1522, %v2136
    %2138 = vmatmul.mubr.f32.gmra.mxu0 %v2137
    %v2139 = vpop.f32.mrf.mxu0
    %v2140 = vadd.f32 %v1949, %v2139
    %v2141 = vpop.f32.mrf.mxu0
    %2142 = vmatprep.mubr.f32.mxu0 0.0
    %v2143 = vand.u32 %v1525, 4294901760
    %v2144 = vsub.f32 %v1525, %v2143
    %2145 = vmatmul.mubr.f32.gmra.mxu0 %v2144
    %v2146 = vpop.f32.mrf.mxu0
    %v2147 = vadd.f32 %v1955, %v2146
    %v2148 = vpop.f32.mrf.mxu0
    %2149 = vmatprep.mubr.f32.mxu0 0.0
    %v2150 = vand.u32 %v1528, 4294901760
    %v2151 = vsub.f32 %v1528, %v2150
    %2152 = vmatmul.mubr.f32.gmra.mxu0 %v2151
    %v2153 = vpop.f32.mrf.mxu0
    %v2154 = vadd.f32 %v1961, %v2153
    %v2155 = vpop.f32.mrf.mxu0
    %2156 = vmatprep.mubr.f32.mxu0 0.0
    %v2157 = vand.u32 %v1531, 4294901760
    %v2158 = vsub.f32 %v1531, %v2157
    %2159 = vmatmul.mubr.f32.gmra.mxu0 %v2158
    %v2160 = vpop.f32.mrf.mxu0
    %v2161 = vadd.f32 %v1967, %v2160
    %v2162 = vpop.f32.mrf.mxu0
    %2163 = vmatprep.mubr.f32.mxu0 0.0
    %v2164 = vand.u32 %v1534, 4294901760
    %v2165 = vsub.f32 %v1534, %v2164
    %2166 = vmatmul.mubr.f32.gmra.mxu0 %v2165
    %v2167 = vpop.f32.mrf.mxu0
    %v2168 = vadd.f32 %v1973, %v2167
    %v2169 = vpop.f32.mrf.mxu0
    %2170 = vmatprep.mubr.f32.mxu0 0.0
    %v2171 = vand.u32 %v1537, 4294901760
    %v2172 = vsub.f32 %v1537, %v2171
    %2173 = vmatmul.mubr.f32.gmra.mxu0 %v2172
    %v2174 = vpop.f32.mrf.mxu0
    %v2175 = vadd.f32 %v1979, %v2174
    %v2176 = vpop.f32.mrf.mxu0
    %2177 = vmatprep.mubr.f32.mxu0 0.0
    %v2178 = vand.u32 %v1540, 4294901760
    %v2179 = vsub.f32 %v1540, %v2178
    %2180 = vmatmul.mubr.f32.gmra.mxu0 %v2179
    %v2181 = vpop.f32.mrf.mxu0
    %v2182 = vadd.f32 %v1985, %v2181
    %v2183 = vpop.f32.mrf.mxu0
    %2184 = vdwg.mxu0
    %2185 = vmatprep.subr.mxu0 0.0
    %2186 = vmatpush1.msra.mxu0 0.0
    %2187 = vmatprep.subr.mxu0 0.0
    %2188 = vmatpush1.msra.mxu0 0.0
    %2189 = vmatprep.subr.mxu0 0.0
    %2190 = vmatpush1.msra.mxu0 0.0
    %2191 = vmatprep.subr.mxu0 0.0
    %2192 = vmatpush1.msra.mxu0 0.0
    %2193 = vmatprep.subr.mxu0 0.0
    %2194 = vmatpush1.msra.mxu0 0.0
    %2195 = vmatprep.subr.mxu0 0.0
    %2196 = vmatpush1.msra.mxu0 0.0
    %2197 = vmatprep.subr.mxu0 0.0
    %v2198 = vand.u32 %v1492, 4294901760
    %2199 = vmatpush1.msra.mxu0 %v2198
    %2200 = vmatprep.subr.mxu0 0.0
    %v2201 = vand.u32 %v1491, 4294901760
    %2202 = vmatpush1.msra.mxu0 %v2201
    %2203 = vmatprep.subr.mxu0 0.0
    %v2204 = vand.u32 %v1490, 4294901760
    %2205 = vmatpush1.msra.mxu0 %v2204
    %2206 = vmatprep.subr.mxu0 0.0
    %v2207 = vand.u32 %v1489, 4294901760
    %2208 = vmatpush1.msra.mxu0 %v2207
    %2209 = vmatprep.subr.mxu0 0.0
    %v2210 = vand.u32 %v1488, 4294901760
    %2211 = vmatpush1.msra.mxu0 %v2210
    %2212 = vmatprep.subr.mxu0 0.0
    %v2213 = vand.u32 %v1487, 4294901760
    %2214 = vmatpush1.msra.mxu0 %v2213
    %2215 = vmatprep.subr.mxu0 0.0
    %v2216 = vand.u32 %v1486, 4294901760
    %2217 = vmatpush1.msra.mxu0 %v2216
    %2218 = vmatprep.subr.mxu0 0.0
    %v2219 = vand.u32 %v1485, 4294901760
    %2220 = vmatpush1.msra.mxu0 %v2219
    %2221 = vmatprep.subr.mxu0 0.0
    %v2222 = vand.u32 %v1484, 4294901760
    %2223 = vmatpush1.msra.mxu0 %v2222
    %2224 = vmatprep.subr.mxu0 0.0
    %v2225 = vand.u32 %v1483, 4294901760
    %2226 = vmatpush1.msra.mxu0 %v2225
    %2227 = vmatprep.subr.mxu0 0.0
    %2228 = vmatpush2.msra.mxu0 0.0
    %2229 = vmatprep.subr.mxu0 0.0
    %2230 = vmatpush2.msra.mxu0 0.0
    %2231 = vmatprep.subr.mxu0 0.0
    %2232 = vmatpush2.msra.mxu0 0.0
    %2233 = vmatprep.subr.mxu0 0.0
    %2234 = vmatpush2.msra.mxu0 0.0
    %2235 = vmatprep.subr.mxu0 0.0
    %2236 = vmatpush2.msra.mxu0 0.0
    %2237 = vmatprep.subr.mxu0 0.0
    %2238 = vmatpush2.msra.mxu0 0.0
    %2239 = vmatprep.subr.mxu0 0.0
    %2240 = vmatpush2.msra.mxu0 0.0
    %2241 = vmatprep.subr.mxu0 0.0
    %2242 = vmatpush2.msra.mxu0 0.0
    %2243 = vmatprep.subr.mxu0 0.0
    %2244 = vmatpush2.msra.mxu0 0.0
    %2245 = vmatprep.subr.mxu0 0.0
    %2246 = vmatpush2.msra.mxu0 0.0
    %2247 = vmatprep.subr.mxu0 0.0
    %2248 = vmatpush2.msra.mxu0 0.0
    %2249 = vmatprep.subr.mxu0 0.0
    %2250 = vmatpush2.msra.mxu0 0.0
    %2251 = vmatprep.subr.mxu0 0.0
    %2252 = vmatpush2.msra.mxu0 0.0
    %2253 = vmatprep.subr.mxu0 0.0
    %2254 = vmatpush2.msra.mxu0 0.0
    %2255 = vmatprep.subr.mxu0 0.0
    %2256 = vmatpush2.msra.mxu0 0.0
    %2257 = vmatprep.subr.mxu0 0.0
    %2258 = vmatpush2.msra.mxu0 0.0
    %2259 = vmatprep.mubr.f32.mxu0 0.0
    %v2260 = vand.u32 %v1495, 4294901760
    %v2261 = vsub.f32 %v1495, %v2260
    %v2262 = vand.u32 %v2261, 4294901760
    %2263 = vmatmul.mubr.f32.gmra.mxu0 %v2262
    %v2264 = vpop.f32.mrf.mxu0
    %v2265 = vadd.f32 %v2077, %v2264
    %v2266 = vpop.f32.mrf.mxu0
    %2267 = vmatprep.mubr.f32.mxu0 0.0
    %v2268 = vand.u32 %v1498, 4294901760
    %v2269 = vsub.f32 %v1498, %v2268
    %v2270 = vand.u32 %v2269, 4294901760
    %2271 = vmatmul.mubr.f32.gmra.mxu0 %v2270
    %v2272 = vpop.f32.mrf.mxu0
    %v2273 = vadd.f32 %v2084, %v2272
    %v2274 = vpop.f32.mrf.mxu0
    %2275 = vmatprep.mubr.f32.mxu0 0.0
    %v2276 = vand.u32 %v1501, 4294901760
    %v2277 = vsub.f32 %v1501, %v2276
    %v2278 = vand.u32 %v2277, 4294901760
    %2279 = vmatmul.mubr.f32.gmra.mxu0 %v2278
    %v2280 = vpop.f32.mrf.mxu0
    %v2281 = vadd.f32 %v2091, %v2280
    %v2282 = vpop.f32.mrf.mxu0
    %2283 = vmatprep.mubr.f32.mxu0 0.0
    %v2284 = vand.u32 %v1504, 4294901760
    %v2285 = vsub.f32 %v1504, %v2284
    %v2286 = vand.u32 %v2285, 4294901760
    %2287 = vmatmul.mubr.f32.gmra.mxu0 %v2286
    %v2288 = vpop.f32.mrf.mxu0
    %v2289 = vadd.f32 %v2098, %v2288
    %v2290 = vpop.f32.mrf.mxu0
    %2291 = vmatprep.mubr.f32.mxu0 0.0
    %v2292 = vand.u32 %v1507, 4294901760
    %v2293 = vsub.f32 %v1507, %v2292
    %v2294 = vand.u32 %v2293, 4294901760
    %2295 = vmatmul.mubr.f32.gmra.mxu0 %v2294
    %v2296 = vpop.f32.mrf.mxu0
    %v2297 = vadd.f32 %v2105, %v2296
    %v2298 = vpop.f32.mrf.mxu0
    %2299 = vmatprep.mubr.f32.mxu0 0.0
    %v2300 = vand.u32 %v1510, 4294901760
    %v2301 = vsub.f32 %v1510, %v2300
    %v2302 = vand.u32 %v2301, 4294901760
    %2303 = vmatmul.mubr.f32.gmra.mxu0 %v2302
    %v2304 = vpop.f32.mrf.mxu0
    %v2305 = vadd.f32 %v2112, %v2304
    %v2306 = vpop.f32.mrf.mxu0
    %2307 = vmatprep.mubr.f32.mxu0 0.0
    %v2308 = vand.u32 %v1513, 4294901760
    %v2309 = vsub.f32 %v1513, %v2308
    %v2310 = vand.u32 %v2309, 4294901760
    %2311 = vmatmul.mubr.f32.gmra.mxu0 %v2310
    %v2312 = vpop.f32.mrf.mxu0
    %v2313 = vadd.f32 %v2119, %v2312
    %v2314 = vpop.f32.mrf.mxu0
    %2315 = vmatprep.mubr.f32.mxu0 0.0
    %v2316 = vand.u32 %v1516, 4294901760
    %v2317 = vsub.f32 %v1516, %v2316
    %v2318 = vand.u32 %v2317, 4294901760
    %2319 = vmatmul.mubr.f32.gmra.mxu0 %v2318
    %v2320 = vpop.f32.mrf.mxu0
    %v2321 = vadd.f32 %v2126, %v2320
    %v2322 = vpop.f32.mrf.mxu0
    %2323 = vmatprep.mubr.f32.mxu0 0.0
    %v2324 = vand.u32 %v1519, 4294901760
    %v2325 = vsub.f32 %v1519, %v2324
    %v2326 = vand.u32 %v2325, 4294901760
    %2327 = vmatmul.mubr.f32.gmra.mxu0 %v2326
    %v2328 = vpop.f32.mrf.mxu0
    %v2329 = vadd.f32 %v2133, %v2328
    %v2330 = vpop.f32.mrf.mxu0
    %2331 = vmatprep.mubr.f32.mxu0 0.0
    %v2332 = vand.u32 %v1522, 4294901760
    %v2333 = vsub.f32 %v1522, %v2332
    %v2334 = vand.u32 %v2333, 4294901760
    %2335 = vmatmul.mubr.f32.gmra.mxu0 %v2334
    %v2336 = vpop.f32.mrf.mxu0
    %v2337 = vadd.f32 %v2140, %v2336
    %v2338 = vpop.f32.mrf.mxu0
    %2339 = vmatprep.mubr.f32.mxu0 0.0
    %v2340 = vand.u32 %v1525, 4294901760
    %v2341 = vsub.f32 %v1525, %v2340
    %v2342 = vand.u32 %v2341, 4294901760
    %2343 = vmatmul.mubr.f32.gmra.mxu0 %v2342
    %v2344 = vpop.f32.mrf.mxu0
    %v2345 = vadd.f32 %v2147, %v2344
    %v2346 = vpop.f32.mrf.mxu0
    %2347 = vmatprep.mubr.f32.mxu0 0.0
    %v2348 = vand.u32 %v1528, 4294901760
    %v2349 = vsub.f32 %v1528, %v2348
    %v2350 = vand.u32 %v2349, 4294901760
    %2351 = vmatmul.mubr.f32.gmra.mxu0 %v2350
    %v2352 = vpop.f32.mrf.mxu0
    %v2353 = vadd.f32 %v2154, %v2352
    %v2354 = vpop.f32.mrf.mxu0
    %2355 = vmatprep.mubr.f32.mxu0 0.0
    %v2356 = vand.u32 %v1531, 4294901760
    %v2357 = vsub.f32 %v1531, %v2356
    %v2358 = vand.u32 %v2357, 4294901760
    %2359 = vmatmul.mubr.f32.gmra.mxu0 %v2358
    %v2360 = vpop.f32.mrf.mxu0
    %v2361 = vadd.f32 %v2161, %v2360
    %v2362 = vpop.f32.mrf.mxu0
    %2363 = vmatprep.mubr.f32.mxu0 0.0
    %v2364 = vand.u32 %v1534, 4294901760
    %v2365 = vsub.f32 %v1534, %v2364
    %v2366 = vand.u32 %v2365, 4294901760
    %2367 = vmatmul.mubr.f32.gmra.mxu0 %v2366
    %v2368 = vpop.f32.mrf.mxu0
    %v2369 = vadd.f32 %v2168, %v2368
    %v2370 = vpop.f32.mrf.mxu0
    %2371 = vmatprep.mubr.f32.mxu0 0.0
    %v2372 = vand.u32 %v1537, 4294901760
    %v2373 = vsub.f32 %v1537, %v2372
    %v2374 = vand.u32 %v2373, 4294901760
    %2375 = vmatmul.mubr.f32.gmra.mxu0 %v2374
    %v2376 = vpop.f32.mrf.mxu0
    %v2377 = vadd.f32 %v2175, %v2376
    %v2378 = vpop.f32.mrf.mxu0
    %2379 = vmatprep.mubr.f32.mxu0 0.0
    %v2380 = vand.u32 %v1540, 4294901760
    %v2381 = vsub.f32 %v1540, %v2380
    %v2382 = vand.u32 %v2381, 4294901760
    %2383 = vmatmul.mubr.f32.gmra.mxu0 %v2382
    %v2384 = vpop.f32.mrf.mxu0
    %v2385 = vadd.f32 %v2182, %v2384
    %v2386 = vpop.f32.mrf.mxu0
    %2387 = vdwg.mxu0
    %2388 = vmatprep.subr.mxu0 0.0
    %2389 = vmatpush1.msra.mxu0 0.0
    %2390 = vmatprep.subr.mxu0 0.0
    %2391 = vmatpush1.msra.mxu0 0.0
    %2392 = vmatprep.subr.mxu0 0.0
    %2393 = vmatpush1.msra.mxu0 0.0
    %2394 = vmatprep.subr.mxu0 0.0
    %2395 = vmatpush1.msra.mxu0 0.0
    %2396 = vmatprep.subr.mxu0 0.0
    %2397 = vmatpush1.msra.mxu0 0.0
    %2398 = vmatprep.subr.mxu0 0.0
    %2399 = vmatpush1.msra.mxu0 0.0
    %2400 = vmatprep.subr.mxu0 0.0
    %v2401 = vand.u32 %v1492, 4294901760
    %v2402 = vsub.f32 %v1492, %v2401
    %v2403 = vand.u32 %v2402, 4294901760
    %2404 = vmatpush1.msra.mxu0 %v2403
    %2405 = vmatprep.subr.mxu0 0.0
    %v2406 = vand.u32 %v1491, 4294901760
    %v2407 = vsub.f32 %v1491, %v2406
    %v2408 = vand.u32 %v2407, 4294901760
    %2409 = vmatpush1.msra.mxu0 %v2408
    %2410 = vmatprep.subr.mxu0 0.0
    %v2411 = vand.u32 %v1490, 4294901760
    %v2412 = vsub.f32 %v1490, %v2411
    %v2413 = vand.u32 %v2412, 4294901760
    %2414 = vmatpush1.msra.mxu0 %v2413
    %2415 = vmatprep.subr.mxu0 0.0
    %v2416 = vand.u32 %v1489, 4294901760
    %v2417 = vsub.f32 %v1489, %v2416
    %v2418 = vand.u32 %v2417, 4294901760
    %2419 = vmatpush1.msra.mxu0 %v2418
    %2420 = vmatprep.subr.mxu0 0.0
    %v2421 = vand.u32 %v1488, 4294901760
    %v2422 = vsub.f32 %v1488, %v2421
    %v2423 = vand.u32 %v2422, 4294901760
    %2424 = vmatpush1.msra.mxu0 %v2423
    %2425 = vmatprep.subr.mxu0 0.0
    %v2426 = vand.u32 %v1487, 4294901760
    %v2427 = vsub.f32 %v1487, %v2426
    %v2428 = vand.u32 %v2427, 4294901760
    %2429 = vmatpush1.msra.mxu0 %v2428
    %2430 = vmatprep.subr.mxu0 0.0
    %v2431 = vand.u32 %v1486, 4294901760
    %v2432 = vsub.f32 %v1486, %v2431
    %v2433 = vand.u32 %v2432, 4294901760
    %2434 = vmatpush1.msra.mxu0 %v2433
    %2435 = vmatprep.subr.mxu0 0.0
    %v2436 = vand.u32 %v1485, 4294901760
    %v2437 = vsub.f32 %v1485, %v2436
    %v2438 = vand.u32 %v2437, 4294901760
    %2439 = vmatpush1.msra.mxu0 %v2438
    %2440 = vmatprep.subr.mxu0 0.0
    %v2441 = vand.u32 %v1484, 4294901760
    %v2442 = vsub.f32 %v1484, %v2441
    %v2443 = vand.u32 %v2442, 4294901760
    %2444 = vmatpush1.msra.mxu0 %v2443
    %2445 = vmatprep.subr.mxu0 0.0
    %v2446 = vand.u32 %v1483, 4294901760
    %v2447 = vsub.f32 %v1483, %v2446
    %v2448 = vand.u32 %v2447, 4294901760
    %2449 = vmatpush1.msra.mxu0 %v2448
    %2450 = vmatprep.subr.mxu0 0.0
    %2451 = vmatpush2.msra.mxu0 0.0
    %2452 = vmatprep.subr.mxu0 0.0
    %2453 = vmatpush2.msra.mxu0 0.0
    %2454 = vmatprep.subr.mxu0 0.0
    %2455 = vmatpush2.msra.mxu0 0.0
    %2456 = vmatprep.subr.mxu0 0.0
    %2457 = vmatpush2.msra.mxu0 0.0
    %2458 = vmatprep.subr.mxu0 0.0
    %2459 = vmatpush2.msra.mxu0 0.0
    %2460 = vmatprep.subr.mxu0 0.0
    %2461 = vmatpush2.msra.mxu0 0.0
    %2462 = vmatprep.subr.mxu0 0.0
    %2463 = vmatpush2.msra.mxu0 0.0
    %2464 = vmatprep.subr.mxu0 0.0
    %2465 = vmatpush2.msra.mxu0 0.0
    %2466 = vmatprep.subr.mxu0 0.0
    %2467 = vmatpush2.msra.mxu0 0.0
    %2468 = vmatprep.subr.mxu0 0.0
    %2469 = vmatpush2.msra.mxu0 0.0
    %2470 = vmatprep.subr.mxu0 0.0
    %2471 = vmatpush2.msra.mxu0 0.0
    %2472 = vmatprep.subr.mxu0 0.0
    %2473 = vmatpush2.msra.mxu0 0.0
    %2474 = vmatprep.subr.mxu0 0.0
    %2475 = vmatpush2.msra.mxu0 0.0
    %2476 = vmatprep.subr.mxu0 0.0
    %2477 = vmatpush2.msra.mxu0 0.0
    %2478 = vmatprep.subr.mxu0 0.0
    %2479 = vmatpush2.msra.mxu0 0.0
    %2480 = vmatprep.subr.mxu0 0.0
    %2481 = vmatpush2.msra.mxu0 0.0
    %2482 = vmatprep.mubr.f32.mxu0 0.0
    %v2483 = vand.u32 %v1495, 4294901760
    %2484 = vmatmul.mubr.f32.gmra.mxu0 %v2483
    %v2485 = vpop.f32.mrf.mxu0
    %v2486 = vadd.f32 %v2265, %v2485
    %v2487 = vpop.f32.mrf.mxu0
    %2488 = vmatprep.mubr.f32.mxu0 0.0
    %v2489 = vand.u32 %v1498, 4294901760
    %2490 = vmatmul.mubr.f32.gmra.mxu0 %v2489
    %v2491 = vpop.f32.mrf.mxu0
    %v2492 = vadd.f32 %v2273, %v2491
    %v2493 = vpop.f32.mrf.mxu0
    %2494 = vmatprep.mubr.f32.mxu0 0.0
    %v2495 = vand.u32 %v1501, 4294901760
    %2496 = vmatmul.mubr.f32.gmra.mxu0 %v2495
    %v2497 = vpop.f32.mrf.mxu0
    %v2498 = vadd.f32 %v2281, %v2497
    %v2499 = vpop.f32.mrf.mxu0
    %2500 = vmatprep.mubr.f32.mxu0 0.0
    %v2501 = vand.u32 %v1504, 4294901760
    %2502 = vmatmul.mubr.f32.gmra.mxu0 %v2501
    %v2503 = vpop.f32.mrf.mxu0
    %v2504 = vadd.f32 %v2289, %v2503
    %v2505 = vpop.f32.mrf.mxu0
    %2506 = vmatprep.mubr.f32.mxu0 0.0
    %v2507 = vand.u32 %v1507, 4294901760
    %2508 = vmatmul.mubr.f32.gmra.mxu0 %v2507
    %v2509 = vpop.f32.mrf.mxu0
    %v2510 = vadd.f32 %v2297, %v2509
    %v2511 = vpop.f32.mrf.mxu0
    %2512 = vmatprep.mubr.f32.mxu0 0.0
    %v2513 = vand.u32 %v1510, 4294901760
    %2514 = vmatmul.mubr.f32.gmra.mxu0 %v2513
    %v2515 = vpop.f32.mrf.mxu0
    %v2516 = vadd.f32 %v2305, %v2515
    %v2517 = vpop.f32.mrf.mxu0
    %2518 = vmatprep.mubr.f32.mxu0 0.0
    %v2519 = vand.u32 %v1513, 4294901760
    %2520 = vmatmul.mubr.f32.gmra.mxu0 %v2519
    %v2521 = vpop.f32.mrf.mxu0
    %v2522 = vadd.f32 %v2313, %v2521
    %v2523 = vpop.f32.mrf.mxu0
    %2524 = vmatprep.mubr.f32.mxu0 0.0
    %v2525 = vand.u32 %v1516, 4294901760
    %2526 = vmatmul.mubr.f32.gmra.mxu0 %v2525
    %v2527 = vpop.f32.mrf.mxu0
    %v2528 = vadd.f32 %v2321, %v2527
    %v2529 = vpop.f32.mrf.mxu0
    %2530 = vmatprep.mubr.f32.mxu0 0.0
    %v2531 = vand.u32 %v1519, 4294901760
    %2532 = vmatmul.mubr.f32.gmra.mxu0 %v2531
    %v2533 = vpop.f32.mrf.mxu0
    %v2534 = vadd.f32 %v2329, %v2533
    %v2535 = vpop.f32.mrf.mxu0
    %2536 = vmatprep.mubr.f32.mxu0 0.0
    %v2537 = vand.u32 %v1522, 4294901760
    %2538 = vmatmul.mubr.f32.gmra.mxu0 %v2537
    %v2539 = vpop.f32.mrf.mxu0
    %v2540 = vadd.f32 %v2337, %v2539
    %v2541 = vpop.f32.mrf.mxu0
    %2542 = vmatprep.mubr.f32.mxu0 0.0
    %v2543 = vand.u32 %v1525, 4294901760
    %2544 = vmatmul.mubr.f32.gmra.mxu0 %v2543
    %v2545 = vpop.f32.mrf.mxu0
    %v2546 = vadd.f32 %v2345, %v2545
    %v2547 = vpop.f32.mrf.mxu0
    %2548 = vmatprep.mubr.f32.mxu0 0.0
    %v2549 = vand.u32 %v1528, 4294901760
    %2550 = vmatmul.mubr.f32.gmra.mxu0 %v2549
    %v2551 = vpop.f32.mrf.mxu0
    %v2552 = vadd.f32 %v2353, %v2551
    %v2553 = vpop.f32.mrf.mxu0
    %2554 = vmatprep.mubr.f32.mxu0 0.0
    %v2555 = vand.u32 %v1531, 4294901760
    %2556 = vmatmul.mubr.f32.gmra.mxu0 %v2555
    %v2557 = vpop.f32.mrf.mxu0
    %v2558 = vadd.f32 %v2361, %v2557
    %v2559 = vpop.f32.mrf.mxu0
    %2560 = vmatprep.mubr.f32.mxu0 0.0
    %v2561 = vand.u32 %v1534, 4294901760
    %2562 = vmatmul.mubr.f32.gmra.mxu0 %v2561
    %v2563 = vpop.f32.mrf.mxu0
    %v2564 = vadd.f32 %v2369, %v2563
    %v2565 = vpop.f32.mrf.mxu0
    %2566 = vmatprep.mubr.f32.mxu0 0.0
    %v2567 = vand.u32 %v1537, 4294901760
    %2568 = vmatmul.mubr.f32.gmra.mxu0 %v2567
    %v2569 = vpop.f32.mrf.mxu0
    %v2570 = vadd.f32 %v2377, %v2569
    %v2571 = vpop.f32.mrf.mxu0
    %2572 = vmatprep.mubr.f32.mxu0 0.0
    %v2573 = vand.u32 %v1540, 4294901760
    %2574 = vmatmul.mubr.f32.gmra.mxu0 %v2573
    %v2575 = vpop.f32.mrf.mxu0
    %v2576 = vadd.f32 %v2385, %v2575
    %v2577 = vpop.f32.mrf.mxu0
    %2578 = vdwg.mxu0
    %2579 = vmatprep.subr.mxu0 0.0
    %2580 = vmatpush1.msra.mxu0 0.0
    %2581 = vmatprep.subr.mxu0 0.0
    %2582 = vmatpush1.msra.mxu0 0.0
    %2583 = vmatprep.subr.mxu0 0.0
    %2584 = vmatpush1.msra.mxu0 0.0
    %2585 = vmatprep.subr.mxu0 0.0
    %2586 = vmatpush1.msra.mxu0 0.0
    %2587 = vmatprep.subr.mxu0 0.0
    %2588 = vmatpush1.msra.mxu0 0.0
    %2589 = vmatprep.subr.mxu0 0.0
    %2590 = vmatpush1.msra.mxu0 0.0
    %2591 = vmatprep.subr.mxu0 0.0
    %v2592 = vand.u32 %v1492, 4294901760
    %2593 = vmatpush1.msra.mxu0 %v2592
    %2594 = vmatprep.subr.mxu0 0.0
    %v2595 = vand.u32 %v1491, 4294901760
    %2596 = vmatpush1.msra.mxu0 %v2595
    %2597 = vmatprep.subr.mxu0 0.0
    %v2598 = vand.u32 %v1490, 4294901760
    %2599 = vmatpush1.msra.mxu0 %v2598
    %2600 = vmatprep.subr.mxu0 0.0
    %v2601 = vand.u32 %v1489, 4294901760
    %2602 = vmatpush1.msra.mxu0 %v2601
    %2603 = vmatprep.subr.mxu0 0.0
    %v2604 = vand.u32 %v1488, 4294901760
    %2605 = vmatpush1.msra.mxu0 %v2604
    %2606 = vmatprep.subr.mxu0 0.0
    %v2607 = vand.u32 %v1487, 4294901760
    %2608 = vmatpush1.msra.mxu0 %v2607
    %2609 = vmatprep.subr.mxu0 0.0
    %v2610 = vand.u32 %v1486, 4294901760
    %2611 = vmatpush1.msra.mxu0 %v2610
    %2612 = vmatprep.subr.mxu0 0.0
    %v2613 = vand.u32 %v1485, 4294901760
    %2614 = vmatpush1.msra.mxu0 %v2613
    %2615 = vmatprep.subr.mxu0 0.0
    %v2616 = vand.u32 %v1484, 4294901760
    %2617 = vmatpush1.msra.mxu0 %v2616
    %2618 = vmatprep.subr.mxu0 0.0
    %v2619 = vand.u32 %v1483, 4294901760
    %2620 = vmatpush1.msra.mxu0 %v2619
    %2621 = vmatprep.subr.mxu0 0.0
    %2622 = vmatpush2.msra.mxu0 0.0
    %2623 = vmatprep.subr.mxu0 0.0
    %2624 = vmatpush2.msra.mxu0 0.0
    %2625 = vmatprep.subr.mxu0 0.0
    %2626 = vmatpush2.msra.mxu0 0.0
    %2627 = vmatprep.subr.mxu0 0.0
    %2628 = vmatpush2.msra.mxu0 0.0
    %2629 = vmatprep.subr.mxu0 0.0
    %2630 = vmatpush2.msra.mxu0 0.0
    %2631 = vmatprep.subr.mxu0 0.0
    %2632 = vmatpush2.msra.mxu0 0.0
    %2633 = vmatprep.subr.mxu0 0.0
    %2634 = vmatpush2.msra.mxu0 0.0
    %2635 = vmatprep.subr.mxu0 0.0
    %2636 = vmatpush2.msra.mxu0 0.0
    %2637 = vmatprep.subr.mxu0 0.0
    %2638 = vmatpush2.msra.mxu0 0.0
    %2639 = vmatprep.subr.mxu0 0.0
    %2640 = vmatpush2.msra.mxu0 0.0
    %2641 = vmatprep.subr.mxu0 0.0
    %2642 = vmatpush2.msra.mxu0 0.0
    %2643 = vmatprep.subr.mxu0 0.0
    %2644 = vmatpush2.msra.mxu0 0.0
    %2645 = vmatprep.subr.mxu0 0.0
    %2646 = vmatpush2.msra.mxu0 0.0
    %2647 = vmatprep.subr.mxu0 0.0
    %2648 = vmatpush2.msra.mxu0 0.0
    %2649 = vmatprep.subr.mxu0 0.0
    %2650 = vmatpush2.msra.mxu0 0.0
    %2651 = vmatprep.subr.mxu0 0.0
    %2652 = vmatpush2.msra.mxu0 0.0
    %2653 = vmatprep.mubr.f32.mxu0 0.0
    %v2654 = vand.u32 %v1495, 4294901760
    %2655 = vmatmul.mubr.f32.gmra.mxu0 %v2654
    %v2656 = vpop.f32.mrf.mxu0
    %v2657 = vadd.f32 %v2486, %v2656
    %v2658 = vpop.f32.mrf.mxu0
    %2659 = vmatprep.mubr.f32.mxu0 0.0
    %v2660 = vand.u32 %v1498, 4294901760
    %2661 = vmatmul.mubr.f32.gmra.mxu0 %v2660
    %v2662 = vpop.f32.mrf.mxu0
    %v2663 = vadd.f32 %v2492, %v2662
    %v2664 = vpop.f32.mrf.mxu0
    %2665 = vmatprep.mubr.f32.mxu0 0.0
    %v2666 = vand.u32 %v1501, 4294901760
    %2667 = vmatmul.mubr.f32.gmra.mxu0 %v2666
    %v2668 = vpop.f32.mrf.mxu0
    %v2669 = vadd.f32 %v2498, %v2668
    %v2670 = vpop.f32.mrf.mxu0
    %2671 = vmatprep.mubr.f32.mxu0 0.0
    %v2672 = vand.u32 %v1504, 4294901760
    %2673 = vmatmul.mubr.f32.gmra.mxu0 %v2672
    %v2674 = vpop.f32.mrf.mxu0
    %v2675 = vadd.f32 %v2504, %v2674
    %v2676 = vpop.f32.mrf.mxu0
    %2677 = vmatprep.mubr.f32.mxu0 0.0
    %v2678 = vand.u32 %v1507, 4294901760
    %2679 = vmatmul.mubr.f32.gmra.mxu0 %v2678
    %v2680 = vpop.f32.mrf.mxu0
    %v2681 = vadd.f32 %v2510, %v2680
    %v2682 = vpop.f32.mrf.mxu0
    %2683 = vmatprep.mubr.f32.mxu0 0.0
    %v2684 = vand.u32 %v1510, 4294901760
    %2685 = vmatmul.mubr.f32.gmra.mxu0 %v2684
    %v2686 = vpop.f32.mrf.mxu0
    %v2687 = vadd.f32 %v2516, %v2686
    %v2688 = vpop.f32.mrf.mxu0
    %2689 = vmatprep.mubr.f32.mxu0 0.0
    %v2690 = vand.u32 %v1513, 4294901760
    %2691 = vmatmul.mubr.f32.gmra.mxu0 %v2690
    %v2692 = vpop.f32.mrf.mxu0
    %v2693 = vadd.f32 %v2522, %v2692
    %v2694 = vpop.f32.mrf.mxu0
    %2695 = vmatprep.mubr.f32.mxu0 0.0
    %v2696 = vand.u32 %v1516, 4294901760
    %2697 = vmatmul.mubr.f32.gmra.mxu0 %v2696
    %v2698 = vpop.f32.mrf.mxu0
    %v2699 = vadd.f32 %v2528, %v2698
    %v2700 = vpop.f32.mrf.mxu0
    %2701 = vmatprep.mubr.f32.mxu0 0.0
    %v2702 = vand.u32 %v1519, 4294901760
    %2703 = vmatmul.mubr.f32.gmra.mxu0 %v2702
    %v2704 = vpop.f32.mrf.mxu0
    %v2705 = vadd.f32 %v2534, %v2704
    %v2706 = vpop.f32.mrf.mxu0
    %2707 = vmatprep.mubr.f32.mxu0 0.0
    %v2708 = vand.u32 %v1522, 4294901760
    %2709 = vmatmul.mubr.f32.gmra.mxu0 %v2708
    %v2710 = vpop.f32.mrf.mxu0
    %v2711 = vadd.f32 %v2540, %v2710
    %v2712 = vpop.f32.mrf.mxu0
    %2713 = vmatprep.mubr.f32.mxu0 0.0
    %v2714 = vand.u32 %v1525, 4294901760
    %2715 = vmatmul.mubr.f32.gmra.mxu0 %v2714
    %v2716 = vpop.f32.mrf.mxu0
    %v2717 = vadd.f32 %v2546, %v2716
    %v2718 = vpop.f32.mrf.mxu0
    %2719 = vmatprep.mubr.f32.mxu0 0.0
    %v2720 = vand.u32 %v1528, 4294901760
    %2721 = vmatmul.mubr.f32.gmra.mxu0 %v2720
    %v2722 = vpop.f32.mrf.mxu0
    %v2723 = vadd.f32 %v2552, %v2722
    %v2724 = vpop.f32.mrf.mxu0
    %2725 = vmatprep.mubr.f32.mxu0 0.0
    %v2726 = vand.u32 %v1531, 4294901760
    %2727 = vmatmul.mubr.f32.gmra.mxu0 %v2726
    %v2728 = vpop.f32.mrf.mxu0
    %v2729 = vadd.f32 %v2558, %v2728
    %v2730 = vpop.f32.mrf.mxu0
    %2731 = vmatprep.mubr.f32.mxu0 0.0
    %v2732 = vand.u32 %v1534, 4294901760
    %2733 = vmatmul.mubr.f32.gmra.mxu0 %v2732
    %v2734 = vpop.f32.mrf.mxu0
    %v2735 = vadd.f32 %v2564, %v2734
    %v2736 = vpop.f32.mrf.mxu0
    %2737 = vmatprep.mubr.f32.mxu0 0.0
    %v2738 = vand.u32 %v1537, 4294901760
    %2739 = vmatmul.mubr.f32.gmra.mxu0 %v2738
    %v2740 = vpop.f32.mrf.mxu0
    %v2741 = vadd.f32 %v2570, %v2740
    %v2742 = vpop.f32.mrf.mxu0
    %2743 = vmatprep.mubr.f32.mxu0 0.0
    %v2744 = vand.u32 %v1540, 4294901760
    %2745 = vmatmul.mubr.f32.gmra.mxu0 %v2744
    %v2746 = vpop.f32.mrf.mxu0
    %v2747 = vadd.f32 %v2576, %v2746
    %v2748 = vpop.f32.mrf.mxu0
    %2749 = vdwg.mxu0
    %v2750 = vmul.f32 %v1390, %v2657
    %v2751 = vmul.f32 %v1396, %v2663
    %v2752 = vmul.f32 %v1402, %v2669
    %v2753 = vmul.f32 %v1408, %v2675
    %v2754 = vmul.f32 %v1414, %v2681
    %v2755 = vmul.f32 %v1420, %v2687
    %v2756 = vmul.f32 %v1426, %v2693
    %v2757 = vmul.f32 %v1432, %v2699
    %v2758 = vmul.f32 %v1438, %v2705
    %v2759 = vmul.f32 %v1444, %v2711
    %v2760 = vmul.f32 %v1450, %v2717
    %v2761 = vmul.f32 %v1456, %v2723
    %v2762 = vmul.f32 %v1462, %v2729
    %v2763 = vmul.f32 %v1468, %v2735
    %v2764 = vmul.f32 %v1474, %v2741
    %v2765 = vmul.f32 %v1480, %v2747
    %vm2766 = vcmask 277504
    %v2768 = vsel %vm2766, 1.0, 0
    %v2771 = vsel %vm2766, %v2750, 0
    %v2774 = vsel %vm2766, %v2751, 0
    %v2777 = vsel %vm2766, %v2752, 0
    %v2780 = vsel %vm2766, %v2753, 0
    %v2783 = vsel %vm2766, %v2754, 0
    %v2786 = vsel %vm2766, %v2755, 0
    %v2789 = vsel %vm2766, %v2756, 0
    %v2792 = vsel %vm2766, %v2757, 0
    %v2795 = vsel %vm2766, %v2758, 0
    %v2798 = vsel %vm2766, %v2759, 0
    %v2801 = vsel %vm2766, %v2760, 0
    %v2804 = vsel %vm2766, %v2761, 0
    %v2807 = vsel %vm2766, %v2762, 0
    %v2810 = vsel %vm2766, %v2763, 0
    %v2813 = vsel %vm2766, %v2764, 0
    %v2816 = vsel %vm2766, %v2765, 0
    %2818 = vmatprep.subr.mxu0 0.0
    %v2819 = vand.u32 %v2816, 4294901760
    %2820 = vmatpush1.xpose.msra.mxu0 %v2819
    %2821 = vmatprep.subr.mxu0 0.0
    %v2822 = vand.u32 %v2813, 4294901760
    %2823 = vmatpush1.xpose.msra.mxu0 %v2822
    %2824 = vmatprep.subr.mxu0 0.0
    %v2825 = vand.u32 %v2810, 4294901760
    %2826 = vmatpush1.xpose.msra.mxu0 %v2825
    %2827 = vmatprep.subr.mxu0 0.0
    %v2828 = vand.u32 %v2807, 4294901760
    %2829 = vmatpush1.xpose.msra.mxu0 %v2828
    %2830 = vmatprep.subr.mxu0 0.0
    %v2831 = vand.u32 %v2804, 4294901760
    %2832 = vmatpush1.xpose.msra.mxu0 %v2831
    %2833 = vmatprep.subr.mxu0 0.0
    %v2834 = vand.u32 %v2801, 4294901760
    %2835 = vmatpush1.xpose.msra.mxu0 %v2834
    %2836 = vmatprep.subr.mxu0 0.0
    %v2837 = vand.u32 %v2798, 4294901760
    %2838 = vmatpush1.xpose.msra.mxu0 %v2837
    %2839 = vmatprep.subr.mxu0 0.0
    %v2840 = vand.u32 %v2795, 4294901760
    %2841 = vmatpush1.xpose.msra.mxu0 %v2840
    %2842 = vmatprep.subr.mxu0 0.0
    %v2843 = vand.u32 %v2792, 4294901760
    %2844 = vmatpush1.xpose.msra.mxu0 %v2843
    %2845 = vmatprep.subr.mxu0 0.0
    %v2846 = vand.u32 %v2789, 4294901760
    %2847 = vmatpush1.xpose.msra.mxu0 %v2846
    %2848 = vmatprep.subr.mxu0 0.0
    %v2849 = vand.u32 %v2786, 4294901760
    %2850 = vmatpush1.xpose.msra.mxu0 %v2849
    %2851 = vmatprep.subr.mxu0 0.0
    %v2852 = vand.u32 %v2783, 4294901760
    %2853 = vmatpush1.xpose.msra.mxu0 %v2852
    %2854 = vmatprep.subr.mxu0 0.0
    %v2855 = vand.u32 %v2780, 4294901760
    %2856 = vmatpush1.xpose.msra.mxu0 %v2855
    %2857 = vmatprep.subr.mxu0 0.0
    %v2858 = vand.u32 %v2777, 4294901760
    %2859 = vmatpush1.xpose.msra.mxu0 %v2858
    %2860 = vmatprep.subr.mxu0 0.0
    %v2861 = vand.u32 %v2774, 4294901760
    %2862 = vmatpush1.xpose.msra.mxu0 %v2861
    %2863 = vmatprep.subr.mxu0 0.0
    %v2864 = vand.u32 %v2771, 4294901760
    %2865 = vmatpush1.xpose.msra.mxu0 %v2864
    %2866 = vmatprep.subr.mxu0 0.0
    %2867 = vmatpush2.xpose.msra.mxu0 0.0
    %2868 = vmatprep.subr.mxu0 0.0
    %2869 = vmatpush2.xpose.msra.mxu0 0.0
    %2870 = vmatprep.subr.mxu0 0.0
    %2871 = vmatpush2.xpose.msra.mxu0 0.0
    %2872 = vmatprep.subr.mxu0 0.0
    %2873 = vmatpush2.xpose.msra.mxu0 0.0
    %2874 = vmatprep.subr.mxu0 0.0
    %2875 = vmatpush2.xpose.msra.mxu0 0.0
    %2876 = vmatprep.subr.mxu0 0.0
    %2877 = vmatpush2.xpose.msra.mxu0 0.0
    %2878 = vmatprep.subr.mxu0 0.0
    %2879 = vmatpush2.xpose.msra.mxu0 0.0
    %2880 = vmatprep.subr.mxu0 0.0
    %2881 = vmatpush2.xpose.msra.mxu0 0.0
    %2882 = vmatprep.subr.mxu0 0.0
    %2883 = vmatpush2.xpose.msra.mxu0 0.0
    %2884 = vmatprep.subr.mxu0 0.0
    %2885 = vmatpush2.xpose.msra.mxu0 0.0
    %2886 = vmatprep.subr.mxu0 0.0
    %2887 = vmatpush2.xpose.msra.mxu0 0.0
    %2888 = vmatprep.subr.mxu0 0.0
    %2889 = vmatpush2.xpose.msra.mxu0 0.0
    %2890 = vmatprep.subr.mxu0 0.0
    %2891 = vmatpush2.xpose.msra.mxu0 0.0
    %2892 = vmatprep.subr.mxu0 0.0
    %2893 = vmatpush2.xpose.msra.mxu0 0.0
    %2894 = vmatprep.subr.mxu0 0.0
    %2895 = vmatpush2.xpose.msra.mxu0 0.0
    %2896 = vmatprep.subr.mxu0 0.0
    %2897 = vmatpush2.xpose.msra.mxu0 0.0
    %2898 = vmatprep.mubr.f32.mxu0 0.0
    %v2899 = vand.u32 %v2768, 4294901760
    %v2900 = vsub.f32 %v2768, %v2899
    %v2901 = vand.u32 %v2900, 4294901760
    %v2902 = vsub.f32 %v2900, %v2901
    %v2903 = vand.u32 %v2902, 4294901760
    %2904 = vmatmul.mubr.f32.gmra.mxu0 %v2903
    %v2905 = vpop.f32.mrf.mxu0
    %v2906 = vadd.f32 0.0, %v2905
    %v2907 = vpop.f32.mrf.mxu0
    %2908 = vdwg.mxu0
    %2909 = vmatprep.subr.mxu0 0.0
    %v2910 = vand.u32 %v2816, 4294901760
    %v2911 = vsub.f32 %v2816, %v2910
    %v2912 = vand.u32 %v2911, 4294901760
    %v2913 = vsub.f32 %v2911, %v2912
    %v2914 = vand.u32 %v2913, 4294901760
    %2915 = vmatpush1.xpose.msra.mxu0 %v2914
    %2916 = vmatprep.subr.mxu0 0.0
    %v2917 = vand.u32 %v2813, 4294901760
    %v2918 = vsub.f32 %v2813, %v2917
    %v2919 = vand.u32 %v2918, 4294901760
    %v2920 = vsub.f32 %v2918, %v2919
    %v2921 = vand.u32 %v2920, 4294901760
    %2922 = vmatpush1.xpose.msra.mxu0 %v2921
    %2923 = vmatprep.subr.mxu0 0.0
    %v2924 = vand.u32 %v2810, 4294901760
    %v2925 = vsub.f32 %v2810, %v2924
    %v2926 = vand.u32 %v2925, 4294901760
    %v2927 = vsub.f32 %v2925, %v2926
    %v2928 = vand.u32 %v2927, 4294901760
    %2929 = vmatpush1.xpose.msra.mxu0 %v2928
    %2930 = vmatprep.subr.mxu0 0.0
    %v2931 = vand.u32 %v2807, 4294901760
    %v2932 = vsub.f32 %v2807, %v2931
    %v2933 = vand.u32 %v2932, 4294901760
    %v2934 = vsub.f32 %v2932, %v2933
    %v2935 = vand.u32 %v2934, 4294901760
    %2936 = vmatpush1.xpose.msra.mxu0 %v2935
    %2937 = vmatprep.subr.mxu0 0.0
    %v2938 = vand.u32 %v2804, 4294901760
    %v2939 = vsub.f32 %v2804, %v2938
    %v2940 = vand.u32 %v2939, 4294901760
    %v2941 = vsub.f32 %v2939, %v2940
    %v2942 = vand.u32 %v2941, 4294901760
    %2943 = vmatpush1.xpose.msra.mxu0 %v2942
    %2944 = vmatprep.subr.mxu0 0.0
    %v2945 = vand.u32 %v2801, 4294901760
    %v2946 = vsub.f32 %v2801, %v2945
    %v2947 = vand.u32 %v2946, 4294901760
    %v2948 = vsub.f32 %v2946, %v2947
    %v2949 = vand.u32 %v2948, 4294901760
    %2950 = vmatpush1.xpose.msra.mxu0 %v2949
    %2951 = vmatprep.subr.mxu0 0.0
    %v2952 = vand.u32 %v2798, 4294901760
    %v2953 = vsub.f32 %v2798, %v2952
    %v2954 = vand.u32 %v2953, 4294901760
    %v2955 = vsub.f32 %v2953, %v2954
    %v2956 = vand.u32 %v2955, 4294901760
    %2957 = vmatpush1.xpose.msra.mxu0 %v2956
    %2958 = vmatprep.subr.mxu0 0.0
    %v2959 = vand.u32 %v2795, 4294901760
    %v2960 = vsub.f32 %v2795, %v2959
    %v2961 = vand.u32 %v2960, 4294901760
    %v2962 = vsub.f32 %v2960, %v2961
    %v2963 = vand.u32 %v2962, 4294901760
    %2964 = vmatpush1.xpose.msra.mxu0 %v2963
    %2965 = vmatprep.subr.mxu0 0.0
    %v2966 = vand.u32 %v2792, 4294901760
    %v2967 = vsub.f32 %v2792, %v2966
    %v2968 = vand.u32 %v2967, 4294901760
    %v2969 = vsub.f32 %v2967, %v2968
    %v2970 = vand.u32 %v2969, 4294901760
    %2971 = vmatpush1.xpose.msra.mxu0 %v2970
    %2972 = vmatprep.subr.mxu0 0.0
    %v2973 = vand.u32 %v2789, 4294901760
    %v2974 = vsub.f32 %v2789, %v2973
    %v2975 = vand.u32 %v2974, 4294901760
    %v2976 = vsub.f32 %v2974, %v2975
    %v2977 = vand.u32 %v2976, 4294901760
    %2978 = vmatpush1.xpose.msra.mxu0 %v2977
    %2979 = vmatprep.subr.mxu0 0.0
    %v2980 = vand.u32 %v2786, 4294901760
    %v2981 = vsub.f32 %v2786, %v2980
    %v2982 = vand.u32 %v2981, 4294901760
    %v2983 = vsub.f32 %v2981, %v2982
    %v2984 = vand.u32 %v2983, 4294901760
    %2985 = vmatpush1.xpose.msra.mxu0 %v2984
    %2986 = vmatprep.subr.mxu0 0.0
    %v2987 = vand.u32 %v2783, 4294901760
    %v2988 = vsub.f32 %v2783, %v2987
    %v2989 = vand.u32 %v2988, 4294901760
    %v2990 = vsub.f32 %v2988, %v2989
    %v2991 = vand.u32 %v2990, 4294901760
    %2992 = vmatpush1.xpose.msra.mxu0 %v2991
    %2993 = vmatprep.subr.mxu0 0.0
    %v2994 = vand.u32 %v2780, 4294901760
    %v2995 = vsub.f32 %v2780, %v2994
    %v2996 = vand.u32 %v2995, 4294901760
    %v2997 = vsub.f32 %v2995, %v2996
    %v2998 = vand.u32 %v2997, 4294901760
    %2999 = vmatpush1.xpose.msra.mxu0 %v2998
    %3000 = vmatprep.subr.mxu0 0.0
    %v3001 = vand.u32 %v2777, 4294901760
    %v3002 = vsub.f32 %v2777, %v3001
    %v3003 = vand.u32 %v3002, 4294901760
    %v3004 = vsub.f32 %v3002, %v3003
    %v3005 = vand.u32 %v3004, 4294901760
    %3006 = vmatpush1.xpose.msra.mxu0 %v3005
    %3007 = vmatprep.subr.mxu0 0.0
    %v3008 = vand.u32 %v2774, 4294901760
    %v3009 = vsub.f32 %v2774, %v3008
    %v3010 = vand.u32 %v3009, 4294901760
    %v3011 = vsub.f32 %v3009, %v3010
    %v3012 = vand.u32 %v3011, 4294901760
    %3013 = vmatpush1.xpose.msra.mxu0 %v3012
    %3014 = vmatprep.subr.mxu0 0.0
    %v3015 = vand.u32 %v2771, 4294901760
    %v3016 = vsub.f32 %v2771, %v3015
    %v3017 = vand.u32 %v3016, 4294901760
    %v3018 = vsub.f32 %v3016, %v3017
    %v3019 = vand.u32 %v3018, 4294901760
    %3020 = vmatpush1.xpose.msra.mxu0 %v3019
    %3021 = vmatprep.subr.mxu0 0.0
    %3022 = vmatpush2.xpose.msra.mxu0 0.0
    %3023 = vmatprep.subr.mxu0 0.0
    %3024 = vmatpush2.xpose.msra.mxu0 0.0
    %3025 = vmatprep.subr.mxu0 0.0
    %3026 = vmatpush2.xpose.msra.mxu0 0.0
    %3027 = vmatprep.subr.mxu0 0.0
    %3028 = vmatpush2.xpose.msra.mxu0 0.0
    %3029 = vmatprep.subr.mxu0 0.0
    %3030 = vmatpush2.xpose.msra.mxu0 0.0
    %3031 = vmatprep.subr.mxu0 0.0
    %3032 = vmatpush2.xpose.msra.mxu0 0.0
    %3033 = vmatprep.subr.mxu0 0.0
    %3034 = vmatpush2.xpose.msra.mxu0 0.0
    %3035 = vmatprep.subr.mxu0 0.0
    %3036 = vmatpush2.xpose.msra.mxu0 0.0
    %3037 = vmatprep.subr.mxu0 0.0
    %3038 = vmatpush2.xpose.msra.mxu0 0.0
    %3039 = vmatprep.subr.mxu0 0.0
    %3040 = vmatpush2.xpose.msra.mxu0 0.0
    %3041 = vmatprep.subr.mxu0 0.0
    %3042 = vmatpush2.xpose.msra.mxu0 0.0
    %3043 = vmatprep.subr.mxu0 0.0
    %3044 = vmatpush2.xpose.msra.mxu0 0.0
    %3045 = vmatprep.subr.mxu0 0.0
    %3046 = vmatpush2.xpose.msra.mxu0 0.0
    %3047 = vmatprep.subr.mxu0 0.0
    %3048 = vmatpush2.xpose.msra.mxu0 0.0
    %3049 = vmatprep.subr.mxu0 0.0
    %3050 = vmatpush2.xpose.msra.mxu0 0.0
    %3051 = vmatprep.subr.mxu0 0.0
    %3052 = vmatpush2.xpose.msra.mxu0 0.0
    %3053 = vmatprep.mubr.f32.mxu0 0.0
    %v3054 = vand.u32 %v2768, 4294901760
    %3055 = vmatmul.mubr.f32.gmra.mxu0 %v3054
    %v3056 = vpop.f32.mrf.mxu0
    %v3057 = vadd.f32 %v2906, %v3056
    %v3058 = vpop.f32.mrf.mxu0
    %3059 = vdwg.mxu0
    %3060 = vmatprep.subr.mxu0 0.0
    %v3061 = vand.u32 %v2816, 4294901760
    %v3062 = vsub.f32 %v2816, %v3061
    %3063 = vmatpush1.xpose.msra.mxu0 %v3062
    %3064 = vmatprep.subr.mxu0 0.0
    %v3065 = vand.u32 %v2813, 4294901760
    %v3066 = vsub.f32 %v2813, %v3065
    %3067 = vmatpush1.xpose.msra.mxu0 %v3066
    %3068 = vmatprep.subr.mxu0 0.0
    %v3069 = vand.u32 %v2810, 4294901760
    %v3070 = vsub.f32 %v2810, %v3069
    %3071 = vmatpush1.xpose.msra.mxu0 %v3070
    %3072 = vmatprep.subr.mxu0 0.0
    %v3073 = vand.u32 %v2807, 4294901760
    %v3074 = vsub.f32 %v2807, %v3073
    %3075 = vmatpush1.xpose.msra.mxu0 %v3074
    %3076 = vmatprep.subr.mxu0 0.0
    %v3077 = vand.u32 %v2804, 4294901760
    %v3078 = vsub.f32 %v2804, %v3077
    %3079 = vmatpush1.xpose.msra.mxu0 %v3078
    %3080 = vmatprep.subr.mxu0 0.0
    %v3081 = vand.u32 %v2801, 4294901760
    %v3082 = vsub.f32 %v2801, %v3081
    %3083 = vmatpush1.xpose.msra.mxu0 %v3082
    %3084 = vmatprep.subr.mxu0 0.0
    %v3085 = vand.u32 %v2798, 4294901760
    %v3086 = vsub.f32 %v2798, %v3085
    %3087 = vmatpush1.xpose.msra.mxu0 %v3086
    %3088 = vmatprep.subr.mxu0 0.0
    %v3089 = vand.u32 %v2795, 4294901760
    %v3090 = vsub.f32 %v2795, %v3089
    %3091 = vmatpush1.xpose.msra.mxu0 %v3090
    %3092 = vmatprep.subr.mxu0 0.0
    %v3093 = vand.u32 %v2792, 4294901760
    %v3094 = vsub.f32 %v2792, %v3093
    %3095 = vmatpush1.xpose.msra.mxu0 %v3094
    %3096 = vmatprep.subr.mxu0 0.0
    %v3097 = vand.u32 %v2789, 4294901760
    %v3098 = vsub.f32 %v2789, %v3097
    %3099 = vmatpush1.xpose.msra.mxu0 %v3098
    %3100 = vmatprep.subr.mxu0 0.0
    %v3101 = vand.u32 %v2786, 4294901760
    %v3102 = vsub.f32 %v2786, %v3101
    %3103 = vmatpush1.xpose.msra.mxu0 %v3102
    %3104 = vmatprep.subr.mxu0 0.0
    %v3105 = vand.u32 %v2783, 4294901760
    %v3106 = vsub.f32 %v2783, %v3105
    %3107 = vmatpush1.xpose.msra.mxu0 %v3106
    %3108 = vmatprep.subr.mxu0 0.0
    %v3109 = vand.u32 %v2780, 4294901760
    %v3110 = vsub.f32 %v2780, %v3109
    %3111 = vmatpush1.xpose.msra.mxu0 %v3110
    %3112 = vmatprep.subr.mxu0 0.0
    %v3113 = vand.u32 %v2777, 4294901760
    %v3114 = vsub.f32 %v2777, %v3113
    %3115 = vmatpush1.xpose.msra.mxu0 %v3114
    %3116 = vmatprep.subr.mxu0 0.0
    %v3117 = vand.u32 %v2774, 4294901760
    %v3118 = vsub.f32 %v2774, %v3117
    %3119 = vmatpush1.xpose.msra.mxu0 %v3118
    %3120 = vmatprep.subr.mxu0 0.0
    %v3121 = vand.u32 %v2771, 4294901760
    %v3122 = vsub.f32 %v2771, %v3121
    %3123 = vmatpush1.xpose.msra.mxu0 %v3122
    %3124 = vmatprep.subr.mxu0 0.0
    %3125 = vmatpush2.xpose.msra.mxu0 0.0
    %3126 = vmatprep.subr.mxu0 0.0
    %3127 = vmatpush2.xpose.msra.mxu0 0.0
    %3128 = vmatprep.subr.mxu0 0.0
    %3129 = vmatpush2.xpose.msra.mxu0 0.0
    %3130 = vmatprep.subr.mxu0 0.0
    %3131 = vmatpush2.xpose.msra.mxu0 0.0
    %3132 = vmatprep.subr.mxu0 0.0
    %3133 = vmatpush2.xpose.msra.mxu0 0.0
    %3134 = vmatprep.subr.mxu0 0.0
    %3135 = vmatpush2.xpose.msra.mxu0 0.0
    %3136 = vmatprep.subr.mxu0 0.0
    %3137 = vmatpush2.xpose.msra.mxu0 0.0
    %3138 = vmatprep.subr.mxu0 0.0
    %3139 = vmatpush2.xpose.msra.mxu0 0.0
    %3140 = vmatprep.subr.mxu0 0.0
    %3141 = vmatpush2.xpose.msra.mxu0 0.0
    %3142 = vmatprep.subr.mxu0 0.0
    %3143 = vmatpush2.xpose.msra.mxu0 0.0
    %3144 = vmatprep.subr.mxu0 0.0
    %3145 = vmatpush2.xpose.msra.mxu0 0.0
    %3146 = vmatprep.subr.mxu0 0.0
    %3147 = vmatpush2.xpose.msra.mxu0 0.0
    %3148 = vmatprep.subr.mxu0 0.0
    %3149 = vmatpush2.xpose.msra.mxu0 0.0
    %3150 = vmatprep.subr.mxu0 0.0
    %3151 = vmatpush2.xpose.msra.mxu0 0.0
    %3152 = vmatprep.subr.mxu0 0.0
    %3153 = vmatpush2.xpose.msra.mxu0 0.0
    %3154 = vmatprep.subr.mxu0 0.0
    %3155 = vmatpush2.xpose.msra.mxu0 0.0
    %3156 = vmatprep.mubr.f32.mxu0 0.0
    %v3157 = vand.u32 %v2768, 4294901760
    %v3158 = vsub.f32 %v2768, %v3157
    %3159 = vmatmul.mubr.f32.gmra.mxu0 %v3158
    %v3160 = vpop.f32.mrf.mxu0
    %v3161 = vadd.f32 %v3057, %v3160
    %v3162 = vpop.f32.mrf.mxu0
    %3163 = vdwg.mxu0
    %3164 = vmatprep.subr.mxu0 0.0
    %v3165 = vand.u32 %v2816, 4294901760
    %3166 = vmatpush1.xpose.msra.mxu0 %v3165
    %3167 = vmatprep.subr.mxu0 0.0
    %v3168 = vand.u32 %v2813, 4294901760
    %3169 = vmatpush1.xpose.msra.mxu0 %v3168
    %3170 = vmatprep.subr.mxu0 0.0
    %v3171 = vand.u32 %v2810, 4294901760
    %3172 = vmatpush1.xpose.msra.mxu0 %v3171
    %3173 = vmatprep.subr.mxu0 0.0
    %v3174 = vand.u32 %v2807, 4294901760
    %3175 = vmatpush1.xpose.msra.mxu0 %v3174
    %3176 = vmatprep.subr.mxu0 0.0
    %v3177 = vand.u32 %v2804, 4294901760
    %3178 = vmatpush1.xpose.msra.mxu0 %v3177
    %3179 = vmatprep.subr.mxu0 0.0
    %v3180 = vand.u32 %v2801, 4294901760
    %3181 = vmatpush1.xpose.msra.mxu0 %v3180
    %3182 = vmatprep.subr.mxu0 0.0
    %v3183 = vand.u32 %v2798, 4294901760
    %3184 = vmatpush1.xpose.msra.mxu0 %v3183
    %3185 = vmatprep.subr.mxu0 0.0
    %v3186 = vand.u32 %v2795, 4294901760
    %3187 = vmatpush1.xpose.msra.mxu0 %v3186
    %3188 = vmatprep.subr.mxu0 0.0
    %v3189 = vand.u32 %v2792, 4294901760
    %3190 = vmatpush1.xpose.msra.mxu0 %v3189
    %3191 = vmatprep.subr.mxu0 0.0
    %v3192 = vand.u32 %v2789, 4294901760
    %3193 = vmatpush1.xpose.msra.mxu0 %v3192
    %3194 = vmatprep.subr.mxu0 0.0
    %v3195 = vand.u32 %v2786, 4294901760
    %3196 = vmatpush1.xpose.msra.mxu0 %v3195
    %3197 = vmatprep.subr.mxu0 0.0
    %v3198 = vand.u32 %v2783, 4294901760
    %3199 = vmatpush1.xpose.msra.mxu0 %v3198
    %3200 = vmatprep.subr.mxu0 0.0
    %v3201 = vand.u32 %v2780, 4294901760
    %3202 = vmatpush1.xpose.msra.mxu0 %v3201
    %3203 = vmatprep.subr.mxu0 0.0
    %v3204 = vand.u32 %v2777, 4294901760
    %3205 = vmatpush1.xpose.msra.mxu0 %v3204
    %3206 = vmatprep.subr.mxu0 0.0
    %v3207 = vand.u32 %v2774, 4294901760
    %3208 = vmatpush1.xpose.msra.mxu0 %v3207
    %3209 = vmatprep.subr.mxu0 0.0
    %v3210 = vand.u32 %v2771, 4294901760
    %3211 = vmatpush1.xpose.msra.mxu0 %v3210
    %3212 = vmatprep.subr.mxu0 0.0
    %3213 = vmatpush2.xpose.msra.mxu0 0.0
    %3214 = vmatprep.subr.mxu0 0.0
    %3215 = vmatpush2.xpose.msra.mxu0 0.0
    %3216 = vmatprep.subr.mxu0 0.0
    %3217 = vmatpush2.xpose.msra.mxu0 0.0
    %3218 = vmatprep.subr.mxu0 0.0
    %3219 = vmatpush2.xpose.msra.mxu0 0.0
    %3220 = vmatprep.subr.mxu0 0.0
    %3221 = vmatpush2.xpose.msra.mxu0 0.0
    %3222 = vmatprep.subr.mxu0 0.0
    %3223 = vmatpush2.xpose.msra.mxu0 0.0
    %3224 = vmatprep.subr.mxu0 0.0
    %3225 = vmatpush2.xpose.msra.mxu0 0.0
    %3226 = vmatprep.subr.mxu0 0.0
    %3227 = vmatpush2.xpose.msra.mxu0 0.0
    %3228 = vmatprep.subr.mxu0 0.0
    %3229 = vmatpush2.xpose.msra.mxu0 0.0
    %3230 = vmatprep.subr.mxu0 0.0
    %3231 = vmatpush2.xpose.msra.mxu0 0.0
    %3232 = vmatprep.subr.mxu0 0.0
    %3233 = vmatpush2.xpose.msra.mxu0 0.0
    %3234 = vmatprep.subr.mxu0 0.0
    %3235 = vmatpush2.xpose.msra.mxu0 0.0
    %3236 = vmatprep.subr.mxu0 0.0
    %3237 = vmatpush2.xpose.msra.mxu0 0.0
    %3238 = vmatprep.subr.mxu0 0.0
    %3239 = vmatpush2.xpose.msra.mxu0 0.0
    %3240 = vmatprep.subr.mxu0 0.0
    %3241 = vmatpush2.xpose.msra.mxu0 0.0
    %3242 = vmatprep.subr.mxu0 0.0
    %3243 = vmatpush2.xpose.msra.mxu0 0.0
    %3244 = vmatprep.mubr.f32.mxu0 0.0
    %v3245 = vand.u32 %v2768, 4294901760
    %v3246 = vsub.f32 %v2768, %v3245
    %v3247 = vand.u32 %v3246, 4294901760
    %3248 = vmatmul.mubr.f32.gmra.mxu0 %v3247
    %v3249 = vpop.f32.mrf.mxu0
    %v3250 = vadd.f32 %v3161, %v3249
    %v3251 = vpop.f32.mrf.mxu0
    %3252 = vdwg.mxu0
    %3253 = vmatprep.subr.mxu0 0.0
    %v3254 = vand.u32 %v2816, 4294901760
    %v3255 = vsub.f32 %v2816, %v3254
    %v3256 = vand.u32 %v3255, 4294901760
    %3257 = vmatpush1.xpose.msra.mxu0 %v3256
    %3258 = vmatprep.subr.mxu0 0.0
    %v3259 = vand.u32 %v2813, 4294901760
    %v3260 = vsub.f32 %v2813, %v3259
    %v3261 = vand.u32 %v3260, 4294901760
    %3262 = vmatpush1.xpose.msra.mxu0 %v3261
    %3263 = vmatprep.subr.mxu0 0.0
    %v3264 = vand.u32 %v2810, 4294901760
    %v3265 = vsub.f32 %v2810, %v3264
    %v3266 = vand.u32 %v3265, 4294901760
    %3267 = vmatpush1.xpose.msra.mxu0 %v3266
    %3268 = vmatprep.subr.mxu0 0.0
    %v3269 = vand.u32 %v2807, 4294901760
    %v3270 = vsub.f32 %v2807, %v3269
    %v3271 = vand.u32 %v3270, 4294901760
    %3272 = vmatpush1.xpose.msra.mxu0 %v3271
    %3273 = vmatprep.subr.mxu0 0.0
    %v3274 = vand.u32 %v2804, 4294901760
    %v3275 = vsub.f32 %v2804, %v3274
    %v3276 = vand.u32 %v3275, 4294901760
    %3277 = vmatpush1.xpose.msra.mxu0 %v3276
    %3278 = vmatprep.subr.mxu0 0.0
    %v3279 = vand.u32 %v2801, 4294901760
    %v3280 = vsub.f32 %v2801, %v3279
    %v3281 = vand.u32 %v3280, 4294901760
    %3282 = vmatpush1.xpose.msra.mxu0 %v3281
    %3283 = vmatprep.subr.mxu0 0.0
    %v3284 = vand.u32 %v2798, 4294901760
    %v3285 = vsub.f32 %v2798, %v3284
    %v3286 = vand.u32 %v3285, 4294901760
    %3287 = vmatpush1.xpose.msra.mxu0 %v3286
    %3288 = vmatprep.subr.mxu0 0.0
    %v3289 = vand.u32 %v2795, 4294901760
    %v3290 = vsub.f32 %v2795, %v3289
    %v3291 = vand.u32 %v3290, 4294901760
    %3292 = vmatpush1.xpose.msra.mxu0 %v3291
    %3293 = vmatprep.subr.mxu0 0.0
    %v3294 = vand.u32 %v2792, 4294901760
    %v3295 = vsub.f32 %v2792, %v3294
    %v3296 = vand.u32 %v3295, 4294901760
    %3297 = vmatpush1.xpose.msra.mxu0 %v3296
    %3298 = vmatprep.subr.mxu0 0.0
    %v3299 = vand.u32 %v2789, 4294901760
    %v3300 = vsub.f32 %v2789, %v3299
    %v3301 = vand.u32 %v3300, 4294901760
    %3302 = vmatpush1.xpose.msra.mxu0 %v3301
    %3303 = vmatprep.subr.mxu0 0.0
    %v3304 = vand.u32 %v2786, 4294901760
    %v3305 = vsub.f32 %v2786, %v3304
    %v3306 = vand.u32 %v3305, 4294901760
    %3307 = vmatpush1.xpose.msra.mxu0 %v3306
    %3308 = vmatprep.subr.mxu0 0.0
    %v3309 = vand.u32 %v2783, 4294901760
    %v3310 = vsub.f32 %v2783, %v3309
    %v3311 = vand.u32 %v3310, 4294901760
    %3312 = vmatpush1.xpose.msra.mxu0 %v3311
    %3313 = vmatprep.subr.mxu0 0.0
    %v3314 = vand.u32 %v2780, 4294901760
    %v3315 = vsub.f32 %v2780, %v3314
    %v3316 = vand.u32 %v3315, 4294901760
    %3317 = vmatpush1.xpose.msra.mxu0 %v3316
    %3318 = vmatprep.subr.mxu0 0.0
    %v3319 = vand.u32 %v2777, 4294901760
    %v3320 = vsub.f32 %v2777, %v3319
    %v3321 = vand.u32 %v3320, 4294901760
    %3322 = vmatpush1.xpose.msra.mxu0 %v3321
    %3323 = vmatprep.subr.mxu0 0.0
    %v3324 = vand.u32 %v2774, 4294901760
    %v3325 = vsub.f32 %v2774, %v3324
    %v3326 = vand.u32 %v3325, 4294901760
    %3327 = vmatpush1.xpose.msra.mxu0 %v3326
    %3328 = vmatprep.subr.mxu0 0.0
    %v3329 = vand.u32 %v2771, 4294901760
    %v3330 = vsub.f32 %v2771, %v3329
    %v3331 = vand.u32 %v3330, 4294901760
    %3332 = vmatpush1.xpose.msra.mxu0 %v3331
    %3333 = vmatprep.subr.mxu0 0.0
    %3334 = vmatpush2.xpose.msra.mxu0 0.0
    %3335 = vmatprep.subr.mxu0 0.0
    %3336 = vmatpush2.xpose.msra.mxu0 0.0
    %3337 = vmatprep.subr.mxu0 0.0
    %3338 = vmatpush2.xpose.msra.mxu0 0.0
    %3339 = vmatprep.subr.mxu0 0.0
    %3340 = vmatpush2.xpose.msra.mxu0 0.0
    %3341 = vmatprep.subr.mxu0 0.0
    %3342 = vmatpush2.xpose.msra.mxu0 0.0
    %3343 = vmatprep.subr.mxu0 0.0
    %3344 = vmatpush2.xpose.msra.mxu0 0.0
    %3345 = vmatprep.subr.mxu0 0.0
    %3346 = vmatpush2.xpose.msra.mxu0 0.0
    %3347 = vmatprep.subr.mxu0 0.0
    %3348 = vmatpush2.xpose.msra.mxu0 0.0
    %3349 = vmatprep.subr.mxu0 0.0
    %3350 = vmatpush2.xpose.msra.mxu0 0.0
    %3351 = vmatprep.subr.mxu0 0.0
    %3352 = vmatpush2.xpose.msra.mxu0 0.0
    %3353 = vmatprep.subr.mxu0 0.0
    %3354 = vmatpush2.xpose.msra.mxu0 0.0
    %3355 = vmatprep.subr.mxu0 0.0
    %3356 = vmatpush2.xpose.msra.mxu0 0.0
    %3357 = vmatprep.subr.mxu0 0.0
    %3358 = vmatpush2.xpose.msra.mxu0 0.0
    %3359 = vmatprep.subr.mxu0 0.0
    %3360 = vmatpush2.xpose.msra.mxu0 0.0
    %3361 = vmatprep.subr.mxu0 0.0
    %3362 = vmatpush2.xpose.msra.mxu0 0.0
    %3363 = vmatprep.subr.mxu0 0.0
    %3364 = vmatpush2.xpose.msra.mxu0 0.0
    %3365 = vmatprep.mubr.f32.mxu0 0.0
    %v3366 = vand.u32 %v2768, 4294901760
    %3367 = vmatmul.mubr.f32.gmra.mxu0 %v3366
    %v3368 = vpop.f32.mrf.mxu0
    %v3369 = vadd.f32 %v3250, %v3368
    %v3370 = vpop.f32.mrf.mxu0
    %3371 = vdwg.mxu0
    %3372 = vmatprep.subr.mxu0 0.0
    %v3373 = vand.u32 %v2816, 4294901760
    %3374 = vmatpush1.xpose.msra.mxu0 %v3373
    %3375 = vmatprep.subr.mxu0 0.0
    %v3376 = vand.u32 %v2813, 4294901760
    %3377 = vmatpush1.xpose.msra.mxu0 %v3376
    %3378 = vmatprep.subr.mxu0 0.0
    %v3379 = vand.u32 %v2810, 4294901760
    %3380 = vmatpush1.xpose.msra.mxu0 %v3379
    %3381 = vmatprep.subr.mxu0 0.0
    %v3382 = vand.u32 %v2807, 4294901760
    %3383 = vmatpush1.xpose.msra.mxu0 %v3382
    %3384 = vmatprep.subr.mxu0 0.0
    %v3385 = vand.u32 %v2804, 4294901760
    %3386 = vmatpush1.xpose.msra.mxu0 %v3385
    %3387 = vmatprep.subr.mxu0 0.0
    %v3388 = vand.u32 %v2801, 4294901760
    %3389 = vmatpush1.xpose.msra.mxu0 %v3388
    %3390 = vmatprep.subr.mxu0 0.0
    %v3391 = vand.u32 %v2798, 4294901760
    %3392 = vmatpush1.xpose.msra.mxu0 %v3391
    %3393 = vmatprep.subr.mxu0 0.0
    %v3394 = vand.u32 %v2795, 4294901760
    %3395 = vmatpush1.xpose.msra.mxu0 %v3394
    %3396 = vmatprep.subr.mxu0 0.0
    %v3397 = vand.u32 %v2792, 4294901760
    %3398 = vmatpush1.xpose.msra.mxu0 %v3397
    %3399 = vmatprep.subr.mxu0 0.0
    %v3400 = vand.u32 %v2789, 4294901760
    %3401 = vmatpush1.xpose.msra.mxu0 %v3400
    %3402 = vmatprep.subr.mxu0 0.0
    %v3403 = vand.u32 %v2786, 4294901760
    %3404 = vmatpush1.xpose.msra.mxu0 %v3403
    %3405 = vmatprep.subr.mxu0 0.0
    %v3406 = vand.u32 %v2783, 4294901760
    %3407 = vmatpush1.xpose.msra.mxu0 %v3406
    %3408 = vmatprep.subr.mxu0 0.0
    %v3409 = vand.u32 %v2780, 4294901760
    %3410 = vmatpush1.xpose.msra.mxu0 %v3409
    %3411 = vmatprep.subr.mxu0 0.0
    %v3412 = vand.u32 %v2777, 4294901760
    %3413 = vmatpush1.xpose.msra.mxu0 %v3412
    %3414 = vmatprep.subr.mxu0 0.0
    %v3415 = vand.u32 %v2774, 4294901760
    %3416 = vmatpush1.xpose.msra.mxu0 %v3415
    %3417 = vmatprep.subr.mxu0 0.0
    %v3418 = vand.u32 %v2771, 4294901760
    %3419 = vmatpush1.xpose.msra.mxu0 %v3418
    %3420 = vmatprep.subr.mxu0 0.0
    %3421 = vmatpush2.xpose.msra.mxu0 0.0
    %3422 = vmatprep.subr.mxu0 0.0
    %3423 = vmatpush2.xpose.msra.mxu0 0.0
    %3424 = vmatprep.subr.mxu0 0.0
    %3425 = vmatpush2.xpose.msra.mxu0 0.0
    %3426 = vmatprep.subr.mxu0 0.0
    %3427 = vmatpush2.xpose.msra.mxu0 0.0
    %3428 = vmatprep.subr.mxu0 0.0
    %3429 = vmatpush2.xpose.msra.mxu0 0.0
    %3430 = vmatprep.subr.mxu0 0.0
    %3431 = vmatpush2.xpose.msra.mxu0 0.0
    %3432 = vmatprep.subr.mxu0 0.0
    %3433 = vmatpush2.xpose.msra.mxu0 0.0
    %3434 = vmatprep.subr.mxu0 0.0
    %3435 = vmatpush2.xpose.msra.mxu0 0.0
    %3436 = vmatprep.subr.mxu0 0.0
    %3437 = vmatpush2.xpose.msra.mxu0 0.0
    %3438 = vmatprep.subr.mxu0 0.0
    %3439 = vmatpush2.xpose.msra.mxu0 0.0
    %3440 = vmatprep.subr.mxu0 0.0
    %3441 = vmatpush2.xpose.msra.mxu0 0.0
    %3442 = vmatprep.subr.mxu0 0.0
    %3443 = vmatpush2.xpose.msra.mxu0 0.0
    %3444 = vmatprep.subr.mxu0 0.0
    %3445 = vmatpush2.xpose.msra.mxu0 0.0
    %3446 = vmatprep.subr.mxu0 0.0
    %3447 = vmatpush2.xpose.msra.mxu0 0.0
    %3448 = vmatprep.subr.mxu0 0.0
    %3449 = vmatpush2.xpose.msra.mxu0 0.0
    %3450 = vmatprep.subr.mxu0 0.0
    %3451 = vmatpush2.xpose.msra.mxu0 0.0
    %3452 = vmatprep.mubr.f32.mxu0 0.0
    %v3453 = vand.u32 %v2768, 4294901760
    %3454 = vmatmul.mubr.f32.gmra.mxu0 %v3453
    %v3455 = vpop.f32.mrf.mxu0
    %v3456 = vadd.f32 %v3369, %v3455
    %v3457 = vpop.f32.mrf.mxu0
    %3458 = vdwg.mxu0
    %3459 = vst [vmem:[#allocation2] sm:$0x1] %v3456
    // Predicated region
    $region18: #{tpu_custom_call.1} parent=1 // pred_check
      _
    $region19: #{tpu_custom_call.1} parent=1 // pred_check_branch
      %3461 = sbr.rel (0) target = $region21
    $region20: #{tpu_custom_call.1} parent=1 // pred_region
      %s3463 = ssub.s32 16, 16
      %3464 = vsyncadd [#allocation3], %s3463
      %s3466 = sshll.u32 [#allocation2], 4
      %s3467 = int_to_ptr.vmem [resolvable:$true] %s3466
      %3469 = dma.vmem_to_hbm [thread:$0]  %s3467, 16, %s4, [#allocation3]
    $region21: #{tpu_custom_call.1} parent=1 // pred_fallthru
      _
    // Predicated region
    $region22: #{tpu_custom_call.1} parent=1 // pred_check
      _
    $region23: #{tpu_custom_call.1} parent=1 // pred_check_branch
      %3471 = sbr.rel (0) target = $region25
    $region24: #{tpu_custom_call.1} parent=1 // pred_region
      %3472 = dma.done [#allocation3], 16
    $region25: #{tpu_custom_call.1} parent=1 // pred_fallthru
      _
    %3473 = vsyncpa [#allocation3], 1

</llo_original>
